<compile_context>
chip_gen: v7x
topology: tpu7x:2x2x1
jax: 0.10.0
libtpu: 0.0.40
codegen_flags: <defaults>
</compile_context>

<pallas_src>
import numpy as np
import jax
import jax.numpy as jnp
from jax.experimental import pallas as pl
from jax.experimental.pallas import tpu as pltpu

# ---- model hyper-parameters (small, consistent with the module) -------------
B = 2             # batch
S = 8             # sequence length
F = 16            # feature_dim
E = 32            # net_arch['embed_size']
H = 4             # net_arch['num_heads']
HEAD_DIM = E // H
FF = 64           # net_arch['dim_feedforward']
L = 2             # net_arch['num_layers']
EPS = 1e-5        # net_arch['layer_norm_eps']
SCALE = 1.0 / float(np.sqrt(HEAD_DIM))
NEG_INF = -1e30   # additive mask value (plain Python float)
ROWS = B * S      # batch folded into the sublane dim; one grid step
_NVEC = 16        # padded (multiple of 8) row count of the per-layer vector blob
# activation_fn = nn.ReLU


def _layer_norm(x, gamma, beta):
    # x: [rows, E], gamma/beta: [1, E]
    mu = jnp.mean(x, axis=-1, keepdims=True)
    var = jnp.mean(jnp.square(x - mu), axis=-1, keepdims=True)
    return (x - mu) * jax.lax.rsqrt(var + EPS) * gamma + beta


def _transformer_kernel(x_ref, bias_ref, hmask_ref, wemb_ref, bemb_ref,
                        wattn_ref, w1_ref, w2_ref, b1_ref, vec_ref, out_ref):
    # obs_embedding: Linear(F -> E); activations stay [ROWS, E] for the whole kernel.
    h = jnp.dot(x_ref[...], wemb_ref[...],
                preferred_element_type=jnp.float32) + bemb_ref[...]

    # Static additive attention bias: 0 on (same batch, causal) entries, -1e30 elsewhere.
    bias = bias_ref[...]                                     # [ROWS, ROWS]

    for l in range(L):
        wq = wattn_ref[l, 0]        # [E, E]  (SCALE already folded into wq / bq)
        wk = wattn_ref[l, 1]
        wv = wattn_ref[l, 2]
        wo = wattn_ref[l, 3]
        vl = vec_ref[l]             # [16, E]; rows: bq bk bv bo b2 g1 be1 g2 be2
        bq, bk, bv, bo = vl[0:1], vl[1:2], vl[2:3], vl[3:4]
        b2 = vl[4:5]
        g1, be1, g2, be2 = vl[5:6], vl[6:7], vl[7:8], vl[8:9]
        b1 = b1_ref[l]              # [1, FF]

        # ----- multi-head self-attention, no head-fold reshapes --------------
        q = jnp.dot(h, wq, preferred_element_type=jnp.float32) + bq   # [ROWS, E]
        k = jnp.dot(h, wk, preferred_element_type=jnp.float32) + bk
        v = jnp.dot(h, wv, preferred_element_type=jnp.float32) + bv

        attn = jnp.zeros((ROWS, E), jnp.float32)
        for hd in range(H):
            m = hmask_ref[hd:hd + 1, :]                      # [1, E] lane mask, head hd
            # zeroed q-lanes kill cross-head terms in the full-E contraction
            s = jax.lax.dot_general(q * m, k, (((1,), (1,)), ((), ())),
                                    preferred_element_type=jnp.float32) + bias
            smax = jnp.max(s, axis=-1, keepdims=True)
            p = jnp.exp(s - smax)
            p = p * pl.reciprocal(jnp.sum(p, axis=-1, keepdims=True), approx=False)
            # (p @ V) * mask_h == p @ (V * mask_h): head hd only writes its own lanes
            attn = attn + jnp.dot(p, v, preferred_element_type=jnp.float32) * m

        attn = jnp.dot(attn, wo, preferred_element_type=jnp.float32) + bo
        h = _layer_norm(h + attn, g1, be1)

        # ----- feed-forward block (ReLU activation_fn) ------------------------
        ff = jnp.dot(h, w1_ref[l], preferred_element_type=jnp.float32) + b1
        ff = jnp.maximum(ff, 0.0)
        ff = jnp.dot(ff, w2_ref[l], preferred_element_type=jnp.float32) + b2
        h = _layer_norm(h + ff, g2, be2)

    out_ref[...] = h.astype(out_ref.dtype)


# ----------------------------- wrapper ---------------------------------------
def _pack_params(params):
    """Fold SCALE into wq/bq and pack the 14 parameter tensors into 7 arrays."""
    (wemb, bemb, wqkv, bqkv, wo, bo, w1, b1, w2, b2, g1, be1, g2, be2) = params

    wq = wqkv[:, :, 0 * E:1 * E] * SCALE
    wk = wqkv[:, :, 1 * E:2 * E]
    wv = wqkv[:, :, 2 * E:3 * E]
    wattn = jnp.stack([wq, wk, wv, wo], axis=1)              # [L, 4, E, E]

    vec = jnp.zeros((L, _NVEC, E), jnp.float32)
    vec = vec.at[:, 0].set(bqkv[:, 0, 0 * E:1 * E] * SCALE)  # bq (scaled)
    vec = vec.at[:, 1].set(bqkv[:, 0, 1 * E:2 * E])          # bk
    vec = vec.at[:, 2].set(bqkv[:, 0, 2 * E:3 * E])          # bv
    vec = vec.at[:, 3].set(bo[:, 0])
    vec = vec.at[:, 4].set(b2[:, 0])
    vec = vec.at[:, 5].set(g1[:, 0])
    vec = vec.at[:, 6].set(be1[:, 0])
    vec = vec.at[:, 7].set(g2[:, 0])
    vec = vec.at[:, 8].set(be2[:, 0])
    return wemb, bemb, wattn, w1, w2, b1, vec


def _attention_consts():
    """Static additive bias (batch-block-diagonal + causal) and per-head lane masks."""
    r = np.arange(ROWS)[:, None]
    c = np.arange(ROWS)[None, :]
    allowed = ((r // S) == (c // S)) & ((c % S) <= (r % S))
    bias = np.where(allowed, 0.0, NEG_INF).astype(np.float32)          # [ROWS, ROWS]
    hmask = (np.arange(E)[None, :] // HEAD_DIM
             == np.arange(H)[:, None]).astype(np.float32)              # [H, E]
    return jnp.asarray(bias), jnp.asarray(hmask)


def transformer_actor_extractor(x, params):
    """x: [B, S, F] float32 -> [B, S, E] float32."""
    wemb, bemb, wattn, w1, w2, b1, vec = _pack_params(params)
    bias, hmask = _attention_consts()
    x2 = x.reshape(ROWS, F)        # free wrapper-side reshape (row-major contiguous)

    def inv(shape):
        zeros = (0,) * len(shape)
        return pl.BlockSpec(shape, lambda g, z=zeros: z)

    # Single grid step: at B=2, S=8 the whole problem is a few KiB of VMEM; splitting
    # across TensorCores would only duplicate weight DMAs and per-step overhead.
    # TODO(synk): if batch grows, cap rows-per-step so 4*(bb*S)^2 score bytes stay small.
    grid_spec = pltpu.PrefetchScalarGridSpec(
        num_scalar_prefetch=0,
        grid=(1,),
        in_specs=[
            inv((ROWS, F)),            # x (batch folded)
            inv((ROWS, ROWS)),         # additive attention bias
            inv((H, E)),               # per-head lane masks
            inv((F, E)),               # wemb
            inv((1, E)),               # bemb
            inv((L, 4, E, E)),         # wq|wk|wv|wo
            inv((L, E, FF)),           # w1
            inv((L, FF, E)),           # w2
            inv((L, 1, FF)),           # b1
            inv((L, _NVEC, E)),        # biases / LN params
        ],
        out_specs=inv((ROWS, E)),
    )

    flops = (2 * ROWS * F * E
             + L * 2 * ROWS * (4 * E * E + 2 * E * FF)
             + L * 4 * ROWS * ROWS * E)            # per-head scores + PV, useful flops
    cost = pl.CostEstimate(
        flops=int(flops),
        transcendentals=int(L * H * ROWS * ROWS),
        bytes_accessed=int(4 * (x2.size + bias.size + hmask.size + wemb.size
                                + bemb.size + wattn.size + w1.size + w2.size
                                + b1.size + vec.size + ROWS * E)),
    )

    out = pl.pallas_call(
        _transformer_kernel,
        out_shape=jax.ShapeDtypeStruct((ROWS, E), jnp.float32),
        grid_spec=grid_spec,
        compiler_params=pltpu.CompilerParams(dimension_semantics=("arbitrary",)),
        cost_estimate=cost,
    )(x2, bias, hmask, wemb, bemb, wattn, w1, w2, b1, vec)
    return out.reshape(B, S, E)


# ----------------------- pure-JAX reference (for verification) ---------------
def reference_forward(x, params):
    (wemb, bemb, wqkv, bqkv, wo, bo, w1, b1, w2, b2, g1, be1, g2, be2) = params
    h = x @ wemb + bemb                                                  # [B, S, E]
    causal = jnp.triu(jnp.ones((S, S), bool), k=1)

    def ln(t, g, bta):
        mu = t.mean(-1, keepdims=True)
        var = ((t - mu) ** 2).mean(-1, keepdims=True)
        return (t - mu) / jnp.sqrt(var + EPS) * g + bta

    for l in range(L):
        qkv = h @ wqkv[l] + bqkv[l]
        q, k, v = qkv[..., :E], qkv[..., E:2 * E], qkv[..., 2 * E:]
        qh = q.reshape(B, S, H, HEAD_DIM).transpose(0, 2, 1, 3)
        kh = k.reshape(B, S, H, HEAD_DIM).transpose(0, 2, 1, 3)
        vh = v.reshape(B, S, H, HEAD_DIM).transpose(0, 2, 1, 3)
        scores = jnp.einsum("bhqd,bhkd->bhqk", qh, kh) * SCALE
        scores = jnp.where(causal[None, None], -1e30, scores)
        p = jax.nn.softmax(scores, axis=-1)
        attn = jnp.einsum("bhqk,bhkd->bhqd", p, vh).transpose(0, 2, 1, 3).reshape(B, S, E)
        attn = attn @ wo[l] + bo[l]
        h = ln(h + attn, g1[l], be1[l])
        ff = jnp.maximum(h @ w1[l] + b1[l], 0.0) @ w2[l] + b2[l]
        h = ln(h + ff, g2[l], be2[l])
    return h


def make_params(key):
    ks = jax.random.split(key, 14)
    sc = 0.05
    wemb = jax.random.normal(ks[0], (F, E), jnp.float32) * sc
    bemb = jax.random.normal(ks[1], (1, E), jnp.float32) * sc
    wqkv = jax.random.normal(ks[2], (L, E, 3 * E), jnp.float32) * sc
    bqkv = jax.random.normal(ks[3], (L, 1, 3 * E), jnp.float32) * sc
    wo = jax.random.normal(ks[4], (L, E, E), jnp.float32) * sc
    bo = jax.random.normal(ks[5], (L, 1, E), jnp.float32) * sc
    w1 = jax.random.normal(ks[6], (L, E, FF), jnp.float32) * sc
    b1 = jax.random.normal(ks[7], (L, 1, FF), jnp.float32) * sc
    w2 = jax.random.normal(ks[8], (L, FF, E), jnp.float32) * sc
    b2 = jax.random.normal(ks[9], (L, 1, E), jnp.float32) * sc
    g1 = 1.0 + jax.random.normal(ks[10], (L, 1, E), jnp.float32) * sc
    be1 = jax.random.normal(ks[11], (L, 1, E), jnp.float32) * sc
    g2 = 1.0 + jax.random.normal(ks[12], (L, 1, E), jnp.float32) * sc
    be2 = jax.random.normal(ks[13], (L, 1, E), jnp.float32) * sc
    return (wemb, bemb, wqkv, bqkv, wo, bo, w1, b1, w2, b2, g1, be1, g2, be2)


if __name__ == "__main__":
    key = jax.random.PRNGKey(0)
    kx, kp = jax.random.split(key)
    x = jax.random.normal(kx, (B, S, F), jnp.float32)
    params = make_params(kp)

    out = jax.block_until_ready(transformer_actor_extractor(x, params))
    with jax.default_matmul_precision("float32"):
        ref = jax.block_until_ready(reference_forward(x, params))

    assert out.shape == (B, S, E)
    np.testing.assert_allclose(np.asarray(out), np.asarray(ref), rtol=2e-3, atol=2e-3)

    print("KERNEL_OK")
</pallas_src>

<mosaic_0001>
module attributes {stable_mosaic.version = 11 : i64} {
  func.func @_transformer_kernel(%arg0: i32, %arg1: memref<16x16xf32, #tpu.memory_space<vmem>>, %arg2: memref<16x16xf32, #tpu.memory_space<vmem>>, %arg3: memref<4x32xf32, #tpu.memory_space<vmem>>, %arg4: memref<16x32xf32, #tpu.memory_space<vmem>>, %arg5: memref<1x32xf32, #tpu.memory_space<vmem>>, %arg6: memref<2x4x32x32xf32, #tpu.memory_space<vmem>>, %arg7: memref<2x32x64xf32, #tpu.memory_space<vmem>>, %arg8: memref<2x64x32xf32, #tpu.memory_space<vmem>>, %arg9: memref<2x1x64xf32, #tpu.memory_space<vmem>>, %arg10: memref<2x16x32xf32, #tpu.memory_space<vmem>>, %arg11: memref<16x32xf32, #tpu.memory_space<vmem>>) attributes {dimension_semantics = [#tpu.dimension_semantics<arbitrary>], iteration_bounds = array<i64: 1>, scalar_prefetch = 0 : i64, scratch_operands = 0 : i64, tpu.core_type = #tpu.core_type<tc>, window_params = [{pipeline_mode = #tpu.pipeline_mode<synchronous>, transform_indices = @transform_0, window_bounds = array<i64: 16, 16>}, {pipeline_mode = #tpu.pipeline_mode<synchronous>, transform_indices = @transform_1, window_bounds = array<i64: 16, 16>}, {pipeline_mode = #tpu.pipeline_mode<synchronous>, transform_indices = @transform_2, window_bounds = array<i64: 4, 32>}, {pipeline_mode = #tpu.pipeline_mode<synchronous>, transform_indices = @transform_3, window_bounds = array<i64: 16, 32>}, {pipeline_mode = #tpu.pipeline_mode<synchronous>, transform_indices = @transform_4, window_bounds = array<i64: 1, 32>}, {pipeline_mode = #tpu.pipeline_mode<synchronous>, transform_indices = @transform_5, window_bounds = array<i64: 2, 4, 32, 32>}, {pipeline_mode = #tpu.pipeline_mode<synchronous>, transform_indices = @transform_6, window_bounds = array<i64: 2, 32, 64>}, {pipeline_mode = #tpu.pipeline_mode<synchronous>, transform_indices = @transform_7, window_bounds = array<i64: 2, 64, 32>}, {pipeline_mode = #tpu.pipeline_mode<synchronous>, transform_indices = @transform_8, window_bounds = array<i64: 2, 1, 64>}, {pipeline_mode = #tpu.pipeline_mode<synchronous>, transform_indices = @transform_9, window_bounds = array<i64: 2, 16, 32>}, {pipeline_mode = #tpu.pipeline_mode<synchronous>, transform_indices = @transform_10, window_bounds = array<i64: 16, 32>}]} {
    %c0 = arith.constant 0 : index
    %c0_0 = arith.constant 0 : index
    %0 = vector.load %arg1[%c0, %c0_0] : memref<16x16xf32, #tpu.memory_space<vmem>>, vector<16x16xf32>
    %c0_1 = arith.constant 0 : index
    %c0_2 = arith.constant 0 : index
    %1 = vector.load %arg4[%c0_1, %c0_2] : memref<16x32xf32, #tpu.memory_space<vmem>>, vector<16x32xf32>
    %cst = arith.constant dense<0.000000e+00> : vector<16x32xf32>
    %2 = tpu.matmul %0, %1, %cst {dimension_numbers = #tpu.dot_dimension_numbers<[1], [0], [0], [1], [0, 0, 1, 1], [], []>} : vector<16x16xf32>, vector<16x32xf32>, vector<16x32xf32> -> vector<16x32xf32>
    %c0_3 = arith.constant 0 : index
    %c0_4 = arith.constant 0 : index
    %3 = vector.load %arg5[%c0_3, %c0_4] : memref<1x32xf32, #tpu.memory_space<vmem>>, vector<1x32xf32>
    %4 = vector.broadcast %3 : vector<1x32xf32> to vector<16x32xf32>
    %5 = arith.addf %2, %4 : vector<16x32xf32>
    %c0_5 = arith.constant 0 : index
    %c0_6 = arith.constant 0 : index
    %6 = vector.load %arg2[%c0_5, %c0_6] : memref<16x16xf32, #tpu.memory_space<vmem>>, vector<16x16xf32>
    %c0_7 = arith.constant 0 : index
    %c0_8 = arith.constant 0 : index
    %c0_9 = arith.constant 0 : index
    %c0_10 = arith.constant 0 : index
    %7 = vector.load %arg6[%c0_7, %c0_8, %c0_9, %c0_10] : memref<2x4x32x32xf32, #tpu.memory_space<vmem>>, vector<1x1x32x32xf32>
    %8 = vector.shape_cast %7 : vector<1x1x32x32xf32> to vector<32x32xf32>
    %c0_11 = arith.constant 0 : index
    %c1 = arith.constant 1 : index
    %c0_12 = arith.constant 0 : index
    %c0_13 = arith.constant 0 : index
    %9 = vector.load %arg6[%c0_11, %c1, %c0_12, %c0_13] : memref<2x4x32x32xf32, #tpu.memory_space<vmem>>, vector<1x1x32x32xf32>
    %10 = vector.shape_cast %9 : vector<1x1x32x32xf32> to vector<32x32xf32>
    %c0_14 = arith.constant 0 : index
    %c2 = arith.constant 2 : index
    %c0_15 = arith.constant 0 : index
    %c0_16 = arith.constant 0 : index
    %11 = vector.load %arg6[%c0_14, %c2, %c0_15, %c0_16] : memref<2x4x32x32xf32, #tpu.memory_space<vmem>>, vector<1x1x32x32xf32>
    %12 = vector.shape_cast %11 : vector<1x1x32x32xf32> to vector<32x32xf32>
    %c0_17 = arith.constant 0 : index
    %c3 = arith.constant 3 : index
    %c0_18 = arith.constant 0 : index
    %c0_19 = arith.constant 0 : index
    %13 = vector.load %arg6[%c0_17, %c3, %c0_18, %c0_19] : memref<2x4x32x32xf32, #tpu.memory_space<vmem>>, vector<1x1x32x32xf32>
    %14 = vector.shape_cast %13 : vector<1x1x32x32xf32> to vector<32x32xf32>
    %c0_20 = arith.constant 0 : index
    %c0_21 = arith.constant 0 : index
    %c0_22 = arith.constant 0 : index
    %15 = vector.load %arg10[%c0_20, %c0_21, %c0_22] : memref<2x16x32xf32, #tpu.memory_space<vmem>>, vector<1x16x32xf32>
    %16 = vector.shape_cast %15 : vector<1x16x32xf32> to vector<16x32xf32>
    %17 = vector.extract_strided_slice %16 {offsets = [0, 0], sizes = [1, 32], strides = [1, 1]} : vector<16x32xf32> to vector<1x32xf32>
    %18 = vector.extract_strided_slice %16 {offsets = [1, 0], sizes = [1, 32], strides = [1, 1]} : vector<16x32xf32> to vector<1x32xf32>
    %19 = vector.extract_strided_slice %16 {offsets = [2, 0], sizes = [1, 32], strides = [1, 1]} : vector<16x32xf32> to vector<1x32xf32>
    %20 = vector.extract_strided_slice %16 {offsets = [3, 0], sizes = [1, 32], strides = [1, 1]} : vector<16x32xf32> to vector<1x32xf32>
    %21 = vector.extract_strided_slice %16 {offsets = [4, 0], sizes = [1, 32], strides = [1, 1]} : vector<16x32xf32> to vector<1x32xf32>
    %22 = vector.extract_strided_slice %16 {offsets = [5, 0], sizes = [1, 32], strides = [1, 1]} : vector<16x32xf32> to vector<1x32xf32>
    %23 = vector.extract_strided_slice %16 {offsets = [6, 0], sizes = [1, 32], strides = [1, 1]} : vector<16x32xf32> to vector<1x32xf32>
    %24 = vector.extract_strided_slice %16 {offsets = [7, 0], sizes = [1, 32], strides = [1, 1]} : vector<16x32xf32> to vector<1x32xf32>
    %25 = vector.extract_strided_slice %16 {offsets = [8, 0], sizes = [1, 32], strides = [1, 1]} : vector<16x32xf32> to vector<1x32xf32>
    %c0_23 = arith.constant 0 : index
    %c0_24 = arith.constant 0 : index
    %c0_25 = arith.constant 0 : index
    %26 = vector.load %arg9[%c0_23, %c0_24, %c0_25] : memref<2x1x64xf32, #tpu.memory_space<vmem>>, vector<1x1x64xf32>
    %27 = vector.shape_cast %26 : vector<1x1x64xf32> to vector<1x64xf32>
    %cst_26 = arith.constant dense<0.000000e+00> : vector<16x32xf32>
    %28 = tpu.matmul %5, %8, %cst_26 {dimension_numbers = #tpu.dot_dimension_numbers<[1], [0], [0], [1], [0, 0, 1, 1], [], []>} : vector<16x32xf32>, vector<32x32xf32>, vector<16x32xf32> -> vector<16x32xf32>
    %29 = vector.broadcast %17 : vector<1x32xf32> to vector<16x32xf32>
    %30 = arith.addf %28, %29 : vector<16x32xf32>
    %cst_27 = arith.constant dense<0.000000e+00> : vector<16x32xf32>
    %31 = tpu.matmul %5, %10, %cst_27 {dimension_numbers = #tpu.dot_dimension_numbers<[1], [0], [0], [1], [0, 0, 1, 1], [], []>} : vector<16x32xf32>, vector<32x32xf32>, vector<16x32xf32> -> vector<16x32xf32>
    %32 = vector.broadcast %18 : vector<1x32xf32> to vector<16x32xf32>
    %33 = arith.addf %31, %32 : vector<16x32xf32>
    %cst_28 = arith.constant dense<0.000000e+00> : vector<16x32xf32>
    %34 = tpu.matmul %5, %12, %cst_28 {dimension_numbers = #tpu.dot_dimension_numbers<[1], [0], [0], [1], [0, 0, 1, 1], [], []>} : vector<16x32xf32>, vector<32x32xf32>, vector<16x32xf32> -> vector<16x32xf32>
    %35 = vector.broadcast %19 : vector<1x32xf32> to vector<16x32xf32>
    %36 = arith.addf %34, %35 : vector<16x32xf32>
    %cst_29 = arith.constant 0.000000e+00 : f32
    %37 = vector.broadcast %cst_29 : f32 to vector<16x32xf32>
    %c0_30 = arith.constant 0 : index
    %c0_31 = arith.constant 0 : index
    %38 = vector.load %arg3[%c0_30, %c0_31] : memref<4x32xf32, #tpu.memory_space<vmem>>, vector<1x32xf32>
    %39 = vector.broadcast %38 : vector<1x32xf32> to vector<16x32xf32>
    %40 = arith.mulf %30, %39 : vector<16x32xf32>
    %cst_32 = arith.constant dense<0.000000e+00> : vector<16x16xf32>
    %41 = tpu.matmul %40, %33, %cst_32 {dimension_numbers = #tpu.dot_dimension_numbers<[1], [1], [0], [0], [0, 0, 1, 0], [], []>} : vector<16x32xf32>, vector<16x32xf32>, vector<16x16xf32> -> vector<16x16xf32>
    %42 = arith.addf %41, %6 : vector<16x16xf32>
    %cst_33 = arith.constant dense<0xFF800000> : vector<16xf32>
    %43 = vector.multi_reduction <maximumf>, %42, %cst_33 [1] : vector<16x16xf32> to vector<16xf32>
    %44 = vector.shape_cast %43 : vector<16xf32> to vector<16x1xf32>
    %45 = vector.broadcast %44 : vector<16x1xf32> to vector<16x16xf32>
    %46 = arith.subf %42, %45 : vector<16x16xf32>
    %47 = math.exp %46 : vector<16x16xf32>
    %cst_34 = arith.constant dense<0.000000e+00> : vector<16xf32>
    %48 = vector.multi_reduction <add>, %47, %cst_34 [1] : vector<16x16xf32> to vector<16xf32>
    %49 = vector.shape_cast %48 : vector<16xf32> to vector<16x1xf32>
    %50 = tpu.reciprocal %49 : vector<16x1xf32> -> vector<16x1xf32>
    %51 = vector.broadcast %50 : vector<16x1xf32> to vector<16x16xf32>
    %52 = arith.mulf %47, %51 : vector<16x16xf32>
    %cst_35 = arith.constant dense<0.000000e+00> : vector<16x32xf32>
    %53 = tpu.matmul %52, %36, %cst_35 {dimension_numbers = #tpu.dot_dimension_numbers<[1], [0], [0], [1], [0, 0, 1, 1], [], []>} : vector<16x16xf32>, vector<16x32xf32>, vector<16x32xf32> -> vector<16x32xf32>
    %54 = vector.broadcast %38 : vector<1x32xf32> to vector<16x32xf32>
    %55 = arith.mulf %53, %54 : vector<16x32xf32>
    %56 = arith.addf %37, %55 : vector<16x32xf32>
    %c1_36 = arith.constant 1 : index
    %c0_37 = arith.constant 0 : index
    %57 = vector.load %arg3[%c1_36, %c0_37] : memref<4x32xf32, #tpu.memory_space<vmem>>, vector<1x32xf32>
    %58 = vector.broadcast %57 : vector<1x32xf32> to vector<16x32xf32>
    %59 = arith.mulf %30, %58 : vector<16x32xf32>
    %cst_38 = arith.constant dense<0.000000e+00> : vector<16x16xf32>
    %60 = tpu.matmul %59, %33, %cst_38 {dimension_numbers = #tpu.dot_dimension_numbers<[1], [1], [0], [0], [0, 0, 1, 0], [], []>} : vector<16x32xf32>, vector<16x32xf32>, vector<16x16xf32> -> vector<16x16xf32>
    %61 = arith.addf %60, %6 : vector<16x16xf32>
    %cst_39 = arith.constant dense<0xFF800000> : vector<16xf32>
    %62 = vector.multi_reduction <maximumf>, %61, %cst_39 [1] : vector<16x16xf32> to vector<16xf32>
    %63 = vector.shape_cast %62 : vector<16xf32> to vector<16x1xf32>
    %64 = vector.broadcast %63 : vector<16x1xf32> to vector<16x16xf32>
    %65 = arith.subf %61, %64 : vector<16x16xf32>
    %66 = math.exp %65 : vector<16x16xf32>
    %cst_40 = arith.constant dense<0.000000e+00> : vector<16xf32>
    %67 = vector.multi_reduction <add>, %66, %cst_40 [1] : vector<16x16xf32> to vector<16xf32>
    %68 = vector.shape_cast %67 : vector<16xf32> to vector<16x1xf32>
    %69 = tpu.reciprocal %68 : vector<16x1xf32> -> vector<16x1xf32>
    %70 = vector.broadcast %69 : vector<16x1xf32> to vector<16x16xf32>
    %71 = arith.mulf %66, %70 : vector<16x16xf32>
    %cst_41 = arith.constant dense<0.000000e+00> : vector<16x32xf32>
    %72 = tpu.matmul %71, %36, %cst_41 {dimension_numbers = #tpu.dot_dimension_numbers<[1], [0], [0], [1], [0, 0, 1, 1], [], []>} : vector<16x16xf32>, vector<16x32xf32>, vector<16x32xf32> -> vector<16x32xf32>
    %73 = vector.broadcast %57 : vector<1x32xf32> to vector<16x32xf32>
    %74 = arith.mulf %72, %73 : vector<16x32xf32>
    %75 = arith.addf %56, %74 : vector<16x32xf32>
    %c2_42 = arith.constant 2 : index
    %c0_43 = arith.constant 0 : index
    %76 = vector.load %arg3[%c2_42, %c0_43] : memref<4x32xf32, #tpu.memory_space<vmem>>, vector<1x32xf32>
    %77 = vector.broadcast %76 : vector<1x32xf32> to vector<16x32xf32>
    %78 = arith.mulf %30, %77 : vector<16x32xf32>
    %cst_44 = arith.constant dense<0.000000e+00> : vector<16x16xf32>
    %79 = tpu.matmul %78, %33, %cst_44 {dimension_numbers = #tpu.dot_dimension_numbers<[1], [1], [0], [0], [0, 0, 1, 0], [], []>} : vector<16x32xf32>, vector<16x32xf32>, vector<16x16xf32> -> vector<16x16xf32>
    %80 = arith.addf %79, %6 : vector<16x16xf32>
    %cst_45 = arith.constant dense<0xFF800000> : vector<16xf32>
    %81 = vector.multi_reduction <maximumf>, %80, %cst_45 [1] : vector<16x16xf32> to vector<16xf32>
    %82 = vector.shape_cast %81 : vector<16xf32> to vector<16x1xf32>
    %83 = vector.broadcast %82 : vector<16x1xf32> to vector<16x16xf32>
    %84 = arith.subf %80, %83 : vector<16x16xf32>
    %85 = math.exp %84 : vector<16x16xf32>
    %cst_46 = arith.constant dense<0.000000e+00> : vector<16xf32>
    %86 = vector.multi_reduction <add>, %85, %cst_46 [1] : vector<16x16xf32> to vector<16xf32>
    %87 = vector.shape_cast %86 : vector<16xf32> to vector<16x1xf32>
    %88 = tpu.reciprocal %87 : vector<16x1xf32> -> vector<16x1xf32>
    %89 = vector.broadcast %88 : vector<16x1xf32> to vector<16x16xf32>
    %90 = arith.mulf %85, %89 : vector<16x16xf32>
    %cst_47 = arith.constant dense<0.000000e+00> : vector<16x32xf32>
    %91 = tpu.matmul %90, %36, %cst_47 {dimension_numbers = #tpu.dot_dimension_numbers<[1], [0], [0], [1], [0, 0, 1, 1], [], []>} : vector<16x16xf32>, vector<16x32xf32>, vector<16x32xf32> -> vector<16x32xf32>
    %92 = vector.broadcast %76 : vector<1x32xf32> to vector<16x32xf32>
    %93 = arith.mulf %91, %92 : vector<16x32xf32>
    %94 = arith.addf %75, %93 : vector<16x32xf32>
    %c3_48 = arith.constant 3 : index
    %c0_49 = arith.constant 0 : index
    %95 = vector.load %arg3[%c3_48, %c0_49] : memref<4x32xf32, #tpu.memory_space<vmem>>, vector<1x32xf32>
    %96 = vector.broadcast %95 : vector<1x32xf32> to vector<16x32xf32>
    %97 = arith.mulf %30, %96 : vector<16x32xf32>
    %cst_50 = arith.constant dense<0.000000e+00> : vector<16x16xf32>
    %98 = tpu.matmul %97, %33, %cst_50 {dimension_numbers = #tpu.dot_dimension_numbers<[1], [1], [0], [0], [0, 0, 1, 0], [], []>} : vector<16x32xf32>, vector<16x32xf32>, vector<16x16xf32> -> vector<16x16xf32>
    %99 = arith.addf %98, %6 : vector<16x16xf32>
    %cst_51 = arith.constant dense<0xFF800000> : vector<16xf32>
    %100 = vector.multi_reduction <maximumf>, %99, %cst_51 [1] : vector<16x16xf32> to vector<16xf32>
    %101 = vector.shape_cast %100 : vector<16xf32> to vector<16x1xf32>
    %102 = vector.broadcast %101 : vector<16x1xf32> to vector<16x16xf32>
    %103 = arith.subf %99, %102 : vector<16x16xf32>
    %104 = math.exp %103 : vector<16x16xf32>
    %cst_52 = arith.constant dense<0.000000e+00> : vector<16xf32>
    %105 = vector.multi_reduction <add>, %104, %cst_52 [1] : vector<16x16xf32> to vector<16xf32>
    %106 = vector.shape_cast %105 : vector<16xf32> to vector<16x1xf32>
    %107 = tpu.reciprocal %106 : vector<16x1xf32> -> vector<16x1xf32>
    %108 = vector.broadcast %107 : vector<16x1xf32> to vector<16x16xf32>
    %109 = arith.mulf %104, %108 : vector<16x16xf32>
    %cst_53 = arith.constant dense<0.000000e+00> : vector<16x32xf32>
    %110 = tpu.matmul %109, %36, %cst_53 {dimension_numbers = #tpu.dot_dimension_numbers<[1], [0], [0], [1], [0, 0, 1, 1], [], []>} : vector<16x16xf32>, vector<16x32xf32>, vector<16x32xf32> -> vector<16x32xf32>
    %111 = vector.broadcast %95 : vector<1x32xf32> to vector<16x32xf32>
    %112 = arith.mulf %110, %111 : vector<16x32xf32>
    %113 = arith.addf %94, %112 : vector<16x32xf32>
    %cst_54 = arith.constant dense<0.000000e+00> : vector<16x32xf32>
    %114 = tpu.matmul %113, %14, %cst_54 {dimension_numbers = #tpu.dot_dimension_numbers<[1], [0], [0], [1], [0, 0, 1, 1], [], []>} : vector<16x32xf32>, vector<32x32xf32>, vector<16x32xf32> -> vector<16x32xf32>
    %115 = vector.broadcast %20 : vector<1x32xf32> to vector<16x32xf32>
    %116 = arith.addf %114, %115 : vector<16x32xf32>
    %117 = arith.addf %5, %116 : vector<16x32xf32>
    %cst_55 = arith.constant dense<0.000000e+00> : vector<16xf32>
    %118 = vector.multi_reduction <add>, %117, %cst_55 [1] : vector<16x32xf32> to vector<16xf32>
    %119 = vector.shape_cast %118 : vector<16xf32> to vector<16x1xf32>
    %cst_56 = arith.constant 3.200000e+01 : f32
    %120 = vector.broadcast %cst_56 : f32 to vector<16x1xf32>
    %121 = arith.divf %119, %120 : vector<16x1xf32>
    %122 = vector.broadcast %121 : vector<16x1xf32> to vector<16x32xf32>
    %123 = arith.subf %117, %122 : vector<16x32xf32>
    %124 = arith.mulf %123, %123 : vector<16x32xf32>
    %cst_57 = arith.constant dense<0.000000e+00> : vector<16xf32>
    %125 = vector.multi_reduction <add>, %124, %cst_57 [1] : vector<16x32xf32> to vector<16xf32>
    %126 = vector.shape_cast %125 : vector<16xf32> to vector<16x1xf32>
    %cst_58 = arith.constant 3.200000e+01 : f32
    %127 = vector.broadcast %cst_58 : f32 to vector<16x1xf32>
    %128 = arith.divf %126, %127 : vector<16x1xf32>
    %129 = vector.broadcast %121 : vector<16x1xf32> to vector<16x32xf32>
    %130 = arith.subf %117, %129 : vector<16x32xf32>
    %cst_59 = arith.constant 9.99999974E-6 : f32
    %131 = vector.broadcast %cst_59 : f32 to vector<16x1xf32>
    %132 = arith.addf %128, %131 : vector<16x1xf32>
    %133 = math.rsqrt %132 : vector<16x1xf32>
    %134 = vector.broadcast %133 : vector<16x1xf32> to vector<16x32xf32>
    %135 = arith.mulf %130, %134 : vector<16x32xf32>
    %136 = vector.broadcast %22 : vector<1x32xf32> to vector<16x32xf32>
    %137 = arith.mulf %135, %136 : vector<16x32xf32>
    %138 = vector.broadcast %23 : vector<1x32xf32> to vector<16x32xf32>
    %139 = arith.addf %137, %138 : vector<16x32xf32>
    %c0_60 = arith.constant 0 : index
    %c0_61 = arith.constant 0 : index
    %c0_62 = arith.constant 0 : index
    %140 = vector.load %arg7[%c0_60, %c0_61, %c0_62] : memref<2x32x64xf32, #tpu.memory_space<vmem>>, vector<1x32x64xf32>
    %141 = vector.shape_cast %140 : vector<1x32x64xf32> to vector<32x64xf32>
    %cst_63 = arith.constant dense<0.000000e+00> : vector<16x64xf32>
    %142 = tpu.matmul %139, %141, %cst_63 {dimension_numbers = #tpu.dot_dimension_numbers<[1], [0], [0], [1], [0, 0, 1, 1], [], []>} : vector<16x32xf32>, vector<32x64xf32>, vector<16x64xf32> -> vector<16x64xf32>
    %143 = vector.broadcast %27 : vector<1x64xf32> to vector<16x64xf32>
    %144 = arith.addf %142, %143 : vector<16x64xf32>
    %cst_64 = arith.constant 0.000000e+00 : f32
    %145 = vector.broadcast %cst_64 : f32 to vector<16x64xf32>
    %146 = arith.maximumf %144, %145 : vector<16x64xf32>
    %c0_65 = arith.constant 0 : index
    %c0_66 = arith.constant 0 : index
    %c0_67 = arith.constant 0 : index
    %147 = vector.load %arg8[%c0_65, %c0_66, %c0_67] : memref<2x64x32xf32, #tpu.memory_space<vmem>>, vector<1x64x32xf32>
    %148 = vector.shape_cast %147 : vector<1x64x32xf32> to vector<64x32xf32>
    %cst_68 = arith.constant dense<0.000000e+00> : vector<16x32xf32>
    %149 = tpu.matmul %146, %148, %cst_68 {dimension_numbers = #tpu.dot_dimension_numbers<[1], [0], [0], [1], [0, 0, 1, 1], [], []>} : vector<16x64xf32>, vector<64x32xf32>, vector<16x32xf32> -> vector<16x32xf32>
    %150 = vector.broadcast %21 : vector<1x32xf32> to vector<16x32xf32>
    %151 = arith.addf %149, %150 : vector<16x32xf32>
    %152 = arith.addf %139, %151 : vector<16x32xf32>
    %cst_69 = arith.constant dense<0.000000e+00> : vector<16xf32>
    %153 = vector.multi_reduction <add>, %152, %cst_69 [1] : vector<16x32xf32> to vector<16xf32>
    %154 = vector.shape_cast %153 : vector<16xf32> to vector<16x1xf32>
    %cst_70 = arith.constant 3.200000e+01 : f32
    %155 = vector.broadcast %cst_70 : f32 to vector<16x1xf32>
    %156 = arith.divf %154, %155 : vector<16x1xf32>
    %157 = vector.broadcast %156 : vector<16x1xf32> to vector<16x32xf32>
    %158 = arith.subf %152, %157 : vector<16x32xf32>
    %159 = arith.mulf %158, %158 : vector<16x32xf32>
    %cst_71 = arith.constant dense<0.000000e+00> : vector<16xf32>
    %160 = vector.multi_reduction <add>, %159, %cst_71 [1] : vector<16x32xf32> to vector<16xf32>
    %161 = vector.shape_cast %160 : vector<16xf32> to vector<16x1xf32>
    %cst_72 = arith.constant 3.200000e+01 : f32
    %162 = vector.broadcast %cst_72 : f32 to vector<16x1xf32>
    %163 = arith.divf %161, %162 : vector<16x1xf32>
    %164 = vector.broadcast %156 : vector<16x1xf32> to vector<16x32xf32>
    %165 = arith.subf %152, %164 : vector<16x32xf32>
    %cst_73 = arith.constant 9.99999974E-6 : f32
    %166 = vector.broadcast %cst_73 : f32 to vector<16x1xf32>
    %167 = arith.addf %163, %166 : vector<16x1xf32>
    %168 = math.rsqrt %167 : vector<16x1xf32>
    %169 = vector.broadcast %168 : vector<16x1xf32> to vector<16x32xf32>
    %170 = arith.mulf %165, %169 : vector<16x32xf32>
    %171 = vector.broadcast %24 : vector<1x32xf32> to vector<16x32xf32>
    %172 = arith.mulf %170, %171 : vector<16x32xf32>
    %173 = vector.broadcast %25 : vector<1x32xf32> to vector<16x32xf32>
    %174 = arith.addf %172, %173 : vector<16x32xf32>
    %c1_74 = arith.constant 1 : index
    %c0_75 = arith.constant 0 : index
    %c0_76 = arith.constant 0 : index
    %c0_77 = arith.constant 0 : index
    %175 = vector.load %arg6[%c1_74, %c0_75, %c0_76, %c0_77] : memref<2x4x32x32xf32, #tpu.memory_space<vmem>>, vector<1x1x32x32xf32>
    %176 = vector.shape_cast %175 : vector<1x1x32x32xf32> to vector<32x32xf32>
    %c1_78 = arith.constant 1 : index
    %c1_79 = arith.constant 1 : index
    %c0_80 = arith.constant 0 : index
    %c0_81 = arith.constant 0 : index
    %177 = vector.load %arg6[%c1_78, %c1_79, %c0_80, %c0_81] : memref<2x4x32x32xf32, #tpu.memory_space<vmem>>, vector<1x1x32x32xf32>
    %178 = vector.shape_cast %177 : vector<1x1x32x32xf32> to vector<32x32xf32>
    %c1_82 = arith.constant 1 : index
    %c2_83 = arith.constant 2 : index
    %c0_84 = arith.constant 0 : index
    %c0_85 = arith.constant 0 : index
    %179 = vector.load %arg6[%c1_82, %c2_83, %c0_84, %c0_85] : memref<2x4x32x32xf32, #tpu.memory_space<vmem>>, vector<1x1x32x32xf32>
    %180 = vector.shape_cast %179 : vector<1x1x32x32xf32> to vector<32x32xf32>
    %c1_86 = arith.constant 1 : index
    %c3_87 = arith.constant 3 : index
    %c0_88 = arith.constant 0 : index
    %c0_89 = arith.constant 0 : index
    %181 = vector.load %arg6[%c1_86, %c3_87, %c0_88, %c0_89] : memref<2x4x32x32xf32, #tpu.memory_space<vmem>>, vector<1x1x32x32xf32>
    %182 = vector.shape_cast %181 : vector<1x1x32x32xf32> to vector<32x32xf32>
    %c1_90 = arith.constant 1 : index
    %c0_91 = arith.constant 0 : index
    %c0_92 = arith.constant 0 : index
    %183 = vector.load %arg10[%c1_90, %c0_91, %c0_92] : memref<2x16x32xf32, #tpu.memory_space<vmem>>, vector<1x16x32xf32>
    %184 = vector.shape_cast %183 : vector<1x16x32xf32> to vector<16x32xf32>
    %185 = vector.extract_strided_slice %184 {offsets = [0, 0], sizes = [1, 32], strides = [1, 1]} : vector<16x32xf32> to vector<1x32xf32>
    %186 = vector.extract_strided_slice %184 {offsets = [1, 0], sizes = [1, 32], strides = [1, 1]} : vector<16x32xf32> to vector<1x32xf32>
    %187 = vector.extract_strided_slice %184 {offsets = [2, 0], sizes = [1, 32], strides = [1, 1]} : vector<16x32xf32> to vector<1x32xf32>
    %188 = vector.extract_strided_slice %184 {offsets = [3, 0], sizes = [1, 32], strides = [1, 1]} : vector<16x32xf32> to vector<1x32xf32>
    %189 = vector.extract_strided_slice %184 {offsets = [4, 0], sizes = [1, 32], strides = [1, 1]} : vector<16x32xf32> to vector<1x32xf32>
    %190 = vector.extract_strided_slice %184 {offsets = [5, 0], sizes = [1, 32], strides = [1, 1]} : vector<16x32xf32> to vector<1x32xf32>
    %191 = vector.extract_strided_slice %184 {offsets = [6, 0], sizes = [1, 32], strides = [1, 1]} : vector<16x32xf32> to vector<1x32xf32>
    %192 = vector.extract_strided_slice %184 {offsets = [7, 0], sizes = [1, 32], strides = [1, 1]} : vector<16x32xf32> to vector<1x32xf32>
    %193 = vector.extract_strided_slice %184 {offsets = [8, 0], sizes = [1, 32], strides = [1, 1]} : vector<16x32xf32> to vector<1x32xf32>
    %c1_93 = arith.constant 1 : index
    %c0_94 = arith.constant 0 : index
    %c0_95 = arith.constant 0 : index
    %194 = vector.load %arg9[%c1_93, %c0_94, %c0_95] : memref<2x1x64xf32, #tpu.memory_space<vmem>>, vector<1x1x64xf32>
    %195 = vector.shape_cast %194 : vector<1x1x64xf32> to vector<1x64xf32>
    %cst_96 = arith.constant dense<0.000000e+00> : vector<16x32xf32>
    %196 = tpu.matmul %174, %176, %cst_96 {dimension_numbers = #tpu.dot_dimension_numbers<[1], [0], [0], [1], [0, 0, 1, 1], [], []>} : vector<16x32xf32>, vector<32x32xf32>, vector<16x32xf32> -> vector<16x32xf32>
    %197 = vector.broadcast %185 : vector<1x32xf32> to vector<16x32xf32>
    %198 = arith.addf %196, %197 : vector<16x32xf32>
    %cst_97 = arith.constant dense<0.000000e+00> : vector<16x32xf32>
    %199 = tpu.matmul %174, %178, %cst_97 {dimension_numbers = #tpu.dot_dimension_numbers<[1], [0], [0], [1], [0, 0, 1, 1], [], []>} : vector<16x32xf32>, vector<32x32xf32>, vector<16x32xf32> -> vector<16x32xf32>
    %200 = vector.broadcast %186 : vector<1x32xf32> to vector<16x32xf32>
    %201 = arith.addf %199, %200 : vector<16x32xf32>
    %cst_98 = arith.constant dense<0.000000e+00> : vector<16x32xf32>
    %202 = tpu.matmul %174, %180, %cst_98 {dimension_numbers = #tpu.dot_dimension_numbers<[1], [0], [0], [1], [0, 0, 1, 1], [], []>} : vector<16x32xf32>, vector<32x32xf32>, vector<16x32xf32> -> vector<16x32xf32>
    %203 = vector.broadcast %187 : vector<1x32xf32> to vector<16x32xf32>
    %204 = arith.addf %202, %203 : vector<16x32xf32>
    %cst_99 = arith.constant 0.000000e+00 : f32
    %205 = vector.broadcast %cst_99 : f32 to vector<16x32xf32>
    %c0_100 = arith.constant 0 : index
    %c0_101 = arith.constant 0 : index
    %206 = vector.load %arg3[%c0_100, %c0_101] : memref<4x32xf32, #tpu.memory_space<vmem>>, vector<1x32xf32>
    %207 = vector.broadcast %206 : vector<1x32xf32> to vector<16x32xf32>
    %208 = arith.mulf %198, %207 : vector<16x32xf32>
    %cst_102 = arith.constant dense<0.000000e+00> : vector<16x16xf32>
    %209 = tpu.matmul %208, %201, %cst_102 {dimension_numbers = #tpu.dot_dimension_numbers<[1], [1], [0], [0], [0, 0, 1, 0], [], []>} : vector<16x32xf32>, vector<16x32xf32>, vector<16x16xf32> -> vector<16x16xf32>
    %210 = arith.addf %209, %6 : vector<16x16xf32>
    %cst_103 = arith.constant dense<0xFF800000> : vector<16xf32>
    %211 = vector.multi_reduction <maximumf>, %210, %cst_103 [1] : vector<16x16xf32> to vector<16xf32>
    %212 = vector.shape_cast %211 : vector<16xf32> to vector<16x1xf32>
    %213 = vector.broadcast %212 : vector<16x1xf32> to vector<16x16xf32>
    %214 = arith.subf %210, %213 : vector<16x16xf32>
    %215 = math.exp %214 : vector<16x16xf32>
    %cst_104 = arith.constant dense<0.000000e+00> : vector<16xf32>
    %216 = vector.multi_reduction <add>, %215, %cst_104 [1] : vector<16x16xf32> to vector<16xf32>
    %217 = vector.shape_cast %216 : vector<16xf32> to vector<16x1xf32>
    %218 = tpu.reciprocal %217 : vector<16x1xf32> -> vector<16x1xf32>
    %219 = vector.broadcast %218 : vector<16x1xf32> to vector<16x16xf32>
    %220 = arith.mulf %215, %219 : vector<16x16xf32>
    %cst_105 = arith.constant dense<0.000000e+00> : vector<16x32xf32>
    %221 = tpu.matmul %220, %204, %cst_105 {dimension_numbers = #tpu.dot_dimension_numbers<[1], [0], [0], [1], [0, 0, 1, 1], [], []>} : vector<16x16xf32>, vector<16x32xf32>, vector<16x32xf32> -> vector<16x32xf32>
    %222 = vector.broadcast %206 : vector<1x32xf32> to vector<16x32xf32>
    %223 = arith.mulf %221, %222 : vector<16x32xf32>
    %224 = arith.addf %205, %223 : vector<16x32xf32>
    %c1_106 = arith.constant 1 : index
    %c0_107 = arith.constant 0 : index
    %225 = vector.load %arg3[%c1_106, %c0_107] : memref<4x32xf32, #tpu.memory_space<vmem>>, vector<1x32xf32>
    %226 = vector.broadcast %225 : vector<1x32xf32> to vector<16x32xf32>
    %227 = arith.mulf %198, %226 : vector<16x32xf32>
    %cst_108 = arith.constant dense<0.000000e+00> : vector<16x16xf32>
    %228 = tpu.matmul %227, %201, %cst_108 {dimension_numbers = #tpu.dot_dimension_numbers<[1], [1], [0], [0], [0, 0, 1, 0], [], []>} : vector<16x32xf32>, vector<16x32xf32>, vector<16x16xf32> -> vector<16x16xf32>
    %229 = arith.addf %228, %6 : vector<16x16xf32>
    %cst_109 = arith.constant dense<0xFF800000> : vector<16xf32>
    %230 = vector.multi_reduction <maximumf>, %229, %cst_109 [1] : vector<16x16xf32> to vector<16xf32>
    %231 = vector.shape_cast %230 : vector<16xf32> to vector<16x1xf32>
    %232 = vector.broadcast %231 : vector<16x1xf32> to vector<16x16xf32>
    %233 = arith.subf %229, %232 : vector<16x16xf32>
    %234 = math.exp %233 : vector<16x16xf32>
    %cst_110 = arith.constant dense<0.000000e+00> : vector<16xf32>
    %235 = vector.multi_reduction <add>, %234, %cst_110 [1] : vector<16x16xf32> to vector<16xf32>
    %236 = vector.shape_cast %235 : vector<16xf32> to vector<16x1xf32>
    %237 = tpu.reciprocal %236 : vector<16x1xf32> -> vector<16x1xf32>
    %238 = vector.broadcast %237 : vector<16x1xf32> to vector<16x16xf32>
    %239 = arith.mulf %234, %238 : vector<16x16xf32>
    %cst_111 = arith.constant dense<0.000000e+00> : vector<16x32xf32>
    %240 = tpu.matmul %239, %204, %cst_111 {dimension_numbers = #tpu.dot_dimension_numbers<[1], [0], [0], [1], [0, 0, 1, 1], [], []>} : vector<16x16xf32>, vector<16x32xf32>, vector<16x32xf32> -> vector<16x32xf32>
    %241 = vector.broadcast %225 : vector<1x32xf32> to vector<16x32xf32>
    %242 = arith.mulf %240, %241 : vector<16x32xf32>
    %243 = arith.addf %224, %242 : vector<16x32xf32>
    %c2_112 = arith.constant 2 : index
    %c0_113 = arith.constant 0 : index
    %244 = vector.load %arg3[%c2_112, %c0_113] : memref<4x32xf32, #tpu.memory_space<vmem>>, vector<1x32xf32>
    %245 = vector.broadcast %244 : vector<1x32xf32> to vector<16x32xf32>
    %246 = arith.mulf %198, %245 : vector<16x32xf32>
    %cst_114 = arith.constant dense<0.000000e+00> : vector<16x16xf32>
    %247 = tpu.matmul %246, %201, %cst_114 {dimension_numbers = #tpu.dot_dimension_numbers<[1], [1], [0], [0], [0, 0, 1, 0], [], []>} : vector<16x32xf32>, vector<16x32xf32>, vector<16x16xf32> -> vector<16x16xf32>
    %248 = arith.addf %247, %6 : vector<16x16xf32>
    %cst_115 = arith.constant dense<0xFF800000> : vector<16xf32>
    %249 = vector.multi_reduction <maximumf>, %248, %cst_115 [1] : vector<16x16xf32> to vector<16xf32>
    %250 = vector.shape_cast %249 : vector<16xf32> to vector<16x1xf32>
    %251 = vector.broadcast %250 : vector<16x1xf32> to vector<16x16xf32>
    %252 = arith.subf %248, %251 : vector<16x16xf32>
    %253 = math.exp %252 : vector<16x16xf32>
    %cst_116 = arith.constant dense<0.000000e+00> : vector<16xf32>
    %254 = vector.multi_reduction <add>, %253, %cst_116 [1] : vector<16x16xf32> to vector<16xf32>
    %255 = vector.shape_cast %254 : vector<16xf32> to vector<16x1xf32>
    %256 = tpu.reciprocal %255 : vector<16x1xf32> -> vector<16x1xf32>
    %257 = vector.broadcast %256 : vector<16x1xf32> to vector<16x16xf32>
    %258 = arith.mulf %253, %257 : vector<16x16xf32>
    %cst_117 = arith.constant dense<0.000000e+00> : vector<16x32xf32>
    %259 = tpu.matmul %258, %204, %cst_117 {dimension_numbers = #tpu.dot_dimension_numbers<[1], [0], [0], [1], [0, 0, 1, 1], [], []>} : vector<16x16xf32>, vector<16x32xf32>, vector<16x32xf32> -> vector<16x32xf32>
    %260 = vector.broadcast %244 : vector<1x32xf32> to vector<16x32xf32>
    %261 = arith.mulf %259, %260 : vector<16x32xf32>
    %262 = arith.addf %243, %261 : vector<16x32xf32>
    %c3_118 = arith.constant 3 : index
    %c0_119 = arith.constant 0 : index
    %263 = vector.load %arg3[%c3_118, %c0_119] : memref<4x32xf32, #tpu.memory_space<vmem>>, vector<1x32xf32>
    %264 = vector.broadcast %263 : vector<1x32xf32> to vector<16x32xf32>
    %265 = arith.mulf %198, %264 : vector<16x32xf32>
    %cst_120 = arith.constant dense<0.000000e+00> : vector<16x16xf32>
    %266 = tpu.matmul %265, %201, %cst_120 {dimension_numbers = #tpu.dot_dimension_numbers<[1], [1], [0], [0], [0, 0, 1, 0], [], []>} : vector<16x32xf32>, vector<16x32xf32>, vector<16x16xf32> -> vector<16x16xf32>
    %267 = arith.addf %266, %6 : vector<16x16xf32>
    %cst_121 = arith.constant dense<0xFF800000> : vector<16xf32>
    %268 = vector.multi_reduction <maximumf>, %267, %cst_121 [1] : vector<16x16xf32> to vector<16xf32>
    %269 = vector.shape_cast %268 : vector<16xf32> to vector<16x1xf32>
    %270 = vector.broadcast %269 : vector<16x1xf32> to vector<16x16xf32>
    %271 = arith.subf %267, %270 : vector<16x16xf32>
    %272 = math.exp %271 : vector<16x16xf32>
    %cst_122 = arith.constant dense<0.000000e+00> : vector<16xf32>
    %273 = vector.multi_reduction <add>, %272, %cst_122 [1] : vector<16x16xf32> to vector<16xf32>
    %274 = vector.shape_cast %273 : vector<16xf32> to vector<16x1xf32>
    %275 = tpu.reciprocal %274 : vector<16x1xf32> -> vector<16x1xf32>
    %276 = vector.broadcast %275 : vector<16x1xf32> to vector<16x16xf32>
    %277 = arith.mulf %272, %276 : vector<16x16xf32>
    %cst_123 = arith.constant dense<0.000000e+00> : vector<16x32xf32>
    %278 = tpu.matmul %277, %204, %cst_123 {dimension_numbers = #tpu.dot_dimension_numbers<[1], [0], [0], [1], [0, 0, 1, 1], [], []>} : vector<16x16xf32>, vector<16x32xf32>, vector<16x32xf32> -> vector<16x32xf32>
    %279 = vector.broadcast %263 : vector<1x32xf32> to vector<16x32xf32>
    %280 = arith.mulf %278, %279 : vector<16x32xf32>
    %281 = arith.addf %262, %280 : vector<16x32xf32>
    %cst_124 = arith.constant dense<0.000000e+00> : vector<16x32xf32>
    %282 = tpu.matmul %281, %182, %cst_124 {dimension_numbers = #tpu.dot_dimension_numbers<[1], [0], [0], [1], [0, 0, 1, 1], [], []>} : vector<16x32xf32>, vector<32x32xf32>, vector<16x32xf32> -> vector<16x32xf32>
    %283 = vector.broadcast %188 : vector<1x32xf32> to vector<16x32xf32>
    %284 = arith.addf %282, %283 : vector<16x32xf32>
    %285 = arith.addf %174, %284 : vector<16x32xf32>
    %cst_125 = arith.constant dense<0.000000e+00> : vector<16xf32>
    %286 = vector.multi_reduction <add>, %285, %cst_125 [1] : vector<16x32xf32> to vector<16xf32>
    %287 = vector.shape_cast %286 : vector<16xf32> to vector<16x1xf32>
    %cst_126 = arith.constant 3.200000e+01 : f32
    %288 = vector.broadcast %cst_126 : f32 to vector<16x1xf32>
    %289 = arith.divf %287, %288 : vector<16x1xf32>
    %290 = vector.broadcast %289 : vector<16x1xf32> to vector<16x32xf32>
    %291 = arith.subf %285, %290 : vector<16x32xf32>
    %292 = arith.mulf %291, %291 : vector<16x32xf32>
    %cst_127 = arith.constant dense<0.000000e+00> : vector<16xf32>
    %293 = vector.multi_reduction <add>, %292, %cst_127 [1] : vector<16x32xf32> to vector<16xf32>
    %294 = vector.shape_cast %293 : vector<16xf32> to vector<16x1xf32>
    %cst_128 = arith.constant 3.200000e+01 : f32
    %295 = vector.broadcast %cst_128 : f32 to vector<16x1xf32>
    %296 = arith.divf %294, %295 : vector<16x1xf32>
    %297 = vector.broadcast %289 : vector<16x1xf32> to vector<16x32xf32>
    %298 = arith.subf %285, %297 : vector<16x32xf32>
    %cst_129 = arith.constant 9.99999974E-6 : f32
    %299 = vector.broadcast %cst_129 : f32 to vector<16x1xf32>
    %300 = arith.addf %296, %299 : vector<16x1xf32>
    %301 = math.rsqrt %300 : vector<16x1xf32>
    %302 = vector.broadcast %301 : vector<16x1xf32> to vector<16x32xf32>
    %303 = arith.mulf %298, %302 : vector<16x32xf32>
    %304 = vector.broadcast %190 : vector<1x32xf32> to vector<16x32xf32>
    %305 = arith.mulf %303, %304 : vector<16x32xf32>
    %306 = vector.broadcast %191 : vector<1x32xf32> to vector<16x32xf32>
    %307 = arith.addf %305, %306 : vector<16x32xf32>
    %c1_130 = arith.constant 1 : index
    %c0_131 = arith.constant 0 : index
    %c0_132 = arith.constant 0 : index
    %308 = vector.load %arg7[%c1_130, %c0_131, %c0_132] : memref<2x32x64xf32, #tpu.memory_space<vmem>>, vector<1x32x64xf32>
    %309 = vector.shape_cast %308 : vector<1x32x64xf32> to vector<32x64xf32>
    %cst_133 = arith.constant dense<0.000000e+00> : vector<16x64xf32>
    %310 = tpu.matmul %307, %309, %cst_133 {dimension_numbers = #tpu.dot_dimension_numbers<[1], [0], [0], [1], [0, 0, 1, 1], [], []>} : vector<16x32xf32>, vector<32x64xf32>, vector<16x64xf32> -> vector<16x64xf32>
    %311 = vector.broadcast %195 : vector<1x64xf32> to vector<16x64xf32>
    %312 = arith.addf %310, %311 : vector<16x64xf32>
    %cst_134 = arith.constant 0.000000e+00 : f32
    %313 = vector.broadcast %cst_134 : f32 to vector<16x64xf32>
    %314 = arith.maximumf %312, %313 : vector<16x64xf32>
    %c1_135 = arith.constant 1 : index
    %c0_136 = arith.constant 0 : index
    %c0_137 = arith.constant 0 : index
    %315 = vector.load %arg8[%c1_135, %c0_136, %c0_137] : memref<2x64x32xf32, #tpu.memory_space<vmem>>, vector<1x64x32xf32>
    %316 = vector.shape_cast %315 : vector<1x64x32xf32> to vector<64x32xf32>
    %cst_138 = arith.constant dense<0.000000e+00> : vector<16x32xf32>
    %317 = tpu.matmul %314, %316, %cst_138 {dimension_numbers = #tpu.dot_dimension_numbers<[1], [0], [0], [1], [0, 0, 1, 1], [], []>} : vector<16x64xf32>, vector<64x32xf32>, vector<16x32xf32> -> vector<16x32xf32>
    %318 = vector.broadcast %189 : vector<1x32xf32> to vector<16x32xf32>
    %319 = arith.addf %317, %318 : vector<16x32xf32>
    %320 = arith.addf %307, %319 : vector<16x32xf32>
    %cst_139 = arith.constant dense<0.000000e+00> : vector<16xf32>
    %321 = vector.multi_reduction <add>, %320, %cst_139 [1] : vector<16x32xf32> to vector<16xf32>
    %322 = vector.shape_cast %321 : vector<16xf32> to vector<16x1xf32>
    %cst_140 = arith.constant 3.200000e+01 : f32
    %323 = vector.broadcast %cst_140 : f32 to vector<16x1xf32>
    %324 = arith.divf %322, %323 : vector<16x1xf32>
    %325 = vector.broadcast %324 : vector<16x1xf32> to vector<16x32xf32>
    %326 = arith.subf %320, %325 : vector<16x32xf32>
    %327 = arith.mulf %326, %326 : vector<16x32xf32>
    %cst_141 = arith.constant dense<0.000000e+00> : vector<16xf32>
    %328 = vector.multi_reduction <add>, %327, %cst_141 [1] : vector<16x32xf32> to vector<16xf32>
    %329 = vector.shape_cast %328 : vector<16xf32> to vector<16x1xf32>
    %cst_142 = arith.constant 3.200000e+01 : f32
    %330 = vector.broadcast %cst_142 : f32 to vector<16x1xf32>
    %331 = arith.divf %329, %330 : vector<16x1xf32>
    %332 = vector.broadcast %324 : vector<16x1xf32> to vector<16x32xf32>
    %333 = arith.subf %320, %332 : vector<16x32xf32>
    %cst_143 = arith.constant 9.99999974E-6 : f32
    %334 = vector.broadcast %cst_143 : f32 to vector<16x1xf32>
    %335 = arith.addf %331, %334 : vector<16x1xf32>
    %336 = math.rsqrt %335 : vector<16x1xf32>
    %337 = vector.broadcast %336 : vector<16x1xf32> to vector<16x32xf32>
    %338 = arith.mulf %333, %337 : vector<16x32xf32>
    %339 = vector.broadcast %192 : vector<1x32xf32> to vector<16x32xf32>
    %340 = arith.mulf %338, %339 : vector<16x32xf32>
    %341 = vector.broadcast %193 : vector<1x32xf32> to vector<16x32xf32>
    %342 = arith.addf %340, %341 : vector<16x32xf32>
    %c0_144 = arith.constant 0 : index
    %c0_145 = arith.constant 0 : index
    %343 = vector.load %arg11[%c0_144, %c0_145] : memref<16x32xf32, #tpu.memory_space<vmem>>, vector<16x32xf32>
    tpu.vector_store %arg11[%c0_144, %c0_145], %342 {strides = array<i32>} : memref<16x32xf32, #tpu.memory_space<vmem>>, vector<16x32xf32>,
    return
  }
  func.func @transform_0(%arg0: i32) -> (i32, i32) {
    %c0_i32 = arith.constant 0 : i32
    %c0_i32_0 = arith.constant 0 : i32
    %c0_i32_1 = arith.constant 0 : i32
    return %c0_i32, %c0_i32_0 : i32, i32
  }
  func.func @transform_1(%arg0: i32) -> (i32, i32) {
    %c0_i32 = arith.constant 0 : i32
    %c0_i32_0 = arith.constant 0 : i32
    %c0_i32_1 = arith.constant 0 : i32
    return %c0_i32, %c0_i32_0 : i32, i32
  }
  func.func @transform_2(%arg0: i32) -> (i32, i32) {
    %c0_i32 = arith.constant 0 : i32
    %c0_i32_0 = arith.constant 0 : i32
    %c0_i32_1 = arith.constant 0 : i32
    return %c0_i32, %c0_i32_0 : i32, i32
  }
  func.func @transform_3(%arg0: i32) -> (i32, i32) {
    %c0_i32 = arith.constant 0 : i32
    %c0_i32_0 = arith.constant 0 : i32
    %c0_i32_1 = arith.constant 0 : i32
    return %c0_i32, %c0_i32_0 : i32, i32
  }
  func.func @transform_4(%arg0: i32) -> (i32, i32) {
    %c0_i32 = arith.constant 0 : i32
    %c0_i32_0 = arith.constant 0 : i32
    %c0_i32_1 = arith.constant 0 : i32
    return %c0_i32, %c0_i32_0 : i32, i32
  }
  func.func @transform_5(%arg0: i32) -> (i32, i32, i32, i32) {
    %c0_i32 = arith.constant 0 : i32
    %c0_i32_0 = arith.constant 0 : i32
    %c0_i32_1 = arith.constant 0 : i32
    %c0_i32_2 = arith.constant 0 : i32
    %c0_i32_3 = arith.constant 0 : i32
    return %c0_i32, %c0_i32_0, %c0_i32_1, %c0_i32_2 : i32, i32, i32, i32
  }
  func.func @transform_6(%arg0: i32) -> (i32, i32, i32) {
    %c0_i32 = arith.constant 0 : i32
    %c0_i32_0 = arith.constant 0 : i32
    %c0_i32_1 = arith.constant 0 : i32
    %c0_i32_2 = arith.constant 0 : i32
    return %c0_i32, %c0_i32_0, %c0_i32_1 : i32, i32, i32
  }
  func.func @transform_7(%arg0: i32) -> (i32, i32, i32) {
    %c0_i32 = arith.constant 0 : i32
    %c0_i32_0 = arith.constant 0 : i32
    %c0_i32_1 = arith.constant 0 : i32
    %c0_i32_2 = arith.constant 0 : i32
    return %c0_i32, %c0_i32_0, %c0_i32_1 : i32, i32, i32
  }
  func.func @transform_8(%arg0: i32) -> (i32, i32, i32) {
    %c0_i32 = arith.constant 0 : i32
    %c0_i32_0 = arith.constant 0 : i32
    %c0_i32_1 = arith.constant 0 : i32
    %c0_i32_2 = arith.constant 0 : i32
    return %c0_i32, %c0_i32_0, %c0_i32_1 : i32, i32, i32
  }
  func.func @transform_9(%arg0: i32) -> (i32, i32, i32) {
    %c0_i32 = arith.constant 0 : i32
    %c0_i32_0 = arith.constant 0 : i32
    %c0_i32_1 = arith.constant 0 : i32
    %c0_i32_2 = arith.constant 0 : i32
    return %c0_i32, %c0_i32_0, %c0_i32_1 : i32, i32, i32
  }
  func.func @transform_10(%arg0: i32) -> (i32, i32) {
    %c0_i32 = arith.constant 0 : i32
    %c0_i32_0 = arith.constant 0 : i32
    %c0_i32_1 = arith.constant 0 : i32
    return %c0_i32, %c0_i32_0 : i32, i32
  }
}

</mosaic_0001>

<llo_original>
// kernel: tpu_custom_call.1
$region0: #{tpu_custom_call.1}
  #allocation0 [shape = 'u32[]', space=smem, size = 0x4, offset = 0x4, fixed_abs, tag = 'smem constant byte address 0x4 - core index']
  #allocation1 [shape = 'u32[144,128]{1,0:T(1,128)}', space=vmem, size = 0x12000, scoped, tag = 'internal scratch']
  %s0 = inlined_call_operand.vmem [shape: f32[16,16], index: 0, kind: input, shape index: {}]
  %s1 = inlined_call_operand.vmem [shape: f32[16,16], index: 1, kind: input, shape index: {}]
  %s2 = inlined_call_operand.vmem [shape: f32[4,32], index: 2, kind: input, shape index: {}]
  %s3 = inlined_call_operand.vmem [shape: f32[16,32], index: 3, kind: input, shape index: {}]
  %s4 = inlined_call_operand.vmem [shape: f32[1,32], index: 4, kind: input, shape index: {}]
  %s5 = inlined_call_operand.hbm [shape: f32[2,4,32,32], index: 5, kind: input, shape index: {}]
  %s6 = inlined_call_operand.vmem [shape: f32[2,32,64], index: 6, kind: input, shape index: {}]
  %s7 = inlined_call_operand.vmem [shape: f32[2,64,32], index: 7, kind: input, shape index: {}]
  %s8 = inlined_call_operand.vmem [shape: f32[2,1,64], index: 8, kind: input, shape index: {}]
  %s9 = inlined_call_operand.vmem [shape: f32[2,16,32], index: 9, kind: input, shape index: {}]
  %s10 = inlined_call_operand.hbm [shape: f32[16,32], index: 10, kind: output, shape index: {}]
  %s11 = sld [smem:[#allocation0]]
  $region54: #{tpu_custom_call.1} parent=0
    _
  %s13 = ssub.s32 1, %s11
  %s14 = scalar_select 0, %s13, %s11
  $region1: #{tpu_custom_call.1} parent=0
    #allocation2 [shape = 'u8[131072]{0}', space=vmem, size = 0x20000, scoped, tag = 'input window, operand 5, single buffered']
    #allocation3 [shape = 's32[1]{0}', space=sflag, size = 0x4, scoped, tag = 'scoped memory for tpu_custom_call.1']
    #allocation4 [shape = 's32[1]{0}', space=sflag, size = 0x4, scoped, tag = 'scoped memory for tpu_custom_call.1']
    #allocation5 [shape = 'u8[8192]{0}', space=vmem, size = 0x2000, scoped, tag = 'output window, operand 0, single buffered']
    %15 = vsyncpa [#allocation3], 0
    %16 = vsyncpa [#allocation4], 0
    // Predicated region
    $region2: #{tpu_custom_call.1} parent=1 // pred_check
      _
    $region3: #{tpu_custom_call.1} parent=1 // pred_check_branch
      %18 = sbr.rel (0) target = $region5
    $region4: #{tpu_custom_call.1} parent=1 // pred_region
      _
    $region5: #{tpu_custom_call.1} parent=1 // pred_fallthru
      _
    // Predicated region
    $region6: #{tpu_custom_call.1} parent=1 // pred_check
      _
    $region7: #{tpu_custom_call.1} parent=1 // pred_check_branch
      %20 = sbr.rel (0) target = $region9
    $region8: #{tpu_custom_call.1} parent=1 // pred_region
      _
    $region9: #{tpu_custom_call.1} parent=1 // pred_fallthru
      _
    // Predicated region
    $region10: #{tpu_custom_call.1} parent=1 // pred_check
      _
    $region11: #{tpu_custom_call.1} parent=1 // pred_check_branch
      %22 = sbr.rel (0) target = $region13
    $region12: #{tpu_custom_call.1} parent=1 // pred_region
      _
    $region13: #{tpu_custom_call.1} parent=1 // pred_fallthru
      _
    // Predicated region
    $region14: #{tpu_custom_call.1} parent=1 // pred_check
      _
    $region15: #{tpu_custom_call.1} parent=1 // pred_check_branch
      %24 = sbr.rel (0) target = $region17
    $region16: #{tpu_custom_call.1} parent=1 // pred_region
      _
    $region17: #{tpu_custom_call.1} parent=1 // pred_fallthru
      _
    // Predicated region
    $region18: #{tpu_custom_call.1} parent=1 // pred_check
      _
    $region19: #{tpu_custom_call.1} parent=1 // pred_check_branch
      %26 = sbr.rel (0) target = $region21
    $region20: #{tpu_custom_call.1} parent=1 // pred_region
      _
    $region21: #{tpu_custom_call.1} parent=1 // pred_fallthru
      _
    // Predicated region
    $region22: #{tpu_custom_call.1} parent=1 // pred_check
      _
    $region23: #{tpu_custom_call.1} parent=1 // pred_check_branch
      %28 = sbr.rel (0) target = $region25
    $region24: #{tpu_custom_call.1} parent=1 // pred_region
      %s30 = ssub.s32 4096, 4096
      %31 = vsyncadd [#allocation3], %s30
      %s32 = sshll.u32 [#allocation2], 4
      %s33 = int_to_ptr.vmem [resolvable:$true] %s32
      %38 = dma.hbm_to_vmem [thread:$0]  %s5, 4096, %s33, [#allocation3], 128, 128, 8
    $region25: #{tpu_custom_call.1} parent=1 // pred_fallthru
      _
    // Predicated region
    $region26: #{tpu_custom_call.1} parent=1 // pred_check
      _
    $region27: #{tpu_custom_call.1} parent=1 // pred_check_branch
      %40 = sbr.rel (0) target = $region29
    $region28: #{tpu_custom_call.1} parent=1 // pred_region
      _
    $region29: #{tpu_custom_call.1} parent=1 // pred_fallthru
      _
    // Predicated region
    $region30: #{tpu_custom_call.1} parent=1 // pred_check
      _
    $region31: #{tpu_custom_call.1} parent=1 // pred_check_branch
      %42 = sbr.rel (0) target = $region33
    $region32: #{tpu_custom_call.1} parent=1 // pred_region
      _
    $region33: #{tpu_custom_call.1} parent=1 // pred_fallthru
      _
    // Predicated region
    $region34: #{tpu_custom_call.1} parent=1 // pred_check
      _
    $region35: #{tpu_custom_call.1} parent=1 // pred_check_branch
      %44 = sbr.rel (0) target = $region37
    $region36: #{tpu_custom_call.1} parent=1 // pred_region
      _
    $region37: #{tpu_custom_call.1} parent=1 // pred_fallthru
      _
    // Predicated region
    $region38: #{tpu_custom_call.1} parent=1 // pred_check
      _
    $region39: #{tpu_custom_call.1} parent=1 // pred_check_branch
      %46 = sbr.rel (0) target = $region41
    $region40: #{tpu_custom_call.1} parent=1 // pred_region
      _
    $region41: #{tpu_custom_call.1} parent=1 // pred_fallthru
      _
    // Predicated region
    $region42: #{tpu_custom_call.1} parent=1 // pred_check
      _
    $region43: #{tpu_custom_call.1} parent=1 // pred_check_branch
      %48 = sbr.rel (0) target = $region45
    $region44: #{tpu_custom_call.1} parent=1 // pred_region
      %49 = dma.done [#allocation3], 4096
    $region45: #{tpu_custom_call.1} parent=1 // pred_fallthru
      _
    %v50 = vld [vmem:[%s0] sm:$0xff]
    %v51 = vld [vmem:[%s0 + $0x8] sm:$0xff]
    %v52 = vld [vmem:[%s3] sm:$0xff]
    %v53 = vld [vmem:[%s3 + $0x8] sm:$0xff]
    %v54 = vld [vmem:[%s4] sm:$0x1]
    %v56 = vlaneseq
    %v57 = vshrl.u32 %v56, 7
    %v58 = vsub.s32 0, %v57
    %v59 = vrot.slane %v54, %v58
    %vm61 = vcmask 130048
    %v63 = vsel %vm61, %v50, 0
    %v66 = vsel %vm61, %v51, 0
    %68 = vmatprep.subr.mxu0 0.0
    %69 = vmatpush1.msra.mxu0 %v52
    %70 = vmatprep.subr.mxu0 0.0
    %71 = vmatpush1.msra.mxu0 %v53
    %72 = vmatprep.subr.mxu0 0.0
    %73 = vmatpush1.msra.mxu0 0.0
    %74 = vmatprep.subr.mxu0 0.0
    %75 = vmatpush1.msra.mxu0 0.0
    %76 = vmatprep.subr.mxu0 0.0
    %77 = vmatpush1.msra.mxu0 0.0
    %78 = vmatprep.subr.mxu0 0.0
    %79 = vmatpush1.msra.mxu0 0.0
    %80 = vmatprep.subr.mxu0 0.0
    %81 = vmatpush1.msra.mxu0 0.0
    %82 = vmatprep.subr.mxu0 0.0
    %83 = vmatpush1.msra.mxu0 0.0
    %84 = vmatprep.subr.mxu0 0.0
    %85 = vmatpush1.msra.mxu0 0.0
    %86 = vmatprep.subr.mxu0 0.0
    %87 = vmatpush1.msra.mxu0 0.0
    %88 = vmatprep.subr.mxu0 0.0
    %89 = vmatpush1.msra.mxu0 0.0
    %90 = vmatprep.subr.mxu0 0.0
    %91 = vmatpush1.msra.mxu0 0.0
    %92 = vmatprep.subr.mxu0 0.0
    %93 = vmatpush1.msra.mxu0 0.0
    %94 = vmatprep.subr.mxu0 0.0
    %95 = vmatpush1.msra.mxu0 0.0
    %96 = vmatprep.subr.mxu0 0.0
    %97 = vmatpush1.msra.mxu0 0.0
    %98 = vmatprep.subr.mxu0 0.0
    %99 = vmatpush1.msra.mxu0 0.0
    %100 = vmatprep.subr.mxu0 0.0
    %101 = vmatpush1.msra.mxu0 0.0
    %102 = vmatprep.subr.mxu0 0.0
    %103 = vmatpush1.msra.mxu0 0.0
    %104 = vmatprep.subr.mxu0 0.0
    %105 = vmatpush1.msra.mxu0 0.0
    %106 = vmatprep.subr.mxu0 0.0
    %107 = vmatpush1.msra.mxu0 0.0
    %108 = vmatprep.subr.mxu0 0.0
    %109 = vmatpush1.msra.mxu0 0.0
    %110 = vmatprep.subr.mxu0 0.0
    %111 = vmatpush1.msra.mxu0 0.0
    %112 = vmatprep.subr.mxu0 0.0
    %113 = vmatpush1.msra.mxu0 0.0
    %114 = vmatprep.subr.mxu0 0.0
    %115 = vmatpush1.msra.mxu0 0.0
    %116 = vmatprep.subr.mxu0 0.0
    %117 = vmatpush1.msra.mxu0 0.0
    %118 = vmatprep.subr.mxu0 0.0
    %119 = vmatpush1.msra.mxu0 0.0
    %120 = vmatprep.subr.mxu0 0.0
    %121 = vmatpush1.msra.mxu0 0.0
    %122 = vmatprep.subr.mxu0 0.0
    %123 = vmatpush1.msra.mxu0 0.0
    %124 = vmatprep.subr.mxu0 0.0
    %125 = vmatpush1.msra.mxu0 0.0
    %126 = vmatprep.subr.mxu0 0.0
    %127 = vmatpush1.msra.mxu0 0.0
    %128 = vmatprep.subr.mxu0 0.0
    %129 = vmatpush1.msra.mxu0 0.0
    %130 = vmatprep.subr.mxu0 0.0
    %131 = vmatpush1.msra.mxu0 0.0
    %132 = vmatprep.mubr.f32.mxu0 0.0
    %133 = vmatmul.mubr.f32.gmra.mrb[0].mxu0 %v63
    %v134 = vpop.f32.mrb[0].mxu0
    %v135 = vadd.f32 %v59, %v134
    %v136 = vpop.f32.mrb[0].mxu0
    %137 = vmatprep.mubr.f32.mxu0 0.0
    %138 = vmatmul.mubr.f32.gmra.mrb[0].mxu0 %v66
    %v139 = vpop.f32.mrb[0].mxu0
    %v140 = vadd.f32 %v59, %v139
    %v141 = vpop.f32.mrb[0].mxu0
    %142 = vdwg.mxu0
    %v143 = vld [vmem:[%s1] sm:$0xff]
    %v144 = vld [vmem:[%s1 + $0x8] sm:$0xff]
    %v145 = vld [vmem:[#allocation2] sm:$0xff]
    %v146 = vld [vmem:[#allocation2 + $0x8] sm:$0xff]
    %v147 = vld [vmem:[#allocation2 + $0x10] sm:$0xff]
    %v148 = vld [vmem:[#allocation2 + $0x18] sm:$0xff]
    %s149 = scalar_lea.vmem [#allocation2], 32
    %v150 = vld [vmem:[%s149] sm:$0xff]
    %v151 = vld [vmem:[%s149 + $0x8] sm:$0xff]
    %v152 = vld [vmem:[%s149 + $0x10] sm:$0xff]
    %v153 = vld [vmem:[%s149 + $0x18] sm:$0xff]
    %s154 = scalar_lea.vmem [#allocation2], 64
    %v155 = vld [vmem:[%s154] sm:$0xff]
    %v156 = vld [vmem:[%s154 + $0x8] sm:$0xff]
    %v157 = vld [vmem:[%s154 + $0x10] sm:$0xff]
    %v158 = vld [vmem:[%s154 + $0x18] sm:$0xff]
    %s159 = scalar_lea.vmem [#allocation2], 96
    %v160 = vld [vmem:[%s159] sm:$0xff]
    %v161 = vld [vmem:[%s159 + $0x8] sm:$0xff]
    %v162 = vld [vmem:[%s159 + $0x10] sm:$0xff]
    %v163 = vld [vmem:[%s159 + $0x18] sm:$0xff]
    %v164 = vld [vmem:[%s9] sm:$0xff]
    %v165 = vld [vmem:[%s9 + $0x8] sm:$0xff]
    %v166 = vld [vmem:[%s8] sm:$0x1]
    %v167 = vlaneseq
    %v168 = vshrl.u32 %v167, 7
    %v169 = vsub.s32 0, %v168
    %v170 = vrot.slane %v164, %v169
    %vm171 = vcmask 261120
    %v173 = vsel %vm171, %v135, 0
    %v176 = vsel %vm171, %v140, 0
    %178 = vmatprep.subr.mxu0 0.0
    %179 = vmatpush1.msra.mxu0 %v145
    %180 = vmatprep.subr.mxu0 0.0
    %181 = vmatpush1.msra.mxu0 %v146
    %182 = vmatprep.subr.mxu0 0.0
    %183 = vmatpush1.msra.mxu0 %v147
    %184 = vmatprep.subr.mxu0 0.0
    %185 = vmatpush1.msra.mxu0 %v148
    %186 = vmatprep.subr.mxu0 0.0
    %187 = vmatpush1.msra.mxu0 0.0
    %188 = vmatprep.subr.mxu0 0.0
    %189 = vmatpush1.msra.mxu0 0.0
    %190 = vmatprep.subr.mxu0 0.0
    %191 = vmatpush1.msra.mxu0 0.0
    %192 = vmatprep.subr.mxu0 0.0
    %193 = vmatpush1.msra.mxu0 0.0
    %194 = vmatprep.subr.mxu0 0.0
    %195 = vmatpush1.msra.mxu0 0.0
    %196 = vmatprep.subr.mxu0 0.0
    %197 = vmatpush1.msra.mxu0 0.0
    %198 = vmatprep.subr.mxu0 0.0
    %199 = vmatpush1.msra.mxu0 0.0
    %200 = vmatprep.subr.mxu0 0.0
    %201 = vmatpush1.msra.mxu0 0.0
    %202 = vmatprep.subr.mxu0 0.0
    %203 = vmatpush1.msra.mxu0 0.0
    %204 = vmatprep.subr.mxu0 0.0
    %205 = vmatpush1.msra.mxu0 0.0
    %206 = vmatprep.subr.mxu0 0.0
    %207 = vmatpush1.msra.mxu0 0.0
    %208 = vmatprep.subr.mxu0 0.0
    %209 = vmatpush1.msra.mxu0 0.0
    %210 = vmatprep.subr.mxu0 0.0
    %211 = vmatpush1.msra.mxu0 0.0
    %212 = vmatprep.subr.mxu0 0.0
    %213 = vmatpush1.msra.mxu0 0.0
    %214 = vmatprep.subr.mxu0 0.0
    %215 = vmatpush1.msra.mxu0 0.0
    %216 = vmatprep.subr.mxu0 0.0
    %217 = vmatpush1.msra.mxu0 0.0
    %218 = vmatprep.subr.mxu0 0.0
    %219 = vmatpush1.msra.mxu0 0.0
    %220 = vmatprep.subr.mxu0 0.0
    %221 = vmatpush1.msra.mxu0 0.0
    %222 = vmatprep.subr.mxu0 0.0
    %223 = vmatpush1.msra.mxu0 0.0
    %224 = vmatprep.subr.mxu0 0.0
    %225 = vmatpush1.msra.mxu0 0.0
    %226 = vmatprep.subr.mxu0 0.0
    %227 = vmatpush1.msra.mxu0 0.0
    %228 = vmatprep.subr.mxu0 0.0
    %229 = vmatpush1.msra.mxu0 0.0
    %230 = vmatprep.subr.mxu0 0.0
    %231 = vmatpush1.msra.mxu0 0.0
    %232 = vmatprep.subr.mxu0 0.0
    %233 = vmatpush1.msra.mxu0 0.0
    %234 = vmatprep.subr.mxu0 0.0
    %235 = vmatpush1.msra.mxu0 0.0
    %236 = vmatprep.subr.mxu0 0.0
    %237 = vmatpush1.msra.mxu0 0.0
    %238 = vmatprep.subr.mxu0 0.0
    %239 = vmatpush1.msra.mxu0 0.0
    %240 = vmatprep.subr.mxu0 0.0
    %241 = vmatpush1.msra.mxu0 0.0
    %242 = vmatprep.mubr.f32.mxu0 0.0
    %243 = vmatmul.mubr.f32.gmra.mrb[0].mxu0 %v173
    %v244 = vpop.f32.mrb[0].mxu0
    %v245 = vadd.f32 %v170, %v244
    %v246 = vpop.f32.mrb[0].mxu0
    %247 = vmatprep.mubr.f32.mxu0 0.0
    %248 = vmatmul.mubr.f32.gmra.mrb[0].mxu0 %v176
    %v249 = vpop.f32.mrb[0].mxu0
    %v250 = vadd.f32 %v170, %v249
    %v251 = vpop.f32.mrb[0].mxu0
    %252 = vdwg.mxu0
    %v253 = vlaneseq
    %v254 = vshrl.u32 %v253, 7
    %v255 = vsub.s32 1, %v254
    %v256 = vrot.slane %v164, %v255
    %257 = vmatprep.subr.mxu0 0.0
    %258 = vmatpush1.msra.mxu0 %v150
    %259 = vmatprep.subr.mxu0 0.0
    %260 = vmatpush1.msra.mxu0 %v151
    %261 = vmatprep.subr.mxu0 0.0
    %262 = vmatpush1.msra.mxu0 %v152
    %263 = vmatprep.subr.mxu0 0.0
    %264 = vmatpush1.msra.mxu0 %v153
    %265 = vmatprep.subr.mxu0 0.0
    %266 = vmatpush1.msra.mxu0 0.0
    %267 = vmatprep.subr.mxu0 0.0
    %268 = vmatpush1.msra.mxu0 0.0
    %269 = vmatprep.subr.mxu0 0.0
    %270 = vmatpush1.msra.mxu0 0.0
    %271 = vmatprep.subr.mxu0 0.0
    %272 = vmatpush1.msra.mxu0 0.0
    %273 = vmatprep.subr.mxu0 0.0
    %274 = vmatpush1.msra.mxu0 0.0
    %275 = vmatprep.subr.mxu0 0.0
    %276 = vmatpush1.msra.mxu0 0.0
    %277 = vmatprep.subr.mxu0 0.0
    %278 = vmatpush1.msra.mxu0 0.0
    %279 = vmatprep.subr.mxu0 0.0
    %280 = vmatpush1.msra.mxu0 0.0
    %281 = vmatprep.subr.mxu0 0.0
    %282 = vmatpush1.msra.mxu0 0.0
    %283 = vmatprep.subr.mxu0 0.0
    %284 = vmatpush1.msra.mxu0 0.0
    %285 = vmatprep.subr.mxu0 0.0
    %286 = vmatpush1.msra.mxu0 0.0
    %287 = vmatprep.subr.mxu0 0.0
    %288 = vmatpush1.msra.mxu0 0.0
    %289 = vmatprep.subr.mxu0 0.0
    %290 = vmatpush1.msra.mxu0 0.0
    %291 = vmatprep.subr.mxu0 0.0
    %292 = vmatpush1.msra.mxu0 0.0
    %293 = vmatprep.subr.mxu0 0.0
    %294 = vmatpush1.msra.mxu0 0.0
    %295 = vmatprep.subr.mxu0 0.0
    %296 = vmatpush1.msra.mxu0 0.0
    %297 = vmatprep.subr.mxu0 0.0
    %298 = vmatpush1.msra.mxu0 0.0
    %299 = vmatprep.subr.mxu0 0.0
    %300 = vmatpush1.msra.mxu0 0.0
    %301 = vmatprep.subr.mxu0 0.0
    %302 = vmatpush1.msra.mxu0 0.0
    %303 = vmatprep.subr.mxu0 0.0
    %304 = vmatpush1.msra.mxu0 0.0
    %305 = vmatprep.subr.mxu0 0.0
    %306 = vmatpush1.msra.mxu0 0.0
    %307 = vmatprep.subr.mxu0 0.0
    %308 = vmatpush1.msra.mxu0 0.0
    %309 = vmatprep.subr.mxu0 0.0
    %310 = vmatpush1.msra.mxu0 0.0
    %311 = vmatprep.subr.mxu0 0.0
    %312 = vmatpush1.msra.mxu0 0.0
    %313 = vmatprep.subr.mxu0 0.0
    %314 = vmatpush1.msra.mxu0 0.0
    %315 = vmatprep.subr.mxu0 0.0
    %316 = vmatpush1.msra.mxu0 0.0
    %317 = vmatprep.subr.mxu0 0.0
    %318 = vmatpush1.msra.mxu0 0.0
    %319 = vmatprep.subr.mxu0 0.0
    %320 = vmatpush1.msra.mxu0 0.0
    %321 = vmatprep.mubr.f32.mxu0 0.0
    %322 = vmatmul.mubr.f32.gmra.mrb[0].mxu0 %v173
    %v323 = vpop.f32.mrb[0].mxu0
    %v324 = vadd.f32 %v256, %v323
    %v325 = vpop.f32.mrb[0].mxu0
    %326 = vmatprep.mubr.f32.mxu0 0.0
    %327 = vmatmul.mubr.f32.gmra.mrb[0].mxu0 %v176
    %v328 = vpop.f32.mrb[0].mxu0
    %v329 = vadd.f32 %v256, %v328
    %v330 = vpop.f32.mrb[0].mxu0
    %331 = vdwg.mxu0
    %v332 = vlaneseq
    %v333 = vshrl.u32 %v332, 7
    %v334 = vsub.s32 2, %v333
    %v335 = vrot.slane %v164, %v334
    %336 = vmatprep.subr.mxu0 0.0
    %337 = vmatpush1.msra.mxu0 %v155
    %338 = vmatprep.subr.mxu0 0.0
    %339 = vmatpush1.msra.mxu0 %v156
    %340 = vmatprep.subr.mxu0 0.0
    %341 = vmatpush1.msra.mxu0 %v157
    %342 = vmatprep.subr.mxu0 0.0
    %343 = vmatpush1.msra.mxu0 %v158
    %344 = vmatprep.subr.mxu0 0.0
    %345 = vmatpush1.msra.mxu0 0.0
    %346 = vmatprep.subr.mxu0 0.0
    %347 = vmatpush1.msra.mxu0 0.0
    %348 = vmatprep.subr.mxu0 0.0
    %349 = vmatpush1.msra.mxu0 0.0
    %350 = vmatprep.subr.mxu0 0.0
    %351 = vmatpush1.msra.mxu0 0.0
    %352 = vmatprep.subr.mxu0 0.0
    %353 = vmatpush1.msra.mxu0 0.0
    %354 = vmatprep.subr.mxu0 0.0
    %355 = vmatpush1.msra.mxu0 0.0
    %356 = vmatprep.subr.mxu0 0.0
    %357 = vmatpush1.msra.mxu0 0.0
    %358 = vmatprep.subr.mxu0 0.0
    %359 = vmatpush1.msra.mxu0 0.0
    %360 = vmatprep.subr.mxu0 0.0
    %361 = vmatpush1.msra.mxu0 0.0
    %362 = vmatprep.subr.mxu0 0.0
    %363 = vmatpush1.msra.mxu0 0.0
    %364 = vmatprep.subr.mxu0 0.0
    %365 = vmatpush1.msra.mxu0 0.0
    %366 = vmatprep.subr.mxu0 0.0
    %367 = vmatpush1.msra.mxu0 0.0
    %368 = vmatprep.subr.mxu0 0.0
    %369 = vmatpush1.msra.mxu0 0.0
    %370 = vmatprep.subr.mxu0 0.0
    %371 = vmatpush1.msra.mxu0 0.0
    %372 = vmatprep.subr.mxu0 0.0
    %373 = vmatpush1.msra.mxu0 0.0
    %374 = vmatprep.subr.mxu0 0.0
    %375 = vmatpush1.msra.mxu0 0.0
    %376 = vmatprep.subr.mxu0 0.0
    %377 = vmatpush1.msra.mxu0 0.0
    %378 = vmatprep.subr.mxu0 0.0
    %379 = vmatpush1.msra.mxu0 0.0
    %380 = vmatprep.subr.mxu0 0.0
    %381 = vmatpush1.msra.mxu0 0.0
    %382 = vmatprep.subr.mxu0 0.0
    %383 = vmatpush1.msra.mxu0 0.0
    %384 = vmatprep.subr.mxu0 0.0
    %385 = vmatpush1.msra.mxu0 0.0
    %386 = vmatprep.subr.mxu0 0.0
    %387 = vmatpush1.msra.mxu0 0.0
    %388 = vmatprep.subr.mxu0 0.0
    %389 = vmatpush1.msra.mxu0 0.0
    %390 = vmatprep.subr.mxu0 0.0
    %391 = vmatpush1.msra.mxu0 0.0
    %392 = vmatprep.subr.mxu0 0.0
    %393 = vmatpush1.msra.mxu0 0.0
    %394 = vmatprep.subr.mxu0 0.0
    %395 = vmatpush1.msra.mxu0 0.0
    %396 = vmatprep.subr.mxu0 0.0
    %397 = vmatpush1.msra.mxu0 0.0
    %398 = vmatprep.subr.mxu0 0.0
    %399 = vmatpush1.msra.mxu0 0.0
    %400 = vmatprep.mubr.f32.mxu0 0.0
    %401 = vmatmul.mubr.f32.gmra.mrb[0].mxu0 %v173
    %v402 = vpop.f32.mrb[0].mxu0
    %v403 = vadd.f32 %v335, %v402
    %v404 = vpop.f32.mrb[0].mxu0
    %405 = vmatprep.mubr.f32.mxu0 0.0
    %406 = vmatmul.mubr.f32.gmra.mrb[0].mxu0 %v176
    %v407 = vpop.f32.mrb[0].mxu0
    %v408 = vadd.f32 %v335, %v407
    %v409 = vpop.f32.mrb[0].mxu0
    %410 = vdwg.mxu0
    %v411 = vld [vmem:[%s2] sm:$0x1]
    %v412 = vlaneseq
    %v413 = vshrl.u32 %v412, 7
    %v414 = vsub.s32 0, %v413
    %v415 = vrot.slane %v411, %v414
    %v416 = vmul.f32 %v245, %v415
    %v417 = vmul.f32 %v250, %v415
    %v419 = vsel %vm171, %v416, 0
    %v422 = vsel %vm171, %v417, 0
    %v425 = vsel %vm171, %v324, 0
    %v428 = vsel %vm171, %v329, 0
    %430 = vmatprep.subr.mxu0 0.0
    %431 = vmatpush1.xpose.msra.mxu0 %v425
    %432 = vmatprep.subr.mxu0 0.0
    %433 = vmatpush1.xpose.msra.mxu0 %v428
    %434 = vmatprep.subr.mxu0 0.0
    %435 = vmatpush1.xpose.msra.mxu0 0.0
    %436 = vmatprep.subr.mxu0 0.0
    %437 = vmatpush1.xpose.msra.mxu0 0.0
    %438 = vmatprep.subr.mxu0 0.0
    %439 = vmatpush1.xpose.msra.mxu0 0.0
    %440 = vmatprep.subr.mxu0 0.0
    %441 = vmatpush1.xpose.msra.mxu0 0.0
    %442 = vmatprep.subr.mxu0 0.0
    %443 = vmatpush1.xpose.msra.mxu0 0.0
    %444 = vmatprep.subr.mxu0 0.0
    %445 = vmatpush1.xpose.msra.mxu0 0.0
    %446 = vmatprep.subr.mxu0 0.0
    %447 = vmatpush1.xpose.msra.mxu0 0.0
    %448 = vmatprep.subr.mxu0 0.0
    %449 = vmatpush1.xpose.msra.mxu0 0.0
    %450 = vmatprep.subr.mxu0 0.0
    %451 = vmatpush1.xpose.msra.mxu0 0.0
    %452 = vmatprep.subr.mxu0 0.0
    %453 = vmatpush1.xpose.msra.mxu0 0.0
    %454 = vmatprep.subr.mxu0 0.0
    %455 = vmatpush1.xpose.msra.mxu0 0.0
    %456 = vmatprep.subr.mxu0 0.0
    %457 = vmatpush1.xpose.msra.mxu0 0.0
    %458 = vmatprep.subr.mxu0 0.0
    %459 = vmatpush1.xpose.msra.mxu0 0.0
    %460 = vmatprep.subr.mxu0 0.0
    %461 = vmatpush1.xpose.msra.mxu0 0.0
    %462 = vmatprep.subr.mxu0 0.0
    %463 = vmatpush1.xpose.msra.mxu0 0.0
    %464 = vmatprep.subr.mxu0 0.0
    %465 = vmatpush1.xpose.msra.mxu0 0.0
    %466 = vmatprep.subr.mxu0 0.0
    %467 = vmatpush1.xpose.msra.mxu0 0.0
    %468 = vmatprep.subr.mxu0 0.0
    %469 = vmatpush1.xpose.msra.mxu0 0.0
    %470 = vmatprep.subr.mxu0 0.0
    %471 = vmatpush1.xpose.msra.mxu0 0.0
    %472 = vmatprep.subr.mxu0 0.0
    %473 = vmatpush1.xpose.msra.mxu0 0.0
    %474 = vmatprep.subr.mxu0 0.0
    %475 = vmatpush1.xpose.msra.mxu0 0.0
    %476 = vmatprep.subr.mxu0 0.0
    %477 = vmatpush1.xpose.msra.mxu0 0.0
    %478 = vmatprep.subr.mxu0 0.0
    %479 = vmatpush1.xpose.msra.mxu0 0.0
    %480 = vmatprep.subr.mxu0 0.0
    %481 = vmatpush1.xpose.msra.mxu0 0.0
    %482 = vmatprep.subr.mxu0 0.0
    %483 = vmatpush1.xpose.msra.mxu0 0.0
    %484 = vmatprep.subr.mxu0 0.0
    %485 = vmatpush1.xpose.msra.mxu0 0.0
    %486 = vmatprep.subr.mxu0 0.0
    %487 = vmatpush1.xpose.msra.mxu0 0.0
    %488 = vmatprep.subr.mxu0 0.0
    %489 = vmatpush1.xpose.msra.mxu0 0.0
    %490 = vmatprep.subr.mxu0 0.0
    %491 = vmatpush1.xpose.msra.mxu0 0.0
    %492 = vmatprep.subr.mxu0 0.0
    %493 = vmatpush1.xpose.msra.mxu0 0.0
    %494 = vmatprep.mubr.f32.mxu0 0.0
    %495 = vmatmul.mubr.f32.gmra.mrb[0].mxu0 %v419
    %v496 = vpop.f32.mrb[0].mxu0
    %v497 = vadd.f32 %v143, %v496
    %v498 = vpop.f32.mrb[0].mxu0
    %499 = vmatprep.mubr.f32.mxu0 0.0
    %500 = vmatmul.mubr.f32.gmra.mrb[0].mxu0 %v422
    %v501 = vpop.f32.mrb[0].mxu0
    %v502 = vadd.f32 %v144, %v501
    %v503 = vpop.f32.mrb[0].mxu0
    %504 = vdwg.mxu0
    %v505 = vsel %vm61, %v497, -inf
    %506 = vmax.xlane.f32.xlu0 %v505
    %v507 = vpop.xlane.xlu0 %506
    %v508 = vsel %vm61, %v502, -inf
    %509 = vmax.xlane.f32.xlu0 %v508
    %v510 = vpop.xlane.xlu0 %509
    %v511 = vsub.f32 %v497, %v507
    %v512 = vsub.f32 %v502, %v510
    %v513 = vmul.f32 %v511, 1.442695
    %v514 = vpow.pop %v513
    %v515 = vmul.f32 %v512, 1.442695
    %v516 = vpow.pop %v515
    %v517 = vsel %vm61, %v514, 0.0
    %518 = vadd.xlane.f32.xlu0 %v517
    %v519 = vpop.xlane.xlu0 %518
    %v520 = vsel %vm61, %v516, 0.0
    %521 = vadd.xlane.f32.xlu0 %v520
    %v522 = vpop.xlane.xlu0 %521
    %v523 = vrcp.pop %v519
    %v524 = vrcp.pop %v522
    %v525 = vmul.f32 %v514, %v523
    %v526 = vmul.f32 %v516, %v524
    %v528 = vsel %vm61, %v525, 0
    %v531 = vsel %vm61, %v526, 0
    %533 = vmatprep.subr.mxu0 0.0
    %534 = vmatpush1.msra.mxu0 %v403
    %535 = vmatprep.subr.mxu0 0.0
    %536 = vmatpush1.msra.mxu0 %v408
    %537 = vmatprep.subr.mxu0 0.0
    %538 = vmatpush1.msra.mxu0 0.0
    %539 = vmatprep.subr.mxu0 0.0
    %540 = vmatpush1.msra.mxu0 0.0
    %541 = vmatprep.subr.mxu0 0.0
    %542 = vmatpush1.msra.mxu0 0.0
    %543 = vmatprep.subr.mxu0 0.0
    %544 = vmatpush1.msra.mxu0 0.0
    %545 = vmatprep.subr.mxu0 0.0
    %546 = vmatpush1.msra.mxu0 0.0
    %547 = vmatprep.subr.mxu0 0.0
    %548 = vmatpush1.msra.mxu0 0.0
    %549 = vmatprep.subr.mxu0 0.0
    %550 = vmatpush1.msra.mxu0 0.0
    %551 = vmatprep.subr.mxu0 0.0
    %552 = vmatpush1.msra.mxu0 0.0
    %553 = vmatprep.subr.mxu0 0.0
    %554 = vmatpush1.msra.mxu0 0.0
    %555 = vmatprep.subr.mxu0 0.0
    %556 = vmatpush1.msra.mxu0 0.0
    %557 = vmatprep.subr.mxu0 0.0
    %558 = vmatpush1.msra.mxu0 0.0
    %559 = vmatprep.subr.mxu0 0.0
    %560 = vmatpush1.msra.mxu0 0.0
    %561 = vmatprep.subr.mxu0 0.0
    %562 = vmatpush1.msra.mxu0 0.0
    %563 = vmatprep.subr.mxu0 0.0
    %564 = vmatpush1.msra.mxu0 0.0
    %565 = vmatprep.subr.mxu0 0.0
    %566 = vmatpush1.msra.mxu0 0.0
    %567 = vmatprep.subr.mxu0 0.0
    %568 = vmatpush1.msra.mxu0 0.0
    %569 = vmatprep.subr.mxu0 0.0
    %570 = vmatpush1.msra.mxu0 0.0
    %571 = vmatprep.subr.mxu0 0.0
    %572 = vmatpush1.msra.mxu0 0.0
    %573 = vmatprep.subr.mxu0 0.0
    %574 = vmatpush1.msra.mxu0 0.0
    %575 = vmatprep.subr.mxu0 0.0
    %576 = vmatpush1.msra.mxu0 0.0
    %577 = vmatprep.subr.mxu0 0.0
    %578 = vmatpush1.msra.mxu0 0.0
    %579 = vmatprep.subr.mxu0 0.0
    %580 = vmatpush1.msra.mxu0 0.0
    %581 = vmatprep.subr.mxu0 0.0
    %582 = vmatpush1.msra.mxu0 0.0
    %583 = vmatprep.subr.mxu0 0.0
    %584 = vmatpush1.msra.mxu0 0.0
    %585 = vmatprep.subr.mxu0 0.0
    %586 = vmatpush1.msra.mxu0 0.0
    %587 = vmatprep.subr.mxu0 0.0
    %588 = vmatpush1.msra.mxu0 0.0
    %589 = vmatprep.subr.mxu0 0.0
    %590 = vmatpush1.msra.mxu0 0.0
    %591 = vmatprep.subr.mxu0 0.0
    %592 = vmatpush1.msra.mxu0 0.0
    %593 = vmatprep.subr.mxu0 0.0
    %594 = vmatpush1.msra.mxu0 0.0
    %595 = vmatprep.subr.mxu0 0.0
    %596 = vmatpush1.msra.mxu0 0.0
    %597 = vmatprep.mubr.f32.mxu0 0.0
    %598 = vmatmul.mubr.f32.gmra.mrb[0].mxu0 %v528
    %v599 = vpop.f32.mrb[0].mxu0
    %v600 = vadd.f32 0.0, %v599
    %v601 = vpop.f32.mrb[0].mxu0
    %602 = vmatprep.mubr.f32.mxu0 0.0
    %603 = vmatmul.mubr.f32.gmra.mrb[0].mxu0 %v531
    %v604 = vpop.f32.mrb[0].mxu0
    %v605 = vadd.f32 0.0, %v604
    %v606 = vpop.f32.mrb[0].mxu0
    %607 = vdwg.mxu0
    %v608 = vmul.f32 %v600, %v415
    %v609 = vmul.f32 %v605, %v415
    %v610 = vadd.f32 %v608, 0.0
    %v611 = vadd.f32 %v609, 0.0
    %v612 = vld [vmem:[%s2 + $0x1] sm:$0x1]
    %v613 = vlaneseq
    %v614 = vshrl.u32 %v613, 7
    %v615 = vsub.s32 0, %v614
    %v616 = vrot.slane %v612, %v615
    %v617 = vmul.f32 %v245, %v616
    %v618 = vmul.f32 %v250, %v616
    %v620 = vsel %vm171, %v617, 0
    %v623 = vsel %vm171, %v618, 0
    %625 = vmatprep.subr.mxu0 0.0
    %626 = vmatpush1.xpose.msra.mxu0 %v425
    %627 = vmatprep.subr.mxu0 0.0
    %628 = vmatpush1.xpose.msra.mxu0 %v428
    %629 = vmatprep.subr.mxu0 0.0
    %630 = vmatpush1.xpose.msra.mxu0 0.0
    %631 = vmatprep.subr.mxu0 0.0
    %632 = vmatpush1.xpose.msra.mxu0 0.0
    %633 = vmatprep.subr.mxu0 0.0
    %634 = vmatpush1.xpose.msra.mxu0 0.0
    %635 = vmatprep.subr.mxu0 0.0
    %636 = vmatpush1.xpose.msra.mxu0 0.0
    %637 = vmatprep.subr.mxu0 0.0
    %638 = vmatpush1.xpose.msra.mxu0 0.0
    %639 = vmatprep.subr.mxu0 0.0
    %640 = vmatpush1.xpose.msra.mxu0 0.0
    %641 = vmatprep.subr.mxu0 0.0
    %642 = vmatpush1.xpose.msra.mxu0 0.0
    %643 = vmatprep.subr.mxu0 0.0
    %644 = vmatpush1.xpose.msra.mxu0 0.0
    %645 = vmatprep.subr.mxu0 0.0
    %646 = vmatpush1.xpose.msra.mxu0 0.0
    %647 = vmatprep.subr.mxu0 0.0
    %648 = vmatpush1.xpose.msra.mxu0 0.0
    %649 = vmatprep.subr.mxu0 0.0
    %650 = vmatpush1.xpose.msra.mxu0 0.0
    %651 = vmatprep.subr.mxu0 0.0
    %652 = vmatpush1.xpose.msra.mxu0 0.0
    %653 = vmatprep.subr.mxu0 0.0
    %654 = vmatpush1.xpose.msra.mxu0 0.0
    %655 = vmatprep.subr.mxu0 0.0
    %656 = vmatpush1.xpose.msra.mxu0 0.0
    %657 = vmatprep.subr.mxu0 0.0
    %658 = vmatpush1.xpose.msra.mxu0 0.0
    %659 = vmatprep.subr.mxu0 0.0
    %660 = vmatpush1.xpose.msra.mxu0 0.0
    %661 = vmatprep.subr.mxu0 0.0
    %662 = vmatpush1.xpose.msra.mxu0 0.0
    %663 = vmatprep.subr.mxu0 0.0
    %664 = vmatpush1.xpose.msra.mxu0 0.0
    %665 = vmatprep.subr.mxu0 0.0
    %666 = vmatpush1.xpose.msra.mxu0 0.0
    %667 = vmatprep.subr.mxu0 0.0
    %668 = vmatpush1.xpose.msra.mxu0 0.0
    %669 = vmatprep.subr.mxu0 0.0
    %670 = vmatpush1.xpose.msra.mxu0 0.0
    %671 = vmatprep.subr.mxu0 0.0
    %672 = vmatpush1.xpose.msra.mxu0 0.0
    %673 = vmatprep.subr.mxu0 0.0
    %674 = vmatpush1.xpose.msra.mxu0 0.0
    %675 = vmatprep.subr.mxu0 0.0
    %676 = vmatpush1.xpose.msra.mxu0 0.0
    %677 = vmatprep.subr.mxu0 0.0
    %678 = vmatpush1.xpose.msra.mxu0 0.0
    %679 = vmatprep.subr.mxu0 0.0
    %680 = vmatpush1.xpose.msra.mxu0 0.0
    %681 = vmatprep.subr.mxu0 0.0
    %682 = vmatpush1.xpose.msra.mxu0 0.0
    %683 = vmatprep.subr.mxu0 0.0
    %684 = vmatpush1.xpose.msra.mxu0 0.0
    %685 = vmatprep.subr.mxu0 0.0
    %686 = vmatpush1.xpose.msra.mxu0 0.0
    %687 = vmatprep.subr.mxu0 0.0
    %688 = vmatpush1.xpose.msra.mxu0 0.0
    %689 = vmatprep.mubr.f32.mxu0 0.0
    %690 = vmatmul.mubr.f32.gmra.mrb[0].mxu0 %v620
    %v691 = vpop.f32.mrb[0].mxu0
    %v692 = vadd.f32 %v143, %v691
    %v693 = vpop.f32.mrb[0].mxu0
    %694 = vmatprep.mubr.f32.mxu0 0.0
    %695 = vmatmul.mubr.f32.gmra.mrb[0].mxu0 %v623
    %v696 = vpop.f32.mrb[0].mxu0
    %v697 = vadd.f32 %v144, %v696
    %v698 = vpop.f32.mrb[0].mxu0
    %699 = vdwg.mxu0
    %v700 = vsel %vm61, %v692, -inf
    %701 = vmax.xlane.f32.xlu0 %v700
    %v702 = vpop.xlane.xlu0 %701
    %v703 = vsel %vm61, %v697, -inf
    %704 = vmax.xlane.f32.xlu0 %v703
    %v705 = vpop.xlane.xlu0 %704
    %v706 = vsub.f32 %v692, %v702
    %v707 = vsub.f32 %v697, %v705
    %v708 = vmul.f32 %v706, 1.442695
    %v709 = vpow.pop %v708
    %v710 = vmul.f32 %v707, 1.442695
    %v711 = vpow.pop %v710
    %v712 = vsel %vm61, %v709, 0.0
    %713 = vadd.xlane.f32.xlu0 %v712
    %v714 = vpop.xlane.xlu0 %713
    %v715 = vsel %vm61, %v711, 0.0
    %716 = vadd.xlane.f32.xlu0 %v715
    %v717 = vpop.xlane.xlu0 %716
    %v718 = vrcp.pop %v714
    %v719 = vrcp.pop %v717
    %v720 = vmul.f32 %v709, %v718
    %v721 = vmul.f32 %v711, %v719
    %v723 = vsel %vm61, %v720, 0
    %v726 = vsel %vm61, %v721, 0
    %728 = vmatprep.subr.mxu0 0.0
    %729 = vmatpush1.msra.mxu0 %v403
    %730 = vmatprep.subr.mxu0 0.0
    %731 = vmatpush1.msra.mxu0 %v408
    %732 = vmatprep.subr.mxu0 0.0
    %733 = vmatpush1.msra.mxu0 0.0
    %734 = vmatprep.subr.mxu0 0.0
    %735 = vmatpush1.msra.mxu0 0.0
    %736 = vmatprep.subr.mxu0 0.0
    %737 = vmatpush1.msra.mxu0 0.0
    %738 = vmatprep.subr.mxu0 0.0
    %739 = vmatpush1.msra.mxu0 0.0
    %740 = vmatprep.subr.mxu0 0.0
    %741 = vmatpush1.msra.mxu0 0.0
    %742 = vmatprep.subr.mxu0 0.0
    %743 = vmatpush1.msra.mxu0 0.0
    %744 = vmatprep.subr.mxu0 0.0
    %745 = vmatpush1.msra.mxu0 0.0
    %746 = vmatprep.subr.mxu0 0.0
    %747 = vmatpush1.msra.mxu0 0.0
    %748 = vmatprep.subr.mxu0 0.0
    %749 = vmatpush1.msra.mxu0 0.0
    %750 = vmatprep.subr.mxu0 0.0
    %751 = vmatpush1.msra.mxu0 0.0
    %752 = vmatprep.subr.mxu0 0.0
    %753 = vmatpush1.msra.mxu0 0.0
    %754 = vmatprep.subr.mxu0 0.0
    %755 = vmatpush1.msra.mxu0 0.0
    %756 = vmatprep.subr.mxu0 0.0
    %757 = vmatpush1.msra.mxu0 0.0
    %758 = vmatprep.subr.mxu0 0.0
    %759 = vmatpush1.msra.mxu0 0.0
    %760 = vmatprep.subr.mxu0 0.0
    %761 = vmatpush1.msra.mxu0 0.0
    %762 = vmatprep.subr.mxu0 0.0
    %763 = vmatpush1.msra.mxu0 0.0
    %764 = vmatprep.subr.mxu0 0.0
    %765 = vmatpush1.msra.mxu0 0.0
    %766 = vmatprep.subr.mxu0 0.0
    %767 = vmatpush1.msra.mxu0 0.0
    %768 = vmatprep.subr.mxu0 0.0
    %769 = vmatpush1.msra.mxu0 0.0
    %770 = vmatprep.subr.mxu0 0.0
    %771 = vmatpush1.msra.mxu0 0.0
    %772 = vmatprep.subr.mxu0 0.0
    %773 = vmatpush1.msra.mxu0 0.0
    %774 = vmatprep.subr.mxu0 0.0
    %775 = vmatpush1.msra.mxu0 0.0
    %776 = vmatprep.subr.mxu0 0.0
    %777 = vmatpush1.msra.mxu0 0.0
    %778 = vmatprep.subr.mxu0 0.0
    %779 = vmatpush1.msra.mxu0 0.0
    %780 = vmatprep.subr.mxu0 0.0
    %781 = vmatpush1.msra.mxu0 0.0
    %782 = vmatprep.subr.mxu0 0.0
    %783 = vmatpush1.msra.mxu0 0.0
    %784 = vmatprep.subr.mxu0 0.0
    %785 = vmatpush1.msra.mxu0 0.0
    %786 = vmatprep.subr.mxu0 0.0
    %787 = vmatpush1.msra.mxu0 0.0
    %788 = vmatprep.subr.mxu0 0.0
    %789 = vmatpush1.msra.mxu0 0.0
    %790 = vmatprep.subr.mxu0 0.0
    %791 = vmatpush1.msra.mxu0 0.0
    %792 = vmatprep.mubr.f32.mxu0 0.0
    %793 = vmatmul.mubr.f32.gmra.mrb[0].mxu0 %v723
    %v794 = vpop.f32.mrb[0].mxu0
    %v795 = vadd.f32 0.0, %v794
    %v796 = vpop.f32.mrb[0].mxu0
    %797 = vmatprep.mubr.f32.mxu0 0.0
    %798 = vmatmul.mubr.f32.gmra.mrb[0].mxu0 %v726
    %v799 = vpop.f32.mrb[0].mxu0
    %v800 = vadd.f32 0.0, %v799
    %v801 = vpop.f32.mrb[0].mxu0
    %802 = vdwg.mxu0
    %v803 = vmul.f32 %v795, %v616
    %v804 = vmul.f32 %v800, %v616
    %v805 = vadd.f32 %v610, %v803
    %v806 = vadd.f32 %v611, %v804
    %v807 = vld [vmem:[%s2 + $0x2] sm:$0x1]
    %v808 = vlaneseq
    %v809 = vshrl.u32 %v808, 7
    %v810 = vsub.s32 0, %v809
    %v811 = vrot.slane %v807, %v810
    %v812 = vmul.f32 %v245, %v811
    %v813 = vmul.f32 %v250, %v811
    %v815 = vsel %vm171, %v812, 0
    %v818 = vsel %vm171, %v813, 0
    %820 = vmatprep.subr.mxu0 0.0
    %821 = vmatpush1.xpose.msra.mxu0 %v425
    %822 = vmatprep.subr.mxu0 0.0
    %823 = vmatpush1.xpose.msra.mxu0 %v428
    %824 = vmatprep.subr.mxu0 0.0
    %825 = vmatpush1.xpose.msra.mxu0 0.0
    %826 = vmatprep.subr.mxu0 0.0
    %827 = vmatpush1.xpose.msra.mxu0 0.0
    %828 = vmatprep.subr.mxu0 0.0
    %829 = vmatpush1.xpose.msra.mxu0 0.0
    %830 = vmatprep.subr.mxu0 0.0
    %831 = vmatpush1.xpose.msra.mxu0 0.0
    %832 = vmatprep.subr.mxu0 0.0
    %833 = vmatpush1.xpose.msra.mxu0 0.0
    %834 = vmatprep.subr.mxu0 0.0
    %835 = vmatpush1.xpose.msra.mxu0 0.0
    %836 = vmatprep.subr.mxu0 0.0
    %837 = vmatpush1.xpose.msra.mxu0 0.0
    %838 = vmatprep.subr.mxu0 0.0
    %839 = vmatpush1.xpose.msra.mxu0 0.0
    %840 = vmatprep.subr.mxu0 0.0
    %841 = vmatpush1.xpose.msra.mxu0 0.0
    %842 = vmatprep.subr.mxu0 0.0
    %843 = vmatpush1.xpose.msra.mxu0 0.0
    %844 = vmatprep.subr.mxu0 0.0
    %845 = vmatpush1.xpose.msra.mxu0 0.0
    %846 = vmatprep.subr.mxu0 0.0
    %847 = vmatpush1.xpose.msra.mxu0 0.0
    %848 = vmatprep.subr.mxu0 0.0
    %849 = vmatpush1.xpose.msra.mxu0 0.0
    %850 = vmatprep.subr.mxu0 0.0
    %851 = vmatpush1.xpose.msra.mxu0 0.0
    %852 = vmatprep.subr.mxu0 0.0
    %853 = vmatpush1.xpose.msra.mxu0 0.0
    %854 = vmatprep.subr.mxu0 0.0
    %855 = vmatpush1.xpose.msra.mxu0 0.0
    %856 = vmatprep.subr.mxu0 0.0
    %857 = vmatpush1.xpose.msra.mxu0 0.0
    %858 = vmatprep.subr.mxu0 0.0
    %859 = vmatpush1.xpose.msra.mxu0 0.0
    %860 = vmatprep.subr.mxu0 0.0
    %861 = vmatpush1.xpose.msra.mxu0 0.0
    %862 = vmatprep.subr.mxu0 0.0
    %863 = vmatpush1.xpose.msra.mxu0 0.0
    %864 = vmatprep.subr.mxu0 0.0
    %865 = vmatpush1.xpose.msra.mxu0 0.0
    %866 = vmatprep.subr.mxu0 0.0
    %867 = vmatpush1.xpose.msra.mxu0 0.0
    %868 = vmatprep.subr.mxu0 0.0
    %869 = vmatpush1.xpose.msra.mxu0 0.0
    %870 = vmatprep.subr.mxu0 0.0
    %871 = vmatpush1.xpose.msra.mxu0 0.0
    %872 = vmatprep.subr.mxu0 0.0
    %873 = vmatpush1.xpose.msra.mxu0 0.0
    %874 = vmatprep.subr.mxu0 0.0
    %875 = vmatpush1.xpose.msra.mxu0 0.0
    %876 = vmatprep.subr.mxu0 0.0
    %877 = vmatpush1.xpose.msra.mxu0 0.0
    %878 = vmatprep.subr.mxu0 0.0
    %879 = vmatpush1.xpose.msra.mxu0 0.0
    %880 = vmatprep.subr.mxu0 0.0
    %881 = vmatpush1.xpose.msra.mxu0 0.0
    %882 = vmatprep.subr.mxu0 0.0
    %883 = vmatpush1.xpose.msra.mxu0 0.0
    %884 = vmatprep.mubr.f32.mxu0 0.0
    %885 = vmatmul.mubr.f32.gmra.mrb[0].mxu0 %v815
    %v886 = vpop.f32.mrb[0].mxu0
    %v887 = vadd.f32 %v143, %v886
    %v888 = vpop.f32.mrb[0].mxu0
    %889 = vmatprep.mubr.f32.mxu0 0.0
    %890 = vmatmul.mubr.f32.gmra.mrb[0].mxu0 %v818
    %v891 = vpop.f32.mrb[0].mxu0
    %v892 = vadd.f32 %v144, %v891
    %v893 = vpop.f32.mrb[0].mxu0
    %894 = vdwg.mxu0
    %v895 = vsel %vm61, %v887, -inf
    %896 = vmax.xlane.f32.xlu0 %v895
    %v897 = vpop.xlane.xlu0 %896
    %v898 = vsel %vm61, %v892, -inf
    %899 = vmax.xlane.f32.xlu0 %v898
    %v900 = vpop.xlane.xlu0 %899
    %v901 = vsub.f32 %v887, %v897
    %v902 = vsub.f32 %v892, %v900
    %v903 = vmul.f32 %v901, 1.442695
    %v904 = vpow.pop %v903
    %v905 = vmul.f32 %v902, 1.442695
    %v906 = vpow.pop %v905
    %v907 = vsel %vm61, %v904, 0.0
    %908 = vadd.xlane.f32.xlu0 %v907
    %v909 = vpop.xlane.xlu0 %908
    %v910 = vsel %vm61, %v906, 0.0
    %911 = vadd.xlane.f32.xlu0 %v910
    %v912 = vpop.xlane.xlu0 %911
    %v913 = vrcp.pop %v909
    %v914 = vrcp.pop %v912
    %v915 = vmul.f32 %v904, %v913
    %v916 = vmul.f32 %v906, %v914
    %v918 = vsel %vm61, %v915, 0
    %v921 = vsel %vm61, %v916, 0
    %923 = vmatprep.subr.mxu0 0.0
    %924 = vmatpush1.msra.mxu0 %v403
    %925 = vmatprep.subr.mxu0 0.0
    %926 = vmatpush1.msra.mxu0 %v408
    %927 = vmatprep.subr.mxu0 0.0
    %928 = vmatpush1.msra.mxu0 0.0
    %929 = vmatprep.subr.mxu0 0.0
    %930 = vmatpush1.msra.mxu0 0.0
    %931 = vmatprep.subr.mxu0 0.0
    %932 = vmatpush1.msra.mxu0 0.0
    %933 = vmatprep.subr.mxu0 0.0
    %934 = vmatpush1.msra.mxu0 0.0
    %935 = vmatprep.subr.mxu0 0.0
    %936 = vmatpush1.msra.mxu0 0.0
    %937 = vmatprep.subr.mxu0 0.0
    %938 = vmatpush1.msra.mxu0 0.0
    %939 = vmatprep.subr.mxu0 0.0
    %940 = vmatpush1.msra.mxu0 0.0
    %941 = vmatprep.subr.mxu0 0.0
    %942 = vmatpush1.msra.mxu0 0.0
    %943 = vmatprep.subr.mxu0 0.0
    %944 = vmatpush1.msra.mxu0 0.0
    %945 = vmatprep.subr.mxu0 0.0
    %946 = vmatpush1.msra.mxu0 0.0
    %947 = vmatprep.subr.mxu0 0.0
    %948 = vmatpush1.msra.mxu0 0.0
    %949 = vmatprep.subr.mxu0 0.0
    %950 = vmatpush1.msra.mxu0 0.0
    %951 = vmatprep.subr.mxu0 0.0
    %952 = vmatpush1.msra.mxu0 0.0
    %953 = vmatprep.subr.mxu0 0.0
    %954 = vmatpush1.msra.mxu0 0.0
    %955 = vmatprep.subr.mxu0 0.0
    %956 = vmatpush1.msra.mxu0 0.0
    %957 = vmatprep.subr.mxu0 0.0
    %958 = vmatpush1.msra.mxu0 0.0
    %959 = vmatprep.subr.mxu0 0.0
    %960 = vmatpush1.msra.mxu0 0.0
    %961 = vmatprep.subr.mxu0 0.0
    %962 = vmatpush1.msra.mxu0 0.0
    %963 = vmatprep.subr.mxu0 0.0
    %964 = vmatpush1.msra.mxu0 0.0
    %965 = vmatprep.subr.mxu0 0.0
    %966 = vmatpush1.msra.mxu0 0.0
    %967 = vmatprep.subr.mxu0 0.0
    %968 = vmatpush1.msra.mxu0 0.0
    %969 = vmatprep.subr.mxu0 0.0
    %970 = vmatpush1.msra.mxu0 0.0
    %971 = vmatprep.subr.mxu0 0.0
    %972 = vmatpush1.msra.mxu0 0.0
    %973 = vmatprep.subr.mxu0 0.0
    %974 = vmatpush1.msra.mxu0 0.0
    %975 = vmatprep.subr.mxu0 0.0
    %976 = vmatpush1.msra.mxu0 0.0
    %977 = vmatprep.subr.mxu0 0.0
    %978 = vmatpush1.msra.mxu0 0.0
    %979 = vmatprep.subr.mxu0 0.0
    %980 = vmatpush1.msra.mxu0 0.0
    %981 = vmatprep.subr.mxu0 0.0
    %982 = vmatpush1.msra.mxu0 0.0
    %983 = vmatprep.subr.mxu0 0.0
    %984 = vmatpush1.msra.mxu0 0.0
    %985 = vmatprep.subr.mxu0 0.0
    %986 = vmatpush1.msra.mxu0 0.0
    %987 = vmatprep.mubr.f32.mxu0 0.0
    %988 = vmatmul.mubr.f32.gmra.mrb[0].mxu0 %v918
    %v989 = vpop.f32.mrb[0].mxu0
    %v990 = vadd.f32 0.0, %v989
    %v991 = vpop.f32.mrb[0].mxu0
    %992 = vmatprep.mubr.f32.mxu0 0.0
    %993 = vmatmul.mubr.f32.gmra.mrb[0].mxu0 %v921
    %v994 = vpop.f32.mrb[0].mxu0
    %v995 = vadd.f32 0.0, %v994
    %v996 = vpop.f32.mrb[0].mxu0
    %997 = vdwg.mxu0
    %v998 = vmul.f32 %v990, %v811
    %v999 = vmul.f32 %v995, %v811
    %v1000 = vadd.f32 %v805, %v998
    %v1001 = vadd.f32 %v806, %v999
    %v1002 = vld [vmem:[%s2 + $0x3] sm:$0x1]
    %v1003 = vlaneseq
    %v1004 = vshrl.u32 %v1003, 7
    %v1005 = vsub.s32 0, %v1004
    %v1006 = vrot.slane %v1002, %v1005
    %v1007 = vmul.f32 %v245, %v1006
    %v1008 = vmul.f32 %v250, %v1006
    %v1010 = vsel %vm171, %v1007, 0
    %v1013 = vsel %vm171, %v1008, 0
    %1015 = vmatprep.subr.mxu0 0.0
    %1016 = vmatpush1.xpose.msra.mxu0 %v425
    %1017 = vmatprep.subr.mxu0 0.0
    %1018 = vmatpush1.xpose.msra.mxu0 %v428
    %1019 = vmatprep.subr.mxu0 0.0
    %1020 = vmatpush1.xpose.msra.mxu0 0.0
    %1021 = vmatprep.subr.mxu0 0.0
    %1022 = vmatpush1.xpose.msra.mxu0 0.0
    %1023 = vmatprep.subr.mxu0 0.0
    %1024 = vmatpush1.xpose.msra.mxu0 0.0
    %1025 = vmatprep.subr.mxu0 0.0
    %1026 = vmatpush1.xpose.msra.mxu0 0.0
    %1027 = vmatprep.subr.mxu0 0.0
    %1028 = vmatpush1.xpose.msra.mxu0 0.0
    %1029 = vmatprep.subr.mxu0 0.0
    %1030 = vmatpush1.xpose.msra.mxu0 0.0
    %1031 = vmatprep.subr.mxu0 0.0
    %1032 = vmatpush1.xpose.msra.mxu0 0.0
    %1033 = vmatprep.subr.mxu0 0.0
    %1034 = vmatpush1.xpose.msra.mxu0 0.0
    %1035 = vmatprep.subr.mxu0 0.0
    %1036 = vmatpush1.xpose.msra.mxu0 0.0
    %1037 = vmatprep.subr.mxu0 0.0
    %1038 = vmatpush1.xpose.msra.mxu0 0.0
    %1039 = vmatprep.subr.mxu0 0.0
    %1040 = vmatpush1.xpose.msra.mxu0 0.0
    %1041 = vmatprep.subr.mxu0 0.0
    %1042 = vmatpush1.xpose.msra.mxu0 0.0
    %1043 = vmatprep.subr.mxu0 0.0
    %1044 = vmatpush1.xpose.msra.mxu0 0.0
    %1045 = vmatprep.subr.mxu0 0.0
    %1046 = vmatpush1.xpose.msra.mxu0 0.0
    %1047 = vmatprep.subr.mxu0 0.0
    %1048 = vmatpush1.xpose.msra.mxu0 0.0
    %1049 = vmatprep.subr.mxu0 0.0
    %1050 = vmatpush1.xpose.msra.mxu0 0.0
    %1051 = vmatprep.subr.mxu0 0.0
    %1052 = vmatpush1.xpose.msra.mxu0 0.0
    %1053 = vmatprep.subr.mxu0 0.0
    %1054 = vmatpush1.xpose.msra.mxu0 0.0
    %1055 = vmatprep.subr.mxu0 0.0
    %1056 = vmatpush1.xpose.msra.mxu0 0.0
    %1057 = vmatprep.subr.mxu0 0.0
    %1058 = vmatpush1.xpose.msra.mxu0 0.0
    %1059 = vmatprep.subr.mxu0 0.0
    %1060 = vmatpush1.xpose.msra.mxu0 0.0
    %1061 = vmatprep.subr.mxu0 0.0
    %1062 = vmatpush1.xpose.msra.mxu0 0.0
    %1063 = vmatprep.subr.mxu0 0.0
    %1064 = vmatpush1.xpose.msra.mxu0 0.0
    %1065 = vmatprep.subr.mxu0 0.0
    %1066 = vmatpush1.xpose.msra.mxu0 0.0
    %1067 = vmatprep.subr.mxu0 0.0
    %1068 = vmatpush1.xpose.msra.mxu0 0.0
    %1069 = vmatprep.subr.mxu0 0.0
    %1070 = vmatpush1.xpose.msra.mxu0 0.0
    %1071 = vmatprep.subr.mxu0 0.0
    %1072 = vmatpush1.xpose.msra.mxu0 0.0
    %1073 = vmatprep.subr.mxu0 0.0
    %1074 = vmatpush1.xpose.msra.mxu0 0.0
    %1075 = vmatprep.subr.mxu0 0.0
    %1076 = vmatpush1.xpose.msra.mxu0 0.0
    %1077 = vmatprep.subr.mxu0 0.0
    %1078 = vmatpush1.xpose.msra.mxu0 0.0
    %1079 = vmatprep.mubr.f32.mxu0 0.0
    %1080 = vmatmul.mubr.f32.gmra.mrb[0].mxu0 %v1010
    %v1081 = vpop.f32.mrb[0].mxu0
    %v1082 = vadd.f32 %v143, %v1081
    %v1083 = vpop.f32.mrb[0].mxu0
    %1084 = vmatprep.mubr.f32.mxu0 0.0
    %1085 = vmatmul.mubr.f32.gmra.mrb[0].mxu0 %v1013
    %v1086 = vpop.f32.mrb[0].mxu0
    %v1087 = vadd.f32 %v144, %v1086
    %v1088 = vpop.f32.mrb[0].mxu0
    %1089 = vdwg.mxu0
    %v1090 = vsel %vm61, %v1082, -inf
    %1091 = vmax.xlane.f32.xlu0 %v1090
    %v1092 = vpop.xlane.xlu0 %1091
    %v1093 = vsel %vm61, %v1087, -inf
    %1094 = vmax.xlane.f32.xlu0 %v1093
    %v1095 = vpop.xlane.xlu0 %1094
    %v1096 = vsub.f32 %v1082, %v1092
    %v1097 = vsub.f32 %v1087, %v1095
    %v1098 = vmul.f32 %v1096, 1.442695
    %v1099 = vpow.pop %v1098
    %v1100 = vmul.f32 %v1097, 1.442695
    %v1101 = vpow.pop %v1100
    %v1102 = vsel %vm61, %v1099, 0.0
    %1103 = vadd.xlane.f32.xlu0 %v1102
    %v1104 = vpop.xlane.xlu0 %1103
    %v1105 = vsel %vm61, %v1101, 0.0
    %1106 = vadd.xlane.f32.xlu0 %v1105
    %v1107 = vpop.xlane.xlu0 %1106
    %v1108 = vrcp.pop %v1104
    %v1109 = vrcp.pop %v1107
    %v1110 = vmul.f32 %v1099, %v1108
    %v1111 = vmul.f32 %v1101, %v1109
    %v1113 = vsel %vm61, %v1110, 0
    %v1116 = vsel %vm61, %v1111, 0
    %1118 = vmatprep.subr.mxu0 0.0
    %1119 = vmatpush1.msra.mxu0 %v403
    %1120 = vmatprep.subr.mxu0 0.0
    %1121 = vmatpush1.msra.mxu0 %v408
    %1122 = vmatprep.subr.mxu0 0.0
    %1123 = vmatpush1.msra.mxu0 0.0
    %1124 = vmatprep.subr.mxu0 0.0
    %1125 = vmatpush1.msra.mxu0 0.0
    %1126 = vmatprep.subr.mxu0 0.0
    %1127 = vmatpush1.msra.mxu0 0.0
    %1128 = vmatprep.subr.mxu0 0.0
    %1129 = vmatpush1.msra.mxu0 0.0
    %1130 = vmatprep.subr.mxu0 0.0
    %1131 = vmatpush1.msra.mxu0 0.0
    %1132 = vmatprep.subr.mxu0 0.0
    %1133 = vmatpush1.msra.mxu0 0.0
    %1134 = vmatprep.subr.mxu0 0.0
    %1135 = vmatpush1.msra.mxu0 0.0
    %1136 = vmatprep.subr.mxu0 0.0
    %1137 = vmatpush1.msra.mxu0 0.0
    %1138 = vmatprep.subr.mxu0 0.0
    %1139 = vmatpush1.msra.mxu0 0.0
    %1140 = vmatprep.subr.mxu0 0.0
    %1141 = vmatpush1.msra.mxu0 0.0
    %1142 = vmatprep.subr.mxu0 0.0
    %1143 = vmatpush1.msra.mxu0 0.0
    %1144 = vmatprep.subr.mxu0 0.0
    %1145 = vmatpush1.msra.mxu0 0.0
    %1146 = vmatprep.subr.mxu0 0.0
    %1147 = vmatpush1.msra.mxu0 0.0
    %1148 = vmatprep.subr.mxu0 0.0
    %1149 = vmatpush1.msra.mxu0 0.0
    %1150 = vmatprep.subr.mxu0 0.0
    %1151 = vmatpush1.msra.mxu0 0.0
    %1152 = vmatprep.subr.mxu0 0.0
    %1153 = vmatpush1.msra.mxu0 0.0
    %1154 = vmatprep.subr.mxu0 0.0
    %1155 = vmatpush1.msra.mxu0 0.0
    %1156 = vmatprep.subr.mxu0 0.0
    %1157 = vmatpush1.msra.mxu0 0.0
    %1158 = vmatprep.subr.mxu0 0.0
    %1159 = vmatpush1.msra.mxu0 0.0
    %1160 = vmatprep.subr.mxu0 0.0
    %1161 = vmatpush1.msra.mxu0 0.0
    %1162 = vmatprep.subr.mxu0 0.0
    %1163 = vmatpush1.msra.mxu0 0.0
    %1164 = vmatprep.subr.mxu0 0.0
    %1165 = vmatpush1.msra.mxu0 0.0
    %1166 = vmatprep.subr.mxu0 0.0
    %1167 = vmatpush1.msra.mxu0 0.0
    %1168 = vmatprep.subr.mxu0 0.0
    %1169 = vmatpush1.msra.mxu0 0.0
    %1170 = vmatprep.subr.mxu0 0.0
    %1171 = vmatpush1.msra.mxu0 0.0
    %1172 = vmatprep.subr.mxu0 0.0
    %1173 = vmatpush1.msra.mxu0 0.0
    %1174 = vmatprep.subr.mxu0 0.0
    %1175 = vmatpush1.msra.mxu0 0.0
    %1176 = vmatprep.subr.mxu0 0.0
    %1177 = vmatpush1.msra.mxu0 0.0
    %1178 = vmatprep.subr.mxu0 0.0
    %1179 = vmatpush1.msra.mxu0 0.0
    %1180 = vmatprep.subr.mxu0 0.0
    %1181 = vmatpush1.msra.mxu0 0.0
    %1182 = vmatprep.mubr.f32.mxu0 0.0
    %1183 = vmatmul.mubr.f32.gmra.mrb[0].mxu0 %v1113
    %v1184 = vpop.f32.mrb[0].mxu0
    %v1185 = vadd.f32 0.0, %v1184
    %v1186 = vpop.f32.mrb[0].mxu0
    %1187 = vmatprep.mubr.f32.mxu0 0.0
    %1188 = vmatmul.mubr.f32.gmra.mrb[0].mxu0 %v1116
    %v1189 = vpop.f32.mrb[0].mxu0
    %v1190 = vadd.f32 0.0, %v1189
    %v1191 = vpop.f32.mrb[0].mxu0
    %1192 = vdwg.mxu0
    %v1193 = vmul.f32 %v1185, %v1006
    %v1194 = vmul.f32 %v1190, %v1006
    %v1195 = vadd.f32 %v1000, %v1193
    %v1196 = vadd.f32 %v1001, %v1194
    %v1197 = vlaneseq
    %v1198 = vshrl.u32 %v1197, 7
    %v1199 = vsub.s32 3, %v1198
    %v1200 = vrot.slane %v164, %v1199
    %v1202 = vsel %vm171, %v1195, 0
    %v1205 = vsel %vm171, %v1196, 0
    %1207 = vmatprep.subr.mxu0 0.0
    %1208 = vmatpush1.msra.mxu0 %v160
    %1209 = vmatprep.subr.mxu0 0.0
    %1210 = vmatpush1.msra.mxu0 %v161
    %1211 = vmatprep.subr.mxu0 0.0
    %1212 = vmatpush1.msra.mxu0 %v162
    %1213 = vmatprep.subr.mxu0 0.0
    %1214 = vmatpush1.msra.mxu0 %v163
    %1215 = vmatprep.subr.mxu0 0.0
    %1216 = vmatpush1.msra.mxu0 0.0
    %1217 = vmatprep.subr.mxu0 0.0
    %1218 = vmatpush1.msra.mxu0 0.0
    %1219 = vmatprep.subr.mxu0 0.0
    %1220 = vmatpush1.msra.mxu0 0.0
    %1221 = vmatprep.subr.mxu0 0.0
    %1222 = vmatpush1.msra.mxu0 0.0
    %1223 = vmatprep.subr.mxu0 0.0
    %1224 = vmatpush1.msra.mxu0 0.0
    %1225 = vmatprep.subr.mxu0 0.0
    %1226 = vmatpush1.msra.mxu0 0.0
    %1227 = vmatprep.subr.mxu0 0.0
    %1228 = vmatpush1.msra.mxu0 0.0
    %1229 = vmatprep.subr.mxu0 0.0
    %1230 = vmatpush1.msra.mxu0 0.0
    %1231 = vmatprep.subr.mxu0 0.0
    %1232 = vmatpush1.msra.mxu0 0.0
    %1233 = vmatprep.subr.mxu0 0.0
    %1234 = vmatpush1.msra.mxu0 0.0
    %1235 = vmatprep.subr.mxu0 0.0
    %1236 = vmatpush1.msra.mxu0 0.0
    %1237 = vmatprep.subr.mxu0 0.0
    %1238 = vmatpush1.msra.mxu0 0.0
    %1239 = vmatprep.subr.mxu0 0.0
    %1240 = vmatpush1.msra.mxu0 0.0
    %1241 = vmatprep.subr.mxu0 0.0
    %1242 = vmatpush1.msra.mxu0 0.0
    %1243 = vmatprep.subr.mxu0 0.0
    %1244 = vmatpush1.msra.mxu0 0.0
    %1245 = vmatprep.subr.mxu0 0.0
    %1246 = vmatpush1.msra.mxu0 0.0
    %1247 = vmatprep.subr.mxu0 0.0
    %1248 = vmatpush1.msra.mxu0 0.0
    %1249 = vmatprep.subr.mxu0 0.0
    %1250 = vmatpush1.msra.mxu0 0.0
    %1251 = vmatprep.subr.mxu0 0.0
    %1252 = vmatpush1.msra.mxu0 0.0
    %1253 = vmatprep.subr.mxu0 0.0
    %1254 = vmatpush1.msra.mxu0 0.0
    %1255 = vmatprep.subr.mxu0 0.0
    %1256 = vmatpush1.msra.mxu0 0.0
    %1257 = vmatprep.subr.mxu0 0.0
    %1258 = vmatpush1.msra.mxu0 0.0
    %1259 = vmatprep.subr.mxu0 0.0
    %1260 = vmatpush1.msra.mxu0 0.0
    %1261 = vmatprep.subr.mxu0 0.0
    %1262 = vmatpush1.msra.mxu0 0.0
    %1263 = vmatprep.subr.mxu0 0.0
    %1264 = vmatpush1.msra.mxu0 0.0
    %1265 = vmatprep.subr.mxu0 0.0
    %1266 = vmatpush1.msra.mxu0 0.0
    %1267 = vmatprep.subr.mxu0 0.0
    %1268 = vmatpush1.msra.mxu0 0.0
    %1269 = vmatprep.subr.mxu0 0.0
    %1270 = vmatpush1.msra.mxu0 0.0
    %1271 = vmatprep.mubr.f32.mxu0 0.0
    %1272 = vmatmul.mubr.f32.gmra.mrb[0].mxu0 %v1202
    %v1273 = vpop.f32.mrb[0].mxu0
    %v1274 = vadd.f32 %v1200, %v1273
    %v1275 = vpop.f32.mrb[0].mxu0
    %1276 = vmatprep.mubr.f32.mxu0 0.0
    %1277 = vmatmul.mubr.f32.gmra.mrb[0].mxu0 %v1205
    %v1278 = vpop.f32.mrb[0].mxu0
    %v1279 = vadd.f32 %v1200, %v1278
    %v1280 = vpop.f32.mrb[0].mxu0
    %1281 = vdwg.mxu0
    %v1282 = vadd.f32 %v135, %v1274
    %v1283 = vadd.f32 %v140, %v1279
    %v1284 = vsel %vm171, %v1282, 0.0
    %1285 = vadd.xlane.f32.xlu0 %v1284
    %v1286 = vpop.xlane.xlu0 %1285
    %v1287 = vsel %vm171, %v1283, 0.0
    %1288 = vadd.xlane.f32.xlu0 %v1287
    %v1289 = vpop.xlane.xlu0 %1288
    %v1290 = vrcp.pop 32.0
    %v1291 = vmul.f32 %v1286, %v1290
    %v1292 = vmul.f32 %v1289, %v1290
    %v1293 = vsub.f32 %v1282, %v1291
    %v1294 = vsub.f32 %v1283, %v1292
    %v1295 = vmul.f32 %v1293, %v1293
    %v1296 = vmul.f32 %v1294, %v1294
    %v1297 = vsel %vm171, %v1295, 0.0
    %1298 = vadd.xlane.f32.xlu0 %v1297
    %v1299 = vpop.xlane.xlu0 %1298
    %v1300 = vsel %vm171, %v1296, 0.0
    %1301 = vadd.xlane.f32.xlu0 %v1300
    %v1302 = vpop.xlane.xlu0 %1301
    %v1303 = vmul.f32 %v1299, %v1290
    %v1304 = vmul.f32 %v1302, %v1290
    %v1305 = vadd.f32 %v1303, 1e-05
    %v1306 = vadd.f32 %v1304, 1e-05
    %v1307 = vrsqrt.pop %v1305
    %v1308 = vrsqrt.pop %v1306
    %v1309 = vmul.f32 %v1293, %v1307
    %v1310 = vmul.f32 %v1294, %v1308
    %v1311 = vlaneseq
    %v1312 = vshrl.u32 %v1311, 7
    %v1313 = vsub.s32 5, %v1312
    %v1314 = vrot.slane %v164, %v1313
    %v1315 = vmul.f32 %v1309, %v1314
    %v1316 = vmul.f32 %v1310, %v1314
    %v1317 = vlaneseq
    %v1318 = vshrl.u32 %v1317, 7
    %v1319 = vsub.s32 6, %v1318
    %v1320 = vrot.slane %v164, %v1319
    %v1321 = vadd.f32 %v1315, %v1320
    %v1322 = vadd.f32 %v1316, %v1320
    %v1323 = vld [vmem:[%s6] sm:$0xff]
    %v1324 = vld [vmem:[%s6 + $0x8] sm:$0xff]
    %v1325 = vld [vmem:[%s6 + $0x10] sm:$0xff]
    %v1326 = vld [vmem:[%s6 + $0x18] sm:$0xff]
    %v1328 = vlaneseq
    %v1329 = vshrl.u32 %v1328, 7
    %v1330 = vsub.s32 0, %v1329
    %v1331 = vrot.slane %v166, %v1330
    %v1334 = vsel %vm171, %v1321, 0
    %v1337 = vsel %vm171, %v1322, 0
    %1339 = vmatprep.subr.mxu0 0.0
    %1340 = vmatpush1.msra.mxu0 %v1323
    %1341 = vmatprep.subr.mxu0 0.0
    %1342 = vmatpush1.msra.mxu0 %v1324
    %1343 = vmatprep.subr.mxu0 0.0
    %1344 = vmatpush1.msra.mxu0 %v1325
    %1345 = vmatprep.subr.mxu0 0.0
    %1346 = vmatpush1.msra.mxu0 %v1326
    %1347 = vmatprep.subr.mxu0 0.0
    %1348 = vmatpush1.msra.mxu0 0.0
    %1349 = vmatprep.subr.mxu0 0.0
    %1350 = vmatpush1.msra.mxu0 0.0
    %1351 = vmatprep.subr.mxu0 0.0
    %1352 = vmatpush1.msra.mxu0 0.0
    %1353 = vmatprep.subr.mxu0 0.0
    %1354 = vmatpush1.msra.mxu0 0.0
    %1355 = vmatprep.subr.mxu0 0.0
    %1356 = vmatpush1.msra.mxu0 0.0
    %1357 = vmatprep.subr.mxu0 0.0
    %1358 = vmatpush1.msra.mxu0 0.0
    %1359 = vmatprep.subr.mxu0 0.0
    %1360 = vmatpush1.msra.mxu0 0.0
    %1361 = vmatprep.subr.mxu0 0.0
    %1362 = vmatpush1.msra.mxu0 0.0
    %1363 = vmatprep.subr.mxu0 0.0
    %1364 = vmatpush1.msra.mxu0 0.0
    %1365 = vmatprep.subr.mxu0 0.0
    %1366 = vmatpush1.msra.mxu0 0.0
    %1367 = vmatprep.subr.mxu0 0.0
    %1368 = vmatpush1.msra.mxu0 0.0
    %1369 = vmatprep.subr.mxu0 0.0
    %1370 = vmatpush1.msra.mxu0 0.0
    %1371 = vmatprep.subr.mxu0 0.0
    %1372 = vmatpush1.msra.mxu0 0.0
    %1373 = vmatprep.subr.mxu0 0.0
    %1374 = vmatpush1.msra.mxu0 0.0
    %1375 = vmatprep.subr.mxu0 0.0
    %1376 = vmatpush1.msra.mxu0 0.0
    %1377 = vmatprep.subr.mxu0 0.0
    %1378 = vmatpush1.msra.mxu0 0.0
    %1379 = vmatprep.subr.mxu0 0.0
    %1380 = vmatpush1.msra.mxu0 0.0
    %1381 = vmatprep.subr.mxu0 0.0
    %1382 = vmatpush1.msra.mxu0 0.0
    %1383 = vmatprep.subr.mxu0 0.0
    %1384 = vmatpush1.msra.mxu0 0.0
    %1385 = vmatprep.subr.mxu0 0.0
    %1386 = vmatpush1.msra.mxu0 0.0
    %1387 = vmatprep.subr.mxu0 0.0
    %1388 = vmatpush1.msra.mxu0 0.0
    %1389 = vmatprep.subr.mxu0 0.0
    %1390 = vmatpush1.msra.mxu0 0.0
    %1391 = vmatprep.subr.mxu0 0.0
    %1392 = vmatpush1.msra.mxu0 0.0
    %1393 = vmatprep.subr.mxu0 0.0
    %1394 = vmatpush1.msra.mxu0 0.0
    %1395 = vmatprep.subr.mxu0 0.0
    %1396 = vmatpush1.msra.mxu0 0.0
    %1397 = vmatprep.subr.mxu0 0.0
    %1398 = vmatpush1.msra.mxu0 0.0
    %1399 = vmatprep.subr.mxu0 0.0
    %1400 = vmatpush1.msra.mxu0 0.0
    %1401 = vmatprep.subr.mxu0 0.0
    %1402 = vmatpush1.msra.mxu0 0.0
    %1403 = vmatprep.mubr.f32.mxu0 0.0
    %1404 = vmatmul.mubr.f32.gmra.mrb[0].mxu0 %v1334
    %v1405 = vpop.f32.mrb[0].mxu0
    %v1406 = vadd.f32 %v1331, %v1405
    %v1407 = vpop.f32.mrb[0].mxu0
    %1408 = vmatprep.mubr.f32.mxu0 0.0
    %1409 = vmatmul.mubr.f32.gmra.mrb[0].mxu0 %v1337
    %v1410 = vpop.f32.mrb[0].mxu0
    %v1411 = vadd.f32 %v1331, %v1410
    %v1412 = vpop.f32.mrb[0].mxu0
    %1413 = vdwg.mxu0
    %v1414 = vmax.f32 %v1406, 0.0
    %v1415 = vmax.f32 %v1411, 0.0
    %v1416 = vld [vmem:[%s7] sm:$0xff]
    %v1417 = vld [vmem:[%s7 + $0x8] sm:$0xff]
    %v1418 = vld [vmem:[%s7 + $0x10] sm:$0xff]
    %v1419 = vld [vmem:[%s7 + $0x18] sm:$0xff]
    %v1420 = vld [vmem:[%s7 + $0x20] sm:$0xff]
    %v1421 = vld [vmem:[%s7 + $0x28] sm:$0xff]
    %v1422 = vld [vmem:[%s7 + $0x30] sm:$0xff]
    %v1423 = vld [vmem:[%s7 + $0x38] sm:$0xff]
    %v1424 = vlaneseq
    %v1425 = vshrl.u32 %v1424, 7
    %v1426 = vsub.s32 4, %v1425
    %v1427 = vrot.slane %v164, %v1426
    %vm1428 = vcmask 523264
    %v1430 = vsel %vm1428, %v1414, 0
    %v1433 = vsel %vm1428, %v1415, 0
    %1435 = vmatprep.subr.mxu0 0.0
    %1436 = vmatpush1.msra.mxu0 %v1416
    %1437 = vmatprep.subr.mxu0 0.0
    %1438 = vmatpush1.msra.mxu0 %v1417
    %1439 = vmatprep.subr.mxu0 0.0
    %1440 = vmatpush1.msra.mxu0 %v1418
    %1441 = vmatprep.subr.mxu0 0.0
    %1442 = vmatpush1.msra.mxu0 %v1419
    %1443 = vmatprep.subr.mxu0 0.0
    %1444 = vmatpush1.msra.mxu0 %v1420
    %1445 = vmatprep.subr.mxu0 0.0
    %1446 = vmatpush1.msra.mxu0 %v1421
    %1447 = vmatprep.subr.mxu0 0.0
    %1448 = vmatpush1.msra.mxu0 %v1422
    %1449 = vmatprep.subr.mxu0 0.0
    %1450 = vmatpush1.msra.mxu0 %v1423
    %1451 = vmatprep.subr.mxu0 0.0
    %1452 = vmatpush1.msra.mxu0 0.0
    %1453 = vmatprep.subr.mxu0 0.0
    %1454 = vmatpush1.msra.mxu0 0.0
    %1455 = vmatprep.subr.mxu0 0.0
    %1456 = vmatpush1.msra.mxu0 0.0
    %1457 = vmatprep.subr.mxu0 0.0
    %1458 = vmatpush1.msra.mxu0 0.0
    %1459 = vmatprep.subr.mxu0 0.0
    %1460 = vmatpush1.msra.mxu0 0.0
    %1461 = vmatprep.subr.mxu0 0.0
    %1462 = vmatpush1.msra.mxu0 0.0
    %1463 = vmatprep.subr.mxu0 0.0
    %1464 = vmatpush1.msra.mxu0 0.0
    %1465 = vmatprep.subr.mxu0 0.0
    %1466 = vmatpush1.msra.mxu0 0.0
    %1467 = vmatprep.subr.mxu0 0.0
    %1468 = vmatpush1.msra.mxu0 0.0
    %1469 = vmatprep.subr.mxu0 0.0
    %1470 = vmatpush1.msra.mxu0 0.0
    %1471 = vmatprep.subr.mxu0 0.0
    %1472 = vmatpush1.msra.mxu0 0.0
    %1473 = vmatprep.subr.mxu0 0.0
    %1474 = vmatpush1.msra.mxu0 0.0
    %1475 = vmatprep.subr.mxu0 0.0
    %1476 = vmatpush1.msra.mxu0 0.0
    %1477 = vmatprep.subr.mxu0 0.0
    %1478 = vmatpush1.msra.mxu0 0.0
    %1479 = vmatprep.subr.mxu0 0.0
    %1480 = vmatpush1.msra.mxu0 0.0
    %1481 = vmatprep.subr.mxu0 0.0
    %1482 = vmatpush1.msra.mxu0 0.0
    %1483 = vmatprep.subr.mxu0 0.0
    %1484 = vmatpush1.msra.mxu0 0.0
    %1485 = vmatprep.subr.mxu0 0.0
    %1486 = vmatpush1.msra.mxu0 0.0
    %1487 = vmatprep.subr.mxu0 0.0
    %1488 = vmatpush1.msra.mxu0 0.0
    %1489 = vmatprep.subr.mxu0 0.0
    %1490 = vmatpush1.msra.mxu0 0.0
    %1491 = vmatprep.subr.mxu0 0.0
    %1492 = vmatpush1.msra.mxu0 0.0
    %1493 = vmatprep.subr.mxu0 0.0
    %1494 = vmatpush1.msra.mxu0 0.0
    %1495 = vmatprep.subr.mxu0 0.0
    %1496 = vmatpush1.msra.mxu0 0.0
    %1497 = vmatprep.subr.mxu0 0.0
    %1498 = vmatpush1.msra.mxu0 0.0
    %1499 = vmatprep.mubr.f32.mxu0 0.0
    %1500 = vmatmul.mubr.f32.gmra.mrb[0].mxu0 %v1430
    %v1501 = vpop.f32.mrb[0].mxu0
    %v1502 = vadd.f32 %v1427, %v1501
    %v1503 = vpop.f32.mrb[0].mxu0
    %1504 = vmatprep.mubr.f32.mxu0 0.0
    %1505 = vmatmul.mubr.f32.gmra.mrb[0].mxu0 %v1433
    %v1506 = vpop.f32.mrb[0].mxu0
    %v1507 = vadd.f32 %v1427, %v1506
    %v1508 = vpop.f32.mrb[0].mxu0
    %1509 = vdwg.mxu0
    %v1510 = vadd.f32 %v1321, %v1502
    %v1511 = vadd.f32 %v1322, %v1507
    %v1512 = vsel %vm171, %v1510, 0.0
    %1513 = vadd.xlane.f32.xlu0 %v1512
    %v1514 = vpop.xlane.xlu0 %1513
    %v1515 = vsel %vm171, %v1511, 0.0
    %1516 = vadd.xlane.f32.xlu0 %v1515
    %v1517 = vpop.xlane.xlu0 %1516
    %v1518 = vmul.f32 %v1514, %v1290
    %v1519 = vmul.f32 %v1517, %v1290
    %v1520 = vsub.f32 %v1510, %v1518
    %v1521 = vsub.f32 %v1511, %v1519
    %v1522 = vmul.f32 %v1520, %v1520
    %v1523 = vmul.f32 %v1521, %v1521
    %v1524 = vsel %vm171, %v1522, 0.0
    %1525 = vadd.xlane.f32.xlu0 %v1524
    %v1526 = vpop.xlane.xlu0 %1525
    %v1527 = vsel %vm171, %v1523, 0.0
    %1528 = vadd.xlane.f32.xlu0 %v1527
    %v1529 = vpop.xlane.xlu0 %1528
    %v1530 = vmul.f32 %v1526, %v1290
    %v1531 = vmul.f32 %v1529, %v1290
    %v1532 = vadd.f32 %v1530, 1e-05
    %v1533 = vadd.f32 %v1531, 1e-05
    %v1534 = vrsqrt.pop %v1532
    %v1535 = vrsqrt.pop %v1533
    %v1536 = vmul.f32 %v1520, %v1534
    %v1537 = vmul.f32 %v1521, %v1535
    %v1538 = vlaneseq
    %v1539 = vshrl.u32 %v1538, 7
    %v1540 = vsub.s32 7, %v1539
    %v1541 = vrot.slane %v164, %v1540
    %v1542 = vmul.f32 %v1536, %v1541
    %v1543 = vmul.f32 %v1537, %v1541
    %v1544 = vlaneseq
    %v1545 = vshrl.u32 %v1544, 7
    %v1546 = vsub.s32 0, %v1545
    %v1547 = vrot.slane %v165, %v1546
    %v1548 = vadd.f32 %v1542, %v1547
    %v1549 = vadd.f32 %v1543, %v1547
    %s1550 = scalar_lea.vmem [#allocation2], 128
    %v1551 = vld [vmem:[%s1550] sm:$0xff]
    %v1552 = vld [vmem:[%s1550 + $0x8] sm:$0xff]
    %v1553 = vld [vmem:[%s1550 + $0x10] sm:$0xff]
    %v1554 = vld [vmem:[%s1550 + $0x18] sm:$0xff]
    %s1555 = scalar_lea.vmem [#allocation2], 160
    %v1556 = vld [vmem:[%s1555] sm:$0xff]
    %v1557 = vld [vmem:[%s1555 + $0x8] sm:$0xff]
    %v1558 = vld [vmem:[%s1555 + $0x10] sm:$0xff]
    %v1559 = vld [vmem:[%s1555 + $0x18] sm:$0xff]
    %s1560 = scalar_lea.vmem [#allocation2], 192
    %v1561 = vld [vmem:[%s1560] sm:$0xff]
    %v1562 = vld [vmem:[%s1560 + $0x8] sm:$0xff]
    %v1563 = vld [vmem:[%s1560 + $0x10] sm:$0xff]
    %v1564 = vld [vmem:[%s1560 + $0x18] sm:$0xff]
    %s1565 = scalar_lea.vmem [#allocation2], 224
    %v1566 = vld [vmem:[%s1565] sm:$0xff]
    %v1567 = vld [vmem:[%s1565 + $0x8] sm:$0xff]
    %v1568 = vld [vmem:[%s1565 + $0x10] sm:$0xff]
    %v1569 = vld [vmem:[%s1565 + $0x18] sm:$0xff]
    %s1570 = scalar_lea.vmem %s9, 16
    %v1571 = vld [vmem:[%s1570] sm:$0xff]
    %v1572 = vld [vmem:[%s1570 + $0x8] sm:$0xff]
    %s1573 = scalar_lea.vmem %s8, 1
    %v1574 = vld [vmem:[%s1573] sm:$0x1]
    %v1575 = vlaneseq
    %v1576 = vshrl.u32 %v1575, 7
    %v1577 = vsub.s32 0, %v1576
    %v1578 = vrot.slane %v1571, %v1577
    %v1580 = vsel %vm171, %v1548, 0
    %v1583 = vsel %vm171, %v1549, 0
    %1585 = vmatprep.subr.mxu0 0.0
    %1586 = vmatpush1.msra.mxu0 %v1551
    %1587 = vmatprep.subr.mxu0 0.0
    %1588 = vmatpush1.msra.mxu0 %v1552
    %1589 = vmatprep.subr.mxu0 0.0
    %1590 = vmatpush1.msra.mxu0 %v1553
    %1591 = vmatprep.subr.mxu0 0.0
    %1592 = vmatpush1.msra.mxu0 %v1554
    %1593 = vmatprep.subr.mxu0 0.0
    %1594 = vmatpush1.msra.mxu0 0.0
    %1595 = vmatprep.subr.mxu0 0.0
    %1596 = vmatpush1.msra.mxu0 0.0
    %1597 = vmatprep.subr.mxu0 0.0
    %1598 = vmatpush1.msra.mxu0 0.0
    %1599 = vmatprep.subr.mxu0 0.0
    %1600 = vmatpush1.msra.mxu0 0.0
    %1601 = vmatprep.subr.mxu0 0.0
    %1602 = vmatpush1.msra.mxu0 0.0
    %1603 = vmatprep.subr.mxu0 0.0
    %1604 = vmatpush1.msra.mxu0 0.0
    %1605 = vmatprep.subr.mxu0 0.0
    %1606 = vmatpush1.msra.mxu0 0.0
    %1607 = vmatprep.subr.mxu0 0.0
    %1608 = vmatpush1.msra.mxu0 0.0
    %1609 = vmatprep.subr.mxu0 0.0
    %1610 = vmatpush1.msra.mxu0 0.0
    %1611 = vmatprep.subr.mxu0 0.0
    %1612 = vmatpush1.msra.mxu0 0.0
    %1613 = vmatprep.subr.mxu0 0.0
    %1614 = vmatpush1.msra.mxu0 0.0
    %1615 = vmatprep.subr.mxu0 0.0
    %1616 = vmatpush1.msra.mxu0 0.0
    %1617 = vmatprep.subr.mxu0 0.0
    %1618 = vmatpush1.msra.mxu0 0.0
    %1619 = vmatprep.subr.mxu0 0.0
    %1620 = vmatpush1.msra.mxu0 0.0
    %1621 = vmatprep.subr.mxu0 0.0
    %1622 = vmatpush1.msra.mxu0 0.0
    %1623 = vmatprep.subr.mxu0 0.0
    %1624 = vmatpush1.msra.mxu0 0.0
    %1625 = vmatprep.subr.mxu0 0.0
    %1626 = vmatpush1.msra.mxu0 0.0
    %1627 = vmatprep.subr.mxu0 0.0
    %1628 = vmatpush1.msra.mxu0 0.0
    %1629 = vmatprep.subr.mxu0 0.0
    %1630 = vmatpush1.msra.mxu0 0.0
    %1631 = vmatprep.subr.mxu0 0.0
    %1632 = vmatpush1.msra.mxu0 0.0
    %1633 = vmatprep.subr.mxu0 0.0
    %1634 = vmatpush1.msra.mxu0 0.0
    %1635 = vmatprep.subr.mxu0 0.0
    %1636 = vmatpush1.msra.mxu0 0.0
    %1637 = vmatprep.subr.mxu0 0.0
    %1638 = vmatpush1.msra.mxu0 0.0
    %1639 = vmatprep.subr.mxu0 0.0
    %1640 = vmatpush1.msra.mxu0 0.0
    %1641 = vmatprep.subr.mxu0 0.0
    %1642 = vmatpush1.msra.mxu0 0.0
    %1643 = vmatprep.subr.mxu0 0.0
    %1644 = vmatpush1.msra.mxu0 0.0
    %1645 = vmatprep.subr.mxu0 0.0
    %1646 = vmatpush1.msra.mxu0 0.0
    %1647 = vmatprep.subr.mxu0 0.0
    %1648 = vmatpush1.msra.mxu0 0.0
    %1649 = vmatprep.mubr.f32.mxu0 0.0
    %1650 = vmatmul.mubr.f32.gmra.mrb[0].mxu0 %v1580
    %v1651 = vpop.f32.mrb[0].mxu0
    %v1652 = vadd.f32 %v1578, %v1651
    %v1653 = vpop.f32.mrb[0].mxu0
    %1654 = vmatprep.mubr.f32.mxu0 0.0
    %1655 = vmatmul.mubr.f32.gmra.mrb[0].mxu0 %v1583
    %v1656 = vpop.f32.mrb[0].mxu0
    %v1657 = vadd.f32 %v1578, %v1656
    %v1658 = vpop.f32.mrb[0].mxu0
    %1659 = vdwg.mxu0
    %v1660 = vlaneseq
    %v1661 = vshrl.u32 %v1660, 7
    %v1662 = vsub.s32 1, %v1661
    %v1663 = vrot.slane %v1571, %v1662
    %1664 = vmatprep.subr.mxu0 0.0
    %1665 = vmatpush1.msra.mxu0 %v1556
    %1666 = vmatprep.subr.mxu0 0.0
    %1667 = vmatpush1.msra.mxu0 %v1557
    %1668 = vmatprep.subr.mxu0 0.0
    %1669 = vmatpush1.msra.mxu0 %v1558
    %1670 = vmatprep.subr.mxu0 0.0
    %1671 = vmatpush1.msra.mxu0 %v1559
    %1672 = vmatprep.subr.mxu0 0.0
    %1673 = vmatpush1.msra.mxu0 0.0
    %1674 = vmatprep.subr.mxu0 0.0
    %1675 = vmatpush1.msra.mxu0 0.0
    %1676 = vmatprep.subr.mxu0 0.0
    %1677 = vmatpush1.msra.mxu0 0.0
    %1678 = vmatprep.subr.mxu0 0.0
    %1679 = vmatpush1.msra.mxu0 0.0
    %1680 = vmatprep.subr.mxu0 0.0
    %1681 = vmatpush1.msra.mxu0 0.0
    %1682 = vmatprep.subr.mxu0 0.0
    %1683 = vmatpush1.msra.mxu0 0.0
    %1684 = vmatprep.subr.mxu0 0.0
    %1685 = vmatpush1.msra.mxu0 0.0
    %1686 = vmatprep.subr.mxu0 0.0
    %1687 = vmatpush1.msra.mxu0 0.0
    %1688 = vmatprep.subr.mxu0 0.0
    %1689 = vmatpush1.msra.mxu0 0.0
    %1690 = vmatprep.subr.mxu0 0.0
    %1691 = vmatpush1.msra.mxu0 0.0
    %1692 = vmatprep.subr.mxu0 0.0
    %1693 = vmatpush1.msra.mxu0 0.0
    %1694 = vmatprep.subr.mxu0 0.0
    %1695 = vmatpush1.msra.mxu0 0.0
    %1696 = vmatprep.subr.mxu0 0.0
    %1697 = vmatpush1.msra.mxu0 0.0
    %1698 = vmatprep.subr.mxu0 0.0
    %1699 = vmatpush1.msra.mxu0 0.0
    %1700 = vmatprep.subr.mxu0 0.0
    %1701 = vmatpush1.msra.mxu0 0.0
    %1702 = vmatprep.subr.mxu0 0.0
    %1703 = vmatpush1.msra.mxu0 0.0
    %1704 = vmatprep.subr.mxu0 0.0
    %1705 = vmatpush1.msra.mxu0 0.0
    %1706 = vmatprep.subr.mxu0 0.0
    %1707 = vmatpush1.msra.mxu0 0.0
    %1708 = vmatprep.subr.mxu0 0.0
    %1709 = vmatpush1.msra.mxu0 0.0
    %1710 = vmatprep.subr.mxu0 0.0
    %1711 = vmatpush1.msra.mxu0 0.0
    %1712 = vmatprep.subr.mxu0 0.0
    %1713 = vmatpush1.msra.mxu0 0.0
    %1714 = vmatprep.subr.mxu0 0.0
    %1715 = vmatpush1.msra.mxu0 0.0
    %1716 = vmatprep.subr.mxu0 0.0
    %1717 = vmatpush1.msra.mxu0 0.0
    %1718 = vmatprep.subr.mxu0 0.0
    %1719 = vmatpush1.msra.mxu0 0.0
    %1720 = vmatprep.subr.mxu0 0.0
    %1721 = vmatpush1.msra.mxu0 0.0
    %1722 = vmatprep.subr.mxu0 0.0
    %1723 = vmatpush1.msra.mxu0 0.0
    %1724 = vmatprep.subr.mxu0 0.0
    %1725 = vmatpush1.msra.mxu0 0.0
    %1726 = vmatprep.subr.mxu0 0.0
    %1727 = vmatpush1.msra.mxu0 0.0
    %1728 = vmatprep.mubr.f32.mxu0 0.0
    %1729 = vmatmul.mubr.f32.gmra.mrb[0].mxu0 %v1580
    %v1730 = vpop.f32.mrb[0].mxu0
    %v1731 = vadd.f32 %v1663, %v1730
    %v1732 = vpop.f32.mrb[0].mxu0
    %1733 = vmatprep.mubr.f32.mxu0 0.0
    %1734 = vmatmul.mubr.f32.gmra.mrb[0].mxu0 %v1583
    %v1735 = vpop.f32.mrb[0].mxu0
    %v1736 = vadd.f32 %v1663, %v1735
    %v1737 = vpop.f32.mrb[0].mxu0
    %1738 = vdwg.mxu0
    %v1739 = vlaneseq
    %v1740 = vshrl.u32 %v1739, 7
    %v1741 = vsub.s32 2, %v1740
    %v1742 = vrot.slane %v1571, %v1741
    %1743 = vmatprep.subr.mxu0 0.0
    %1744 = vmatpush1.msra.mxu0 %v1561
    %1745 = vmatprep.subr.mxu0 0.0
    %1746 = vmatpush1.msra.mxu0 %v1562
    %1747 = vmatprep.subr.mxu0 0.0
    %1748 = vmatpush1.msra.mxu0 %v1563
    %1749 = vmatprep.subr.mxu0 0.0
    %1750 = vmatpush1.msra.mxu0 %v1564
    %1751 = vmatprep.subr.mxu0 0.0
    %1752 = vmatpush1.msra.mxu0 0.0
    %1753 = vmatprep.subr.mxu0 0.0
    %1754 = vmatpush1.msra.mxu0 0.0
    %1755 = vmatprep.subr.mxu0 0.0
    %1756 = vmatpush1.msra.mxu0 0.0
    %1757 = vmatprep.subr.mxu0 0.0
    %1758 = vmatpush1.msra.mxu0 0.0
    %1759 = vmatprep.subr.mxu0 0.0
    %1760 = vmatpush1.msra.mxu0 0.0
    %1761 = vmatprep.subr.mxu0 0.0
    %1762 = vmatpush1.msra.mxu0 0.0
    %1763 = vmatprep.subr.mxu0 0.0
    %1764 = vmatpush1.msra.mxu0 0.0
    %1765 = vmatprep.subr.mxu0 0.0
    %1766 = vmatpush1.msra.mxu0 0.0
    %1767 = vmatprep.subr.mxu0 0.0
    %1768 = vmatpush1.msra.mxu0 0.0
    %1769 = vmatprep.subr.mxu0 0.0
    %1770 = vmatpush1.msra.mxu0 0.0
    %1771 = vmatprep.subr.mxu0 0.0
    %1772 = vmatpush1.msra.mxu0 0.0
    %1773 = vmatprep.subr.mxu0 0.0
    %1774 = vmatpush1.msra.mxu0 0.0
    %1775 = vmatprep.subr.mxu0 0.0
    %1776 = vmatpush1.msra.mxu0 0.0
    %1777 = vmatprep.subr.mxu0 0.0
    %1778 = vmatpush1.msra.mxu0 0.0
    %1779 = vmatprep.subr.mxu0 0.0
    %1780 = vmatpush1.msra.mxu0 0.0
    %1781 = vmatprep.subr.mxu0 0.0
    %1782 = vmatpush1.msra.mxu0 0.0
    %1783 = vmatprep.subr.mxu0 0.0
    %1784 = vmatpush1.msra.mxu0 0.0
    %1785 = vmatprep.subr.mxu0 0.0
    %1786 = vmatpush1.msra.mxu0 0.0
    %1787 = vmatprep.subr.mxu0 0.0
    %1788 = vmatpush1.msra.mxu0 0.0
    %1789 = vmatprep.subr.mxu0 0.0
    %1790 = vmatpush1.msra.mxu0 0.0
    %1791 = vmatprep.subr.mxu0 0.0
    %1792 = vmatpush1.msra.mxu0 0.0
    %1793 = vmatprep.subr.mxu0 0.0
    %1794 = vmatpush1.msra.mxu0 0.0
    %1795 = vmatprep.subr.mxu0 0.0
    %1796 = vmatpush1.msra.mxu0 0.0
    %1797 = vmatprep.subr.mxu0 0.0
    %1798 = vmatpush1.msra.mxu0 0.0
    %1799 = vmatprep.subr.mxu0 0.0
    %1800 = vmatpush1.msra.mxu0 0.0
    %1801 = vmatprep.subr.mxu0 0.0
    %1802 = vmatpush1.msra.mxu0 0.0
    %1803 = vmatprep.subr.mxu0 0.0
    %1804 = vmatpush1.msra.mxu0 0.0
    %1805 = vmatprep.subr.mxu0 0.0
    %1806 = vmatpush1.msra.mxu0 0.0
    %1807 = vmatprep.mubr.f32.mxu0 0.0
    %1808 = vmatmul.mubr.f32.gmra.mrb[0].mxu0 %v1580
    %v1809 = vpop.f32.mrb[0].mxu0
    %v1810 = vadd.f32 %v1742, %v1809
    %v1811 = vpop.f32.mrb[0].mxu0
    %1812 = vmatprep.mubr.f32.mxu0 0.0
    %1813 = vmatmul.mubr.f32.gmra.mrb[0].mxu0 %v1583
    %v1814 = vpop.f32.mrb[0].mxu0
    %v1815 = vadd.f32 %v1742, %v1814
    %v1816 = vpop.f32.mrb[0].mxu0
    %1817 = vdwg.mxu0
    %v1818 = vmul.f32 %v1652, %v415
    %v1819 = vmul.f32 %v1657, %v415
    %v1821 = vsel %vm171, %v1818, 0
    %v1824 = vsel %vm171, %v1819, 0
    %v1827 = vsel %vm171, %v1731, 0
    %v1830 = vsel %vm171, %v1736, 0
    %1832 = vmatprep.subr.mxu0 0.0
    %1833 = vmatpush1.xpose.msra.mxu0 %v1827
    %1834 = vmatprep.subr.mxu0 0.0
    %1835 = vmatpush1.xpose.msra.mxu0 %v1830
    %1836 = vmatprep.subr.mxu0 0.0
    %1837 = vmatpush1.xpose.msra.mxu0 0.0
    %1838 = vmatprep.subr.mxu0 0.0
    %1839 = vmatpush1.xpose.msra.mxu0 0.0
    %1840 = vmatprep.subr.mxu0 0.0
    %1841 = vmatpush1.xpose.msra.mxu0 0.0
    %1842 = vmatprep.subr.mxu0 0.0
    %1843 = vmatpush1.xpose.msra.mxu0 0.0
    %1844 = vmatprep.subr.mxu0 0.0
    %1845 = vmatpush1.xpose.msra.mxu0 0.0
    %1846 = vmatprep.subr.mxu0 0.0
    %1847 = vmatpush1.xpose.msra.mxu0 0.0
    %1848 = vmatprep.subr.mxu0 0.0
    %1849 = vmatpush1.xpose.msra.mxu0 0.0
    %1850 = vmatprep.subr.mxu0 0.0
    %1851 = vmatpush1.xpose.msra.mxu0 0.0
    %1852 = vmatprep.subr.mxu0 0.0
    %1853 = vmatpush1.xpose.msra.mxu0 0.0
    %1854 = vmatprep.subr.mxu0 0.0
    %1855 = vmatpush1.xpose.msra.mxu0 0.0
    %1856 = vmatprep.subr.mxu0 0.0
    %1857 = vmatpush1.xpose.msra.mxu0 0.0
    %1858 = vmatprep.subr.mxu0 0.0
    %1859 = vmatpush1.xpose.msra.mxu0 0.0
    %1860 = vmatprep.subr.mxu0 0.0
    %1861 = vmatpush1.xpose.msra.mxu0 0.0
    %1862 = vmatprep.subr.mxu0 0.0
    %1863 = vmatpush1.xpose.msra.mxu0 0.0
    %1864 = vmatprep.subr.mxu0 0.0
    %1865 = vmatpush1.xpose.msra.mxu0 0.0
    %1866 = vmatprep.subr.mxu0 0.0
    %1867 = vmatpush1.xpose.msra.mxu0 0.0
    %1868 = vmatprep.subr.mxu0 0.0
    %1869 = vmatpush1.xpose.msra.mxu0 0.0
    %1870 = vmatprep.subr.mxu0 0.0
    %1871 = vmatpush1.xpose.msra.mxu0 0.0
    %1872 = vmatprep.subr.mxu0 0.0
    %1873 = vmatpush1.xpose.msra.mxu0 0.0
    %1874 = vmatprep.subr.mxu0 0.0
    %1875 = vmatpush1.xpose.msra.mxu0 0.0
    %1876 = vmatprep.subr.mxu0 0.0
    %1877 = vmatpush1.xpose.msra.mxu0 0.0
    %1878 = vmatprep.subr.mxu0 0.0
    %1879 = vmatpush1.xpose.msra.mxu0 0.0
    %1880 = vmatprep.subr.mxu0 0.0
    %1881 = vmatpush1.xpose.msra.mxu0 0.0
    %1882 = vmatprep.subr.mxu0 0.0
    %1883 = vmatpush1.xpose.msra.mxu0 0.0
    %1884 = vmatprep.subr.mxu0 0.0
    %1885 = vmatpush1.xpose.msra.mxu0 0.0
    %1886 = vmatprep.subr.mxu0 0.0
    %1887 = vmatpush1.xpose.msra.mxu0 0.0
    %1888 = vmatprep.subr.mxu0 0.0
    %1889 = vmatpush1.xpose.msra.mxu0 0.0
    %1890 = vmatprep.subr.mxu0 0.0
    %1891 = vmatpush1.xpose.msra.mxu0 0.0
    %1892 = vmatprep.subr.mxu0 0.0
    %1893 = vmatpush1.xpose.msra.mxu0 0.0
    %1894 = vmatprep.subr.mxu0 0.0
    %1895 = vmatpush1.xpose.msra.mxu0 0.0
    %1896 = vmatprep.mubr.f32.mxu0 0.0
    %1897 = vmatmul.mubr.f32.gmra.mrb[0].mxu0 %v1821
    %v1898 = vpop.f32.mrb[0].mxu0
    %v1899 = vadd.f32 %v143, %v1898
    %v1900 = vpop.f32.mrb[0].mxu0
    %1901 = vmatprep.mubr.f32.mxu0 0.0
    %1902 = vmatmul.mubr.f32.gmra.mrb[0].mxu0 %v1824
    %v1903 = vpop.f32.mrb[0].mxu0
    %v1904 = vadd.f32 %v144, %v1903
    %v1905 = vpop.f32.mrb[0].mxu0
    %1906 = vdwg.mxu0
    %v1907 = vsel %vm61, %v1899, -inf
    %1908 = vmax.xlane.f32.xlu0 %v1907
    %v1909 = vpop.xlane.xlu0 %1908
    %v1910 = vsel %vm61, %v1904, -inf
    %1911 = vmax.xlane.f32.xlu0 %v1910
    %v1912 = vpop.xlane.xlu0 %1911
    %v1913 = vsub.f32 %v1899, %v1909
    %v1914 = vsub.f32 %v1904, %v1912
    %v1915 = vmul.f32 %v1913, 1.442695
    %v1916 = vpow.pop %v1915
    %v1917 = vmul.f32 %v1914, 1.442695
    %v1918 = vpow.pop %v1917
    %v1919 = vsel %vm61, %v1916, 0.0
    %1920 = vadd.xlane.f32.xlu0 %v1919
    %v1921 = vpop.xlane.xlu0 %1920
    %v1922 = vsel %vm61, %v1918, 0.0
    %1923 = vadd.xlane.f32.xlu0 %v1922
    %v1924 = vpop.xlane.xlu0 %1923
    %v1925 = vrcp.pop %v1921
    %v1926 = vrcp.pop %v1924
    %v1927 = vmul.f32 %v1916, %v1925
    %v1928 = vmul.f32 %v1918, %v1926
    %v1930 = vsel %vm61, %v1927, 0
    %v1933 = vsel %vm61, %v1928, 0
    %1935 = vmatprep.subr.mxu0 0.0
    %1936 = vmatpush1.msra.mxu0 %v1810
    %1937 = vmatprep.subr.mxu0 0.0
    %1938 = vmatpush1.msra.mxu0 %v1815
    %1939 = vmatprep.subr.mxu0 0.0
    %1940 = vmatpush1.msra.mxu0 0.0
    %1941 = vmatprep.subr.mxu0 0.0
    %1942 = vmatpush1.msra.mxu0 0.0
    %1943 = vmatprep.subr.mxu0 0.0
    %1944 = vmatpush1.msra.mxu0 0.0
    %1945 = vmatprep.subr.mxu0 0.0
    %1946 = vmatpush1.msra.mxu0 0.0
    %1947 = vmatprep.subr.mxu0 0.0
    %1948 = vmatpush1.msra.mxu0 0.0
    %1949 = vmatprep.subr.mxu0 0.0
    %1950 = vmatpush1.msra.mxu0 0.0
    %1951 = vmatprep.subr.mxu0 0.0
    %1952 = vmatpush1.msra.mxu0 0.0
    %1953 = vmatprep.subr.mxu0 0.0
    %1954 = vmatpush1.msra.mxu0 0.0
    %1955 = vmatprep.subr.mxu0 0.0
    %1956 = vmatpush1.msra.mxu0 0.0
    %1957 = vmatprep.subr.mxu0 0.0
    %1958 = vmatpush1.msra.mxu0 0.0
    %1959 = vmatprep.subr.mxu0 0.0
    %1960 = vmatpush1.msra.mxu0 0.0
    %1961 = vmatprep.subr.mxu0 0.0
    %1962 = vmatpush1.msra.mxu0 0.0
    %1963 = vmatprep.subr.mxu0 0.0
    %1964 = vmatpush1.msra.mxu0 0.0
    %1965 = vmatprep.subr.mxu0 0.0
    %1966 = vmatpush1.msra.mxu0 0.0
    %1967 = vmatprep.subr.mxu0 0.0
    %1968 = vmatpush1.msra.mxu0 0.0
    %1969 = vmatprep.subr.mxu0 0.0
    %1970 = vmatpush1.msra.mxu0 0.0
    %1971 = vmatprep.subr.mxu0 0.0
    %1972 = vmatpush1.msra.mxu0 0.0
    %1973 = vmatprep.subr.mxu0 0.0
    %1974 = vmatpush1.msra.mxu0 0.0
    %1975 = vmatprep.subr.mxu0 0.0
    %1976 = vmatpush1.msra.mxu0 0.0
    %1977 = vmatprep.subr.mxu0 0.0
    %1978 = vmatpush1.msra.mxu0 0.0
    %1979 = vmatprep.subr.mxu0 0.0
    %1980 = vmatpush1.msra.mxu0 0.0
    %1981 = vmatprep.subr.mxu0 0.0
    %1982 = vmatpush1.msra.mxu0 0.0
    %1983 = vmatprep.subr.mxu0 0.0
    %1984 = vmatpush1.msra.mxu0 0.0
    %1985 = vmatprep.subr.mxu0 0.0
    %1986 = vmatpush1.msra.mxu0 0.0
    %1987 = vmatprep.subr.mxu0 0.0
    %1988 = vmatpush1.msra.mxu0 0.0
    %1989 = vmatprep.subr.mxu0 0.0
    %1990 = vmatpush1.msra.mxu0 0.0
    %1991 = vmatprep.subr.mxu0 0.0
    %1992 = vmatpush1.msra.mxu0 0.0
    %1993 = vmatprep.subr.mxu0 0.0
    %1994 = vmatpush1.msra.mxu0 0.0
    %1995 = vmatprep.subr.mxu0 0.0
    %1996 = vmatpush1.msra.mxu0 0.0
    %1997 = vmatprep.subr.mxu0 0.0
    %1998 = vmatpush1.msra.mxu0 0.0
    %1999 = vmatprep.mubr.f32.mxu0 0.0
    %2000 = vmatmul.mubr.f32.gmra.mrb[0].mxu0 %v1930
    %v2001 = vpop.f32.mrb[0].mxu0
    %v2002 = vadd.f32 0.0, %v2001
    %v2003 = vpop.f32.mrb[0].mxu0
    %2004 = vmatprep.mubr.f32.mxu0 0.0
    %2005 = vmatmul.mubr.f32.gmra.mrb[0].mxu0 %v1933
    %v2006 = vpop.f32.mrb[0].mxu0
    %v2007 = vadd.f32 0.0, %v2006
    %v2008 = vpop.f32.mrb[0].mxu0
    %2009 = vdwg.mxu0
    %v2010 = vmul.f32 %v2002, %v415
    %v2011 = vmul.f32 %v2007, %v415
    %v2012 = vadd.f32 %v2010, 0.0
    %v2013 = vadd.f32 %v2011, 0.0
    %v2014 = vmul.f32 %v1652, %v616
    %v2015 = vmul.f32 %v1657, %v616
    %v2017 = vsel %vm171, %v2014, 0
    %v2020 = vsel %vm171, %v2015, 0
    %2022 = vmatprep.subr.mxu0 0.0
    %2023 = vmatpush1.xpose.msra.mxu0 %v1827
    %2024 = vmatprep.subr.mxu0 0.0
    %2025 = vmatpush1.xpose.msra.mxu0 %v1830
    %2026 = vmatprep.subr.mxu0 0.0
    %2027 = vmatpush1.xpose.msra.mxu0 0.0
    %2028 = vmatprep.subr.mxu0 0.0
    %2029 = vmatpush1.xpose.msra.mxu0 0.0
    %2030 = vmatprep.subr.mxu0 0.0
    %2031 = vmatpush1.xpose.msra.mxu0 0.0
    %2032 = vmatprep.subr.mxu0 0.0
    %2033 = vmatpush1.xpose.msra.mxu0 0.0
    %2034 = vmatprep.subr.mxu0 0.0
    %2035 = vmatpush1.xpose.msra.mxu0 0.0
    %2036 = vmatprep.subr.mxu0 0.0
    %2037 = vmatpush1.xpose.msra.mxu0 0.0
    %2038 = vmatprep.subr.mxu0 0.0
    %2039 = vmatpush1.xpose.msra.mxu0 0.0
    %2040 = vmatprep.subr.mxu0 0.0
    %2041 = vmatpush1.xpose.msra.mxu0 0.0
    %2042 = vmatprep.subr.mxu0 0.0
    %2043 = vmatpush1.xpose.msra.mxu0 0.0
    %2044 = vmatprep.subr.mxu0 0.0
    %2045 = vmatpush1.xpose.msra.mxu0 0.0
    %2046 = vmatprep.subr.mxu0 0.0
    %2047 = vmatpush1.xpose.msra.mxu0 0.0
    %2048 = vmatprep.subr.mxu0 0.0
    %2049 = vmatpush1.xpose.msra.mxu0 0.0
    %2050 = vmatprep.subr.mxu0 0.0
    %2051 = vmatpush1.xpose.msra.mxu0 0.0
    %2052 = vmatprep.subr.mxu0 0.0
    %2053 = vmatpush1.xpose.msra.mxu0 0.0
    %2054 = vmatprep.subr.mxu0 0.0
    %2055 = vmatpush1.xpose.msra.mxu0 0.0
    %2056 = vmatprep.subr.mxu0 0.0
    %2057 = vmatpush1.xpose.msra.mxu0 0.0
    %2058 = vmatprep.subr.mxu0 0.0
    %2059 = vmatpush1.xpose.msra.mxu0 0.0
    %2060 = vmatprep.subr.mxu0 0.0
    %2061 = vmatpush1.xpose.msra.mxu0 0.0
    %2062 = vmatprep.subr.mxu0 0.0
    %2063 = vmatpush1.xpose.msra.mxu0 0.0
    %2064 = vmatprep.subr.mxu0 0.0
    %2065 = vmatpush1.xpose.msra.mxu0 0.0
    %2066 = vmatprep.subr.mxu0 0.0
    %2067 = vmatpush1.xpose.msra.mxu0 0.0
    %2068 = vmatprep.subr.mxu0 0.0
    %2069 = vmatpush1.xpose.msra.mxu0 0.0
    %2070 = vmatprep.subr.mxu0 0.0
    %2071 = vmatpush1.xpose.msra.mxu0 0.0
    %2072 = vmatprep.subr.mxu0 0.0
    %2073 = vmatpush1.xpose.msra.mxu0 0.0
    %2074 = vmatprep.subr.mxu0 0.0
    %2075 = vmatpush1.xpose.msra.mxu0 0.0
    %2076 = vmatprep.subr.mxu0 0.0
    %2077 = vmatpush1.xpose.msra.mxu0 0.0
    %2078 = vmatprep.subr.mxu0 0.0
    %2079 = vmatpush1.xpose.msra.mxu0 0.0
    %2080 = vmatprep.subr.mxu0 0.0
    %2081 = vmatpush1.xpose.msra.mxu0 0.0
    %2082 = vmatprep.subr.mxu0 0.0
    %2083 = vmatpush1.xpose.msra.mxu0 0.0
    %2084 = vmatprep.subr.mxu0 0.0
    %2085 = vmatpush1.xpose.msra.mxu0 0.0
    %2086 = vmatprep.mubr.f32.mxu0 0.0
    %2087 = vmatmul.mubr.f32.gmra.mrb[0].mxu0 %v2017
    %v2088 = vpop.f32.mrb[0].mxu0
    %v2089 = vadd.f32 %v143, %v2088
    %v2090 = vpop.f32.mrb[0].mxu0
    %2091 = vmatprep.mubr.f32.mxu0 0.0
    %2092 = vmatmul.mubr.f32.gmra.mrb[0].mxu0 %v2020
    %v2093 = vpop.f32.mrb[0].mxu0
    %v2094 = vadd.f32 %v144, %v2093
    %v2095 = vpop.f32.mrb[0].mxu0
    %2096 = vdwg.mxu0
    %v2097 = vsel %vm61, %v2089, -inf
    %2098 = vmax.xlane.f32.xlu0 %v2097
    %v2099 = vpop.xlane.xlu0 %2098
    %v2100 = vsel %vm61, %v2094, -inf
    %2101 = vmax.xlane.f32.xlu0 %v2100
    %v2102 = vpop.xlane.xlu0 %2101
    %v2103 = vsub.f32 %v2089, %v2099
    %v2104 = vsub.f32 %v2094, %v2102
    %v2105 = vmul.f32 %v2103, 1.442695
    %v2106 = vpow.pop %v2105
    %v2107 = vmul.f32 %v2104, 1.442695
    %v2108 = vpow.pop %v2107
    %v2109 = vsel %vm61, %v2106, 0.0
    %2110 = vadd.xlane.f32.xlu0 %v2109
    %v2111 = vpop.xlane.xlu0 %2110
    %v2112 = vsel %vm61, %v2108, 0.0
    %2113 = vadd.xlane.f32.xlu0 %v2112
    %v2114 = vpop.xlane.xlu0 %2113
    %v2115 = vrcp.pop %v2111
    %v2116 = vrcp.pop %v2114
    %v2117 = vmul.f32 %v2106, %v2115
    %v2118 = vmul.f32 %v2108, %v2116
    %v2120 = vsel %vm61, %v2117, 0
    %v2123 = vsel %vm61, %v2118, 0
    %2125 = vmatprep.subr.mxu0 0.0
    %2126 = vmatpush1.msra.mxu0 %v1810
    %2127 = vmatprep.subr.mxu0 0.0
    %2128 = vmatpush1.msra.mxu0 %v1815
    %2129 = vmatprep.subr.mxu0 0.0
    %2130 = vmatpush1.msra.mxu0 0.0
    %2131 = vmatprep.subr.mxu0 0.0
    %2132 = vmatpush1.msra.mxu0 0.0
    %2133 = vmatprep.subr.mxu0 0.0
    %2134 = vmatpush1.msra.mxu0 0.0
    %2135 = vmatprep.subr.mxu0 0.0
    %2136 = vmatpush1.msra.mxu0 0.0
    %2137 = vmatprep.subr.mxu0 0.0
    %2138 = vmatpush1.msra.mxu0 0.0
    %2139 = vmatprep.subr.mxu0 0.0
    %2140 = vmatpush1.msra.mxu0 0.0
    %2141 = vmatprep.subr.mxu0 0.0
    %2142 = vmatpush1.msra.mxu0 0.0
    %2143 = vmatprep.subr.mxu0 0.0
    %2144 = vmatpush1.msra.mxu0 0.0
    %2145 = vmatprep.subr.mxu0 0.0
    %2146 = vmatpush1.msra.mxu0 0.0
    %2147 = vmatprep.subr.mxu0 0.0
    %2148 = vmatpush1.msra.mxu0 0.0
    %2149 = vmatprep.subr.mxu0 0.0
    %2150 = vmatpush1.msra.mxu0 0.0
    %2151 = vmatprep.subr.mxu0 0.0
    %2152 = vmatpush1.msra.mxu0 0.0
    %2153 = vmatprep.subr.mxu0 0.0
    %2154 = vmatpush1.msra.mxu0 0.0
    %2155 = vmatprep.subr.mxu0 0.0
    %2156 = vmatpush1.msra.mxu0 0.0
    %2157 = vmatprep.subr.mxu0 0.0
    %2158 = vmatpush1.msra.mxu0 0.0
    %2159 = vmatprep.subr.mxu0 0.0
    %2160 = vmatpush1.msra.mxu0 0.0
    %2161 = vmatprep.subr.mxu0 0.0
    %2162 = vmatpush1.msra.mxu0 0.0
    %2163 = vmatprep.subr.mxu0 0.0
    %2164 = vmatpush1.msra.mxu0 0.0
    %2165 = vmatprep.subr.mxu0 0.0
    %2166 = vmatpush1.msra.mxu0 0.0
    %2167 = vmatprep.subr.mxu0 0.0
    %2168 = vmatpush1.msra.mxu0 0.0
    %2169 = vmatprep.subr.mxu0 0.0
    %2170 = vmatpush1.msra.mxu0 0.0
    %2171 = vmatprep.subr.mxu0 0.0
    %2172 = vmatpush1.msra.mxu0 0.0
    %2173 = vmatprep.subr.mxu0 0.0
    %2174 = vmatpush1.msra.mxu0 0.0
    %2175 = vmatprep.subr.mxu0 0.0
    %2176 = vmatpush1.msra.mxu0 0.0
    %2177 = vmatprep.subr.mxu0 0.0
    %2178 = vmatpush1.msra.mxu0 0.0
    %2179 = vmatprep.subr.mxu0 0.0
    %2180 = vmatpush1.msra.mxu0 0.0
    %2181 = vmatprep.subr.mxu0 0.0
    %2182 = vmatpush1.msra.mxu0 0.0
    %2183 = vmatprep.subr.mxu0 0.0
    %2184 = vmatpush1.msra.mxu0 0.0
    %2185 = vmatprep.subr.mxu0 0.0
    %2186 = vmatpush1.msra.mxu0 0.0
    %2187 = vmatprep.subr.mxu0 0.0
    %2188 = vmatpush1.msra.mxu0 0.0
    %2189 = vmatprep.mubr.f32.mxu0 0.0
    %2190 = vmatmul.mubr.f32.gmra.mrb[0].mxu0 %v2120
    %v2191 = vpop.f32.mrb[0].mxu0
    %v2192 = vadd.f32 0.0, %v2191
    %v2193 = vpop.f32.mrb[0].mxu0
    %2194 = vmatprep.mubr.f32.mxu0 0.0
    %2195 = vmatmul.mubr.f32.gmra.mrb[0].mxu0 %v2123
    %v2196 = vpop.f32.mrb[0].mxu0
    %v2197 = vadd.f32 0.0, %v2196
    %v2198 = vpop.f32.mrb[0].mxu0
    %2199 = vdwg.mxu0
    %v2200 = vmul.f32 %v2192, %v616
    %v2201 = vmul.f32 %v2197, %v616
    %v2202 = vadd.f32 %v2012, %v2200
    %v2203 = vadd.f32 %v2013, %v2201
    %v2204 = vmul.f32 %v1652, %v811
    %v2205 = vmul.f32 %v1657, %v811
    %v2207 = vsel %vm171, %v2204, 0
    %v2210 = vsel %vm171, %v2205, 0
    %2212 = vmatprep.subr.mxu0 0.0
    %2213 = vmatpush1.xpose.msra.mxu0 %v1827
    %2214 = vmatprep.subr.mxu0 0.0
    %2215 = vmatpush1.xpose.msra.mxu0 %v1830
    %2216 = vmatprep.subr.mxu0 0.0
    %2217 = vmatpush1.xpose.msra.mxu0 0.0
    %2218 = vmatprep.subr.mxu0 0.0
    %2219 = vmatpush1.xpose.msra.mxu0 0.0
    %2220 = vmatprep.subr.mxu0 0.0
    %2221 = vmatpush1.xpose.msra.mxu0 0.0
    %2222 = vmatprep.subr.mxu0 0.0
    %2223 = vmatpush1.xpose.msra.mxu0 0.0
    %2224 = vmatprep.subr.mxu0 0.0
    %2225 = vmatpush1.xpose.msra.mxu0 0.0
    %2226 = vmatprep.subr.mxu0 0.0
    %2227 = vmatpush1.xpose.msra.mxu0 0.0
    %2228 = vmatprep.subr.mxu0 0.0
    %2229 = vmatpush1.xpose.msra.mxu0 0.0
    %2230 = vmatprep.subr.mxu0 0.0
    %2231 = vmatpush1.xpose.msra.mxu0 0.0
    %2232 = vmatprep.subr.mxu0 0.0
    %2233 = vmatpush1.xpose.msra.mxu0 0.0
    %2234 = vmatprep.subr.mxu0 0.0
    %2235 = vmatpush1.xpose.msra.mxu0 0.0
    %2236 = vmatprep.subr.mxu0 0.0
    %2237 = vmatpush1.xpose.msra.mxu0 0.0
    %2238 = vmatprep.subr.mxu0 0.0
    %2239 = vmatpush1.xpose.msra.mxu0 0.0
    %2240 = vmatprep.subr.mxu0 0.0
    %2241 = vmatpush1.xpose.msra.mxu0 0.0
    %2242 = vmatprep.subr.mxu0 0.0
    %2243 = vmatpush1.xpose.msra.mxu0 0.0
    %2244 = vmatprep.subr.mxu0 0.0
    %2245 = vmatpush1.xpose.msra.mxu0 0.0
    %2246 = vmatprep.subr.mxu0 0.0
    %2247 = vmatpush1.xpose.msra.mxu0 0.0
    %2248 = vmatprep.subr.mxu0 0.0
    %2249 = vmatpush1.xpose.msra.mxu0 0.0
    %2250 = vmatprep.subr.mxu0 0.0
    %2251 = vmatpush1.xpose.msra.mxu0 0.0
    %2252 = vmatprep.subr.mxu0 0.0
    %2253 = vmatpush1.xpose.msra.mxu0 0.0
    %2254 = vmatprep.subr.mxu0 0.0
    %2255 = vmatpush1.xpose.msra.mxu0 0.0
    %2256 = vmatprep.subr.mxu0 0.0
    %2257 = vmatpush1.xpose.msra.mxu0 0.0
    %2258 = vmatprep.subr.mxu0 0.0
    %2259 = vmatpush1.xpose.msra.mxu0 0.0
    %2260 = vmatprep.subr.mxu0 0.0
    %2261 = vmatpush1.xpose.msra.mxu0 0.0
    %2262 = vmatprep.subr.mxu0 0.0
    %2263 = vmatpush1.xpose.msra.mxu0 0.0
    %2264 = vmatprep.subr.mxu0 0.0
    %2265 = vmatpush1.xpose.msra.mxu0 0.0
    %2266 = vmatprep.subr.mxu0 0.0
    %2267 = vmatpush1.xpose.msra.mxu0 0.0
    %2268 = vmatprep.subr.mxu0 0.0
    %2269 = vmatpush1.xpose.msra.mxu0 0.0
    %2270 = vmatprep.subr.mxu0 0.0
    %2271 = vmatpush1.xpose.msra.mxu0 0.0
    %2272 = vmatprep.subr.mxu0 0.0
    %2273 = vmatpush1.xpose.msra.mxu0 0.0
    %2274 = vmatprep.subr.mxu0 0.0
    %2275 = vmatpush1.xpose.msra.mxu0 0.0
    %2276 = vmatprep.mubr.f32.mxu0 0.0
    %2277 = vmatmul.mubr.f32.gmra.mrb[0].mxu0 %v2207
    %v2278 = vpop.f32.mrb[0].mxu0
    %v2279 = vadd.f32 %v143, %v2278
    %v2280 = vpop.f32.mrb[0].mxu0
    %2281 = vmatprep.mubr.f32.mxu0 0.0
    %2282 = vmatmul.mubr.f32.gmra.mrb[0].mxu0 %v2210
    %v2283 = vpop.f32.mrb[0].mxu0
    %v2284 = vadd.f32 %v144, %v2283
    %v2285 = vpop.f32.mrb[0].mxu0
    %2286 = vdwg.mxu0
    %v2287 = vsel %vm61, %v2279, -inf
    %2288 = vmax.xlane.f32.xlu0 %v2287
    %v2289 = vpop.xlane.xlu0 %2288
    %v2290 = vsel %vm61, %v2284, -inf
    %2291 = vmax.xlane.f32.xlu0 %v2290
    %v2292 = vpop.xlane.xlu0 %2291
    %v2293 = vsub.f32 %v2279, %v2289
    %v2294 = vsub.f32 %v2284, %v2292
    %v2295 = vmul.f32 %v2293, 1.442695
    %v2296 = vpow.pop %v2295
    %v2297 = vmul.f32 %v2294, 1.442695
    %v2298 = vpow.pop %v2297
    %v2299 = vsel %vm61, %v2296, 0.0
    %2300 = vadd.xlane.f32.xlu0 %v2299
    %v2301 = vpop.xlane.xlu0 %2300
    %v2302 = vsel %vm61, %v2298, 0.0
    %2303 = vadd.xlane.f32.xlu0 %v2302
    %v2304 = vpop.xlane.xlu0 %2303
    %v2305 = vrcp.pop %v2301
    %v2306 = vrcp.pop %v2304
    %v2307 = vmul.f32 %v2296, %v2305
    %v2308 = vmul.f32 %v2298, %v2306
    %v2310 = vsel %vm61, %v2307, 0
    %v2313 = vsel %vm61, %v2308, 0
    %2315 = vmatprep.subr.mxu0 0.0
    %2316 = vmatpush1.msra.mxu0 %v1810
    %2317 = vmatprep.subr.mxu0 0.0
    %2318 = vmatpush1.msra.mxu0 %v1815
    %2319 = vmatprep.subr.mxu0 0.0
    %2320 = vmatpush1.msra.mxu0 0.0
    %2321 = vmatprep.subr.mxu0 0.0
    %2322 = vmatpush1.msra.mxu0 0.0
    %2323 = vmatprep.subr.mxu0 0.0
    %2324 = vmatpush1.msra.mxu0 0.0
    %2325 = vmatprep.subr.mxu0 0.0
    %2326 = vmatpush1.msra.mxu0 0.0
    %2327 = vmatprep.subr.mxu0 0.0
    %2328 = vmatpush1.msra.mxu0 0.0
    %2329 = vmatprep.subr.mxu0 0.0
    %2330 = vmatpush1.msra.mxu0 0.0
    %2331 = vmatprep.subr.mxu0 0.0
    %2332 = vmatpush1.msra.mxu0 0.0
    %2333 = vmatprep.subr.mxu0 0.0
    %2334 = vmatpush1.msra.mxu0 0.0
    %2335 = vmatprep.subr.mxu0 0.0
    %2336 = vmatpush1.msra.mxu0 0.0
    %2337 = vmatprep.subr.mxu0 0.0
    %2338 = vmatpush1.msra.mxu0 0.0
    %2339 = vmatprep.subr.mxu0 0.0
    %2340 = vmatpush1.msra.mxu0 0.0
    %2341 = vmatprep.subr.mxu0 0.0
    %2342 = vmatpush1.msra.mxu0 0.0
    %2343 = vmatprep.subr.mxu0 0.0
    %2344 = vmatpush1.msra.mxu0 0.0
    %2345 = vmatprep.subr.mxu0 0.0
    %2346 = vmatpush1.msra.mxu0 0.0
    %2347 = vmatprep.subr.mxu0 0.0
    %2348 = vmatpush1.msra.mxu0 0.0
    %2349 = vmatprep.subr.mxu0 0.0
    %2350 = vmatpush1.msra.mxu0 0.0
    %2351 = vmatprep.subr.mxu0 0.0
    %2352 = vmatpush1.msra.mxu0 0.0
    %2353 = vmatprep.subr.mxu0 0.0
    %2354 = vmatpush1.msra.mxu0 0.0
    %2355 = vmatprep.subr.mxu0 0.0
    %2356 = vmatpush1.msra.mxu0 0.0
    %2357 = vmatprep.subr.mxu0 0.0
    %2358 = vmatpush1.msra.mxu0 0.0
    %2359 = vmatprep.subr.mxu0 0.0
    %2360 = vmatpush1.msra.mxu0 0.0
    %2361 = vmatprep.subr.mxu0 0.0
    %2362 = vmatpush1.msra.mxu0 0.0
    %2363 = vmatprep.subr.mxu0 0.0
    %2364 = vmatpush1.msra.mxu0 0.0
    %2365 = vmatprep.subr.mxu0 0.0
    %2366 = vmatpush1.msra.mxu0 0.0
    %2367 = vmatprep.subr.mxu0 0.0
    %2368 = vmatpush1.msra.mxu0 0.0
    %2369 = vmatprep.subr.mxu0 0.0
    %2370 = vmatpush1.msra.mxu0 0.0
    %2371 = vmatprep.subr.mxu0 0.0
    %2372 = vmatpush1.msra.mxu0 0.0
    %2373 = vmatprep.subr.mxu0 0.0
    %2374 = vmatpush1.msra.mxu0 0.0
    %2375 = vmatprep.subr.mxu0 0.0
    %2376 = vmatpush1.msra.mxu0 0.0
    %2377 = vmatprep.subr.mxu0 0.0
    %2378 = vmatpush1.msra.mxu0 0.0
    %2379 = vmatprep.mubr.f32.mxu0 0.0
    %2380 = vmatmul.mubr.f32.gmra.mrb[0].mxu0 %v2310
    %v2381 = vpop.f32.mrb[0].mxu0
    %v2382 = vadd.f32 0.0, %v2381
    %v2383 = vpop.f32.mrb[0].mxu0
    %2384 = vmatprep.mubr.f32.mxu0 0.0
    %2385 = vmatmul.mubr.f32.gmra.mrb[0].mxu0 %v2313
    %v2386 = vpop.f32.mrb[0].mxu0
    %v2387 = vadd.f32 0.0, %v2386
    %v2388 = vpop.f32.mrb[0].mxu0
    %2389 = vdwg.mxu0
    %v2390 = vmul.f32 %v2382, %v811
    %v2391 = vmul.f32 %v2387, %v811
    %v2392 = vadd.f32 %v2202, %v2390
    %v2393 = vadd.f32 %v2203, %v2391
    %v2394 = vmul.f32 %v1652, %v1006
    %v2395 = vmul.f32 %v1657, %v1006
    %v2397 = vsel %vm171, %v2394, 0
    %v2400 = vsel %vm171, %v2395, 0
    %2402 = vmatprep.subr.mxu0 0.0
    %2403 = vmatpush1.xpose.msra.mxu0 %v1827
    %2404 = vmatprep.subr.mxu0 0.0
    %2405 = vmatpush1.xpose.msra.mxu0 %v1830
    %2406 = vmatprep.subr.mxu0 0.0
    %2407 = vmatpush1.xpose.msra.mxu0 0.0
    %2408 = vmatprep.subr.mxu0 0.0
    %2409 = vmatpush1.xpose.msra.mxu0 0.0
    %2410 = vmatprep.subr.mxu0 0.0
    %2411 = vmatpush1.xpose.msra.mxu0 0.0
    %2412 = vmatprep.subr.mxu0 0.0
    %2413 = vmatpush1.xpose.msra.mxu0 0.0
    %2414 = vmatprep.subr.mxu0 0.0
    %2415 = vmatpush1.xpose.msra.mxu0 0.0
    %2416 = vmatprep.subr.mxu0 0.0
    %2417 = vmatpush1.xpose.msra.mxu0 0.0
    %2418 = vmatprep.subr.mxu0 0.0
    %2419 = vmatpush1.xpose.msra.mxu0 0.0
    %2420 = vmatprep.subr.mxu0 0.0
    %2421 = vmatpush1.xpose.msra.mxu0 0.0
    %2422 = vmatprep.subr.mxu0 0.0
    %2423 = vmatpush1.xpose.msra.mxu0 0.0
    %2424 = vmatprep.subr.mxu0 0.0
    %2425 = vmatpush1.xpose.msra.mxu0 0.0
    %2426 = vmatprep.subr.mxu0 0.0
    %2427 = vmatpush1.xpose.msra.mxu0 0.0
    %2428 = vmatprep.subr.mxu0 0.0
    %2429 = vmatpush1.xpose.msra.mxu0 0.0
    %2430 = vmatprep.subr.mxu0 0.0
    %2431 = vmatpush1.xpose.msra.mxu0 0.0
    %2432 = vmatprep.subr.mxu0 0.0
    %2433 = vmatpush1.xpose.msra.mxu0 0.0
    %2434 = vmatprep.subr.mxu0 0.0
    %2435 = vmatpush1.xpose.msra.mxu0 0.0
    %2436 = vmatprep.subr.mxu0 0.0
    %2437 = vmatpush1.xpose.msra.mxu0 0.0
    %2438 = vmatprep.subr.mxu0 0.0
    %2439 = vmatpush1.xpose.msra.mxu0 0.0
    %2440 = vmatprep.subr.mxu0 0.0
    %2441 = vmatpush1.xpose.msra.mxu0 0.0
    %2442 = vmatprep.subr.mxu0 0.0
    %2443 = vmatpush1.xpose.msra.mxu0 0.0
    %2444 = vmatprep.subr.mxu0 0.0
    %2445 = vmatpush1.xpose.msra.mxu0 0.0
    %2446 = vmatprep.subr.mxu0 0.0
    %2447 = vmatpush1.xpose.msra.mxu0 0.0
    %2448 = vmatprep.subr.mxu0 0.0
    %2449 = vmatpush1.xpose.msra.mxu0 0.0
    %2450 = vmatprep.subr.mxu0 0.0
    %2451 = vmatpush1.xpose.msra.mxu0 0.0
    %2452 = vmatprep.subr.mxu0 0.0
    %2453 = vmatpush1.xpose.msra.mxu0 0.0
    %2454 = vmatprep.subr.mxu0 0.0
    %2455 = vmatpush1.xpose.msra.mxu0 0.0
    %2456 = vmatprep.subr.mxu0 0.0
    %2457 = vmatpush1.xpose.msra.mxu0 0.0
    %2458 = vmatprep.subr.mxu0 0.0
    %2459 = vmatpush1.xpose.msra.mxu0 0.0
    %2460 = vmatprep.subr.mxu0 0.0
    %2461 = vmatpush1.xpose.msra.mxu0 0.0
    %2462 = vmatprep.subr.mxu0 0.0
    %2463 = vmatpush1.xpose.msra.mxu0 0.0
    %2464 = vmatprep.subr.mxu0 0.0
    %2465 = vmatpush1.xpose.msra.mxu0 0.0
    %2466 = vmatprep.mubr.f32.mxu0 0.0
    %2467 = vmatmul.mubr.f32.gmra.mrb[0].mxu0 %v2397
    %v2468 = vpop.f32.mrb[0].mxu0
    %v2469 = vadd.f32 %v143, %v2468
    %v2470 = vpop.f32.mrb[0].mxu0
    %2471 = vmatprep.mubr.f32.mxu0 0.0
    %2472 = vmatmul.mubr.f32.gmra.mrb[0].mxu0 %v2400
    %v2473 = vpop.f32.mrb[0].mxu0
    %v2474 = vadd.f32 %v144, %v2473
    %v2475 = vpop.f32.mrb[0].mxu0
    %2476 = vdwg.mxu0
    %v2477 = vsel %vm61, %v2469, -inf
    %2478 = vmax.xlane.f32.xlu0 %v2477
    %v2479 = vpop.xlane.xlu0 %2478
    %v2480 = vsel %vm61, %v2474, -inf
    %2481 = vmax.xlane.f32.xlu0 %v2480
    %v2482 = vpop.xlane.xlu0 %2481
    %v2483 = vsub.f32 %v2469, %v2479
    %v2484 = vsub.f32 %v2474, %v2482
    %v2485 = vmul.f32 %v2483, 1.442695
    %v2486 = vpow.pop %v2485
    %v2487 = vmul.f32 %v2484, 1.442695
    %v2488 = vpow.pop %v2487
    %v2489 = vsel %vm61, %v2486, 0.0
    %2490 = vadd.xlane.f32.xlu0 %v2489
    %v2491 = vpop.xlane.xlu0 %2490
    %v2492 = vsel %vm61, %v2488, 0.0
    %2493 = vadd.xlane.f32.xlu0 %v2492
    %v2494 = vpop.xlane.xlu0 %2493
    %v2495 = vrcp.pop %v2491
    %v2496 = vrcp.pop %v2494
    %v2497 = vmul.f32 %v2486, %v2495
    %v2498 = vmul.f32 %v2488, %v2496
    %v2500 = vsel %vm61, %v2497, 0
    %v2503 = vsel %vm61, %v2498, 0
    %2505 = vmatprep.subr.mxu0 0.0
    %2506 = vmatpush1.msra.mxu0 %v1810
    %2507 = vmatprep.subr.mxu0 0.0
    %2508 = vmatpush1.msra.mxu0 %v1815
    %2509 = vmatprep.subr.mxu0 0.0
    %2510 = vmatpush1.msra.mxu0 0.0
    %2511 = vmatprep.subr.mxu0 0.0
    %2512 = vmatpush1.msra.mxu0 0.0
    %2513 = vmatprep.subr.mxu0 0.0
    %2514 = vmatpush1.msra.mxu0 0.0
    %2515 = vmatprep.subr.mxu0 0.0
    %2516 = vmatpush1.msra.mxu0 0.0
    %2517 = vmatprep.subr.mxu0 0.0
    %2518 = vmatpush1.msra.mxu0 0.0
    %2519 = vmatprep.subr.mxu0 0.0
    %2520 = vmatpush1.msra.mxu0 0.0
    %2521 = vmatprep.subr.mxu0 0.0
    %2522 = vmatpush1.msra.mxu0 0.0
    %2523 = vmatprep.subr.mxu0 0.0
    %2524 = vmatpush1.msra.mxu0 0.0
    %2525 = vmatprep.subr.mxu0 0.0
    %2526 = vmatpush1.msra.mxu0 0.0
    %2527 = vmatprep.subr.mxu0 0.0
    %2528 = vmatpush1.msra.mxu0 0.0
    %2529 = vmatprep.subr.mxu0 0.0
    %2530 = vmatpush1.msra.mxu0 0.0
    %2531 = vmatprep.subr.mxu0 0.0
    %2532 = vmatpush1.msra.mxu0 0.0
    %2533 = vmatprep.subr.mxu0 0.0
    %2534 = vmatpush1.msra.mxu0 0.0
    %2535 = vmatprep.subr.mxu0 0.0
    %2536 = vmatpush1.msra.mxu0 0.0
    %2537 = vmatprep.subr.mxu0 0.0
    %2538 = vmatpush1.msra.mxu0 0.0
    %2539 = vmatprep.subr.mxu0 0.0
    %2540 = vmatpush1.msra.mxu0 0.0
    %2541 = vmatprep.subr.mxu0 0.0
    %2542 = vmatpush1.msra.mxu0 0.0
    %2543 = vmatprep.subr.mxu0 0.0
    %2544 = vmatpush1.msra.mxu0 0.0
    %2545 = vmatprep.subr.mxu0 0.0
    %2546 = vmatpush1.msra.mxu0 0.0
    %2547 = vmatprep.subr.mxu0 0.0
    %2548 = vmatpush1.msra.mxu0 0.0
    %2549 = vmatprep.subr.mxu0 0.0
    %2550 = vmatpush1.msra.mxu0 0.0
    %2551 = vmatprep.subr.mxu0 0.0
    %2552 = vmatpush1.msra.mxu0 0.0
    %2553 = vmatprep.subr.mxu0 0.0
    %2554 = vmatpush1.msra.mxu0 0.0
    %2555 = vmatprep.subr.mxu0 0.0
    %2556 = vmatpush1.msra.mxu0 0.0
    %2557 = vmatprep.subr.mxu0 0.0
    %2558 = vmatpush1.msra.mxu0 0.0
    %2559 = vmatprep.subr.mxu0 0.0
    %2560 = vmatpush1.msra.mxu0 0.0
    %2561 = vmatprep.subr.mxu0 0.0
    %2562 = vmatpush1.msra.mxu0 0.0
    %2563 = vmatprep.subr.mxu0 0.0
    %2564 = vmatpush1.msra.mxu0 0.0
    %2565 = vmatprep.subr.mxu0 0.0
    %2566 = vmatpush1.msra.mxu0 0.0
    %2567 = vmatprep.subr.mxu0 0.0
    %2568 = vmatpush1.msra.mxu0 0.0
    %2569 = vmatprep.mubr.f32.mxu0 0.0
    %2570 = vmatmul.mubr.f32.gmra.mrb[0].mxu0 %v2500
    %v2571 = vpop.f32.mrb[0].mxu0
    %v2572 = vadd.f32 0.0, %v2571
    %v2573 = vpop.f32.mrb[0].mxu0
    %2574 = vmatprep.mubr.f32.mxu0 0.0
    %2575 = vmatmul.mubr.f32.gmra.mrb[0].mxu0 %v2503
    %v2576 = vpop.f32.mrb[0].mxu0
    %v2577 = vadd.f32 0.0, %v2576
    %v2578 = vpop.f32.mrb[0].mxu0
    %2579 = vdwg.mxu0
    %v2580 = vmul.f32 %v2572, %v1006
    %v2581 = vmul.f32 %v2577, %v1006
    %v2582 = vadd.f32 %v2392, %v2580
    %v2583 = vadd.f32 %v2393, %v2581
    %v2584 = vlaneseq
    %v2585 = vshrl.u32 %v2584, 7
    %v2586 = vsub.s32 3, %v2585
    %v2587 = vrot.slane %v1571, %v2586
    %v2589 = vsel %vm171, %v2582, 0
    %v2592 = vsel %vm171, %v2583, 0
    %2594 = vmatprep.subr.mxu0 0.0
    %2595 = vmatpush1.msra.mxu0 %v1566
    %2596 = vmatprep.subr.mxu0 0.0
    %2597 = vmatpush1.msra.mxu0 %v1567
    %2598 = vmatprep.subr.mxu0 0.0
    %2599 = vmatpush1.msra.mxu0 %v1568
    %2600 = vmatprep.subr.mxu0 0.0
    %2601 = vmatpush1.msra.mxu0 %v1569
    %2602 = vmatprep.subr.mxu0 0.0
    %2603 = vmatpush1.msra.mxu0 0.0
    %2604 = vmatprep.subr.mxu0 0.0
    %2605 = vmatpush1.msra.mxu0 0.0
    %2606 = vmatprep.subr.mxu0 0.0
    %2607 = vmatpush1.msra.mxu0 0.0
    %2608 = vmatprep.subr.mxu0 0.0
    %2609 = vmatpush1.msra.mxu0 0.0
    %2610 = vmatprep.subr.mxu0 0.0
    %2611 = vmatpush1.msra.mxu0 0.0
    %2612 = vmatprep.subr.mxu0 0.0
    %2613 = vmatpush1.msra.mxu0 0.0
    %2614 = vmatprep.subr.mxu0 0.0
    %2615 = vmatpush1.msra.mxu0 0.0
    %2616 = vmatprep.subr.mxu0 0.0
    %2617 = vmatpush1.msra.mxu0 0.0
    %2618 = vmatprep.subr.mxu0 0.0
    %2619 = vmatpush1.msra.mxu0 0.0
    %2620 = vmatprep.subr.mxu0 0.0
    %2621 = vmatpush1.msra.mxu0 0.0
    %2622 = vmatprep.subr.mxu0 0.0
    %2623 = vmatpush1.msra.mxu0 0.0
    %2624 = vmatprep.subr.mxu0 0.0
    %2625 = vmatpush1.msra.mxu0 0.0
    %2626 = vmatprep.subr.mxu0 0.0
    %2627 = vmatpush1.msra.mxu0 0.0
    %2628 = vmatprep.subr.mxu0 0.0
    %2629 = vmatpush1.msra.mxu0 0.0
    %2630 = vmatprep.subr.mxu0 0.0
    %2631 = vmatpush1.msra.mxu0 0.0
    %2632 = vmatprep.subr.mxu0 0.0
    %2633 = vmatpush1.msra.mxu0 0.0
    %2634 = vmatprep.subr.mxu0 0.0
    %2635 = vmatpush1.msra.mxu0 0.0
    %2636 = vmatprep.subr.mxu0 0.0
    %2637 = vmatpush1.msra.mxu0 0.0
    %2638 = vmatprep.subr.mxu0 0.0
    %2639 = vmatpush1.msra.mxu0 0.0
    %2640 = vmatprep.subr.mxu0 0.0
    %2641 = vmatpush1.msra.mxu0 0.0
    %2642 = vmatprep.subr.mxu0 0.0
    %2643 = vmatpush1.msra.mxu0 0.0
    %2644 = vmatprep.subr.mxu0 0.0
    %2645 = vmatpush1.msra.mxu0 0.0
    %2646 = vmatprep.subr.mxu0 0.0
    %2647 = vmatpush1.msra.mxu0 0.0
    %2648 = vmatprep.subr.mxu0 0.0
    %2649 = vmatpush1.msra.mxu0 0.0
    %2650 = vmatprep.subr.mxu0 0.0
    %2651 = vmatpush1.msra.mxu0 0.0
    %2652 = vmatprep.subr.mxu0 0.0
    %2653 = vmatpush1.msra.mxu0 0.0
    %2654 = vmatprep.subr.mxu0 0.0
    %2655 = vmatpush1.msra.mxu0 0.0
    %2656 = vmatprep.subr.mxu0 0.0
    %2657 = vmatpush1.msra.mxu0 0.0
    %2658 = vmatprep.mubr.f32.mxu0 0.0
    %2659 = vmatmul.mubr.f32.gmra.mrb[0].mxu0 %v2589
    %v2660 = vpop.f32.mrb[0].mxu0
    %v2661 = vadd.f32 %v2587, %v2660
    %v2662 = vpop.f32.mrb[0].mxu0
    %2663 = vmatprep.mubr.f32.mxu0 0.0
    %2664 = vmatmul.mubr.f32.gmra.mrb[0].mxu0 %v2592
    %v2665 = vpop.f32.mrb[0].mxu0
    %v2666 = vadd.f32 %v2587, %v2665
    %v2667 = vpop.f32.mrb[0].mxu0
    %2668 = vdwg.mxu0
    %v2669 = vadd.f32 %v1548, %v2661
    %v2670 = vadd.f32 %v1549, %v2666
    %v2671 = vsel %vm171, %v2669, 0.0
    %2672 = vadd.xlane.f32.xlu0 %v2671
    %v2673 = vpop.xlane.xlu0 %2672
    %v2674 = vsel %vm171, %v2670, 0.0
    %2675 = vadd.xlane.f32.xlu0 %v2674
    %v2676 = vpop.xlane.xlu0 %2675
    %v2677 = vmul.f32 %v2673, %v1290
    %v2678 = vmul.f32 %v2676, %v1290
    %v2679 = vsub.f32 %v2669, %v2677
    %v2680 = vsub.f32 %v2670, %v2678
    %v2681 = vmul.f32 %v2679, %v2679
    %v2682 = vmul.f32 %v2680, %v2680
    %v2683 = vsel %vm171, %v2681, 0.0
    %2684 = vadd.xlane.f32.xlu0 %v2683
    %v2685 = vpop.xlane.xlu0 %2684
    %v2686 = vsel %vm171, %v2682, 0.0
    %2687 = vadd.xlane.f32.xlu0 %v2686
    %v2688 = vpop.xlane.xlu0 %2687
    %v2689 = vmul.f32 %v2685, %v1290
    %v2690 = vmul.f32 %v2688, %v1290
    %v2691 = vadd.f32 %v2689, 1e-05
    %v2692 = vadd.f32 %v2690, 1e-05
    %v2693 = vrsqrt.pop %v2691
    %v2694 = vrsqrt.pop %v2692
    %v2695 = vmul.f32 %v2679, %v2693
    %v2696 = vmul.f32 %v2680, %v2694
    %v2697 = vlaneseq
    %v2698 = vshrl.u32 %v2697, 7
    %v2699 = vsub.s32 5, %v2698
    %v2700 = vrot.slane %v1571, %v2699
    %v2701 = vmul.f32 %v2695, %v2700
    %v2702 = vmul.f32 %v2696, %v2700
    %v2703 = vlaneseq
    %v2704 = vshrl.u32 %v2703, 7
    %v2705 = vsub.s32 6, %v2704
    %v2706 = vrot.slane %v1571, %v2705
    %v2707 = vadd.f32 %v2701, %v2706
    %v2708 = vadd.f32 %v2702, %v2706
    %s2709 = scalar_lea.vmem %s6, 32
    %v2710 = vld [vmem:[%s2709] sm:$0xff]
    %v2711 = vld [vmem:[%s2709 + $0x8] sm:$0xff]
    %v2712 = vld [vmem:[%s2709 + $0x10] sm:$0xff]
    %v2713 = vld [vmem:[%s2709 + $0x18] sm:$0xff]
    %v2715 = vlaneseq
    %v2716 = vshrl.u32 %v2715, 7
    %v2717 = vsub.s32 0, %v2716
    %v2718 = vrot.slane %v1574, %v2717
    %v2721 = vsel %vm171, %v2707, 0
    %v2724 = vsel %vm171, %v2708, 0
    %2726 = vmatprep.subr.mxu0 0.0
    %2727 = vmatpush1.msra.mxu0 %v2710
    %2728 = vmatprep.subr.mxu0 0.0
    %2729 = vmatpush1.msra.mxu0 %v2711
    %2730 = vmatprep.subr.mxu0 0.0
    %2731 = vmatpush1.msra.mxu0 %v2712
    %2732 = vmatprep.subr.mxu0 0.0
    %2733 = vmatpush1.msra.mxu0 %v2713
    %2734 = vmatprep.subr.mxu0 0.0
    %2735 = vmatpush1.msra.mxu0 0.0
    %2736 = vmatprep.subr.mxu0 0.0
    %2737 = vmatpush1.msra.mxu0 0.0
    %2738 = vmatprep.subr.mxu0 0.0
    %2739 = vmatpush1.msra.mxu0 0.0
    %2740 = vmatprep.subr.mxu0 0.0
    %2741 = vmatpush1.msra.mxu0 0.0
    %2742 = vmatprep.subr.mxu0 0.0
    %2743 = vmatpush1.msra.mxu0 0.0
    %2744 = vmatprep.subr.mxu0 0.0
    %2745 = vmatpush1.msra.mxu0 0.0
    %2746 = vmatprep.subr.mxu0 0.0
    %2747 = vmatpush1.msra.mxu0 0.0
    %2748 = vmatprep.subr.mxu0 0.0
    %2749 = vmatpush1.msra.mxu0 0.0
    %2750 = vmatprep.subr.mxu0 0.0
    %2751 = vmatpush1.msra.mxu0 0.0
    %2752 = vmatprep.subr.mxu0 0.0
    %2753 = vmatpush1.msra.mxu0 0.0
    %2754 = vmatprep.subr.mxu0 0.0
    %2755 = vmatpush1.msra.mxu0 0.0
    %2756 = vmatprep.subr.mxu0 0.0
    %2757 = vmatpush1.msra.mxu0 0.0
    %2758 = vmatprep.subr.mxu0 0.0
    %2759 = vmatpush1.msra.mxu0 0.0
    %2760 = vmatprep.subr.mxu0 0.0
    %2761 = vmatpush1.msra.mxu0 0.0
    %2762 = vmatprep.subr.mxu0 0.0
    %2763 = vmatpush1.msra.mxu0 0.0
    %2764 = vmatprep.subr.mxu0 0.0
    %2765 = vmatpush1.msra.mxu0 0.0
    %2766 = vmatprep.subr.mxu0 0.0
    %2767 = vmatpush1.msra.mxu0 0.0
    %2768 = vmatprep.subr.mxu0 0.0
    %2769 = vmatpush1.msra.mxu0 0.0
    %2770 = vmatprep.subr.mxu0 0.0
    %2771 = vmatpush1.msra.mxu0 0.0
    %2772 = vmatprep.subr.mxu0 0.0
    %2773 = vmatpush1.msra.mxu0 0.0
    %2774 = vmatprep.subr.mxu0 0.0
    %2775 = vmatpush1.msra.mxu0 0.0
    %2776 = vmatprep.subr.mxu0 0.0
    %2777 = vmatpush1.msra.mxu0 0.0
    %2778 = vmatprep.subr.mxu0 0.0
    %2779 = vmatpush1.msra.mxu0 0.0
    %2780 = vmatprep.subr.mxu0 0.0
    %2781 = vmatpush1.msra.mxu0 0.0
    %2782 = vmatprep.subr.mxu0 0.0
    %2783 = vmatpush1.msra.mxu0 0.0
    %2784 = vmatprep.subr.mxu0 0.0
    %2785 = vmatpush1.msra.mxu0 0.0
    %2786 = vmatprep.subr.mxu0 0.0
    %2787 = vmatpush1.msra.mxu0 0.0
    %2788 = vmatprep.subr.mxu0 0.0
    %2789 = vmatpush1.msra.mxu0 0.0
    %2790 = vmatprep.mubr.f32.mxu0 0.0
    %2791 = vmatmul.mubr.f32.gmra.mrb[0].mxu0 %v2721
    %v2792 = vpop.f32.mrb[0].mxu0
    %v2793 = vadd.f32 %v2718, %v2792
    %v2794 = vpop.f32.mrb[0].mxu0
    %2795 = vmatprep.mubr.f32.mxu0 0.0
    %2796 = vmatmul.mubr.f32.gmra.mrb[0].mxu0 %v2724
    %v2797 = vpop.f32.mrb[0].mxu0
    %v2798 = vadd.f32 %v2718, %v2797
    %v2799 = vpop.f32.mrb[0].mxu0
    %2800 = vdwg.mxu0
    %v2801 = vmax.f32 %v2793, 0.0
    %v2802 = vmax.f32 %v2798, 0.0
    %s2803 = scalar_lea.vmem %s7, 64
    %v2804 = vld [vmem:[%s2803] sm:$0xff]
    %v2805 = vld [vmem:[%s2803 + $0x8] sm:$0xff]
    %v2806 = vld [vmem:[%s2803 + $0x10] sm:$0xff]
    %v2807 = vld [vmem:[%s2803 + $0x18] sm:$0xff]
    %v2808 = vld [vmem:[%s2803 + $0x20] sm:$0xff]
    %v2809 = vld [vmem:[%s2803 + $0x28] sm:$0xff]
    %v2810 = vld [vmem:[%s2803 + $0x30] sm:$0xff]
    %v2811 = vld [vmem:[%s2803 + $0x38] sm:$0xff]
    %v2812 = vlaneseq
    %v2813 = vshrl.u32 %v2812, 7
    %v2814 = vsub.s32 4, %v2813
    %v2815 = vrot.slane %v1571, %v2814
    %v2817 = vsel %vm1428, %v2801, 0
    %v2820 = vsel %vm1428, %v2802, 0
    %2822 = vmatprep.subr.mxu0 0.0
    %2823 = vmatpush1.msra.mxu0 %v2804
    %2824 = vmatprep.subr.mxu0 0.0
    %2825 = vmatpush1.msra.mxu0 %v2805
    %2826 = vmatprep.subr.mxu0 0.0
    %2827 = vmatpush1.msra.mxu0 %v2806
    %2828 = vmatprep.subr.mxu0 0.0
    %2829 = vmatpush1.msra.mxu0 %v2807
    %2830 = vmatprep.subr.mxu0 0.0
    %2831 = vmatpush1.msra.mxu0 %v2808
    %2832 = vmatprep.subr.mxu0 0.0
    %2833 = vmatpush1.msra.mxu0 %v2809
    %2834 = vmatprep.subr.mxu0 0.0
    %2835 = vmatpush1.msra.mxu0 %v2810
    %2836 = vmatprep.subr.mxu0 0.0
    %2837 = vmatpush1.msra.mxu0 %v2811
    %2838 = vmatprep.subr.mxu0 0.0
    %2839 = vmatpush1.msra.mxu0 0.0
    %2840 = vmatprep.subr.mxu0 0.0
    %2841 = vmatpush1.msra.mxu0 0.0
    %2842 = vmatprep.subr.mxu0 0.0
    %2843 = vmatpush1.msra.mxu0 0.0
    %2844 = vmatprep.subr.mxu0 0.0
    %2845 = vmatpush1.msra.mxu0 0.0
    %2846 = vmatprep.subr.mxu0 0.0
    %2847 = vmatpush1.msra.mxu0 0.0
    %2848 = vmatprep.subr.mxu0 0.0
    %2849 = vmatpush1.msra.mxu0 0.0
    %2850 = vmatprep.subr.mxu0 0.0
    %2851 = vmatpush1.msra.mxu0 0.0
    %2852 = vmatprep.subr.mxu0 0.0
    %2853 = vmatpush1.msra.mxu0 0.0
    %2854 = vmatprep.subr.mxu0 0.0
    %2855 = vmatpush1.msra.mxu0 0.0
    %2856 = vmatprep.subr.mxu0 0.0
    %2857 = vmatpush1.msra.mxu0 0.0
    %2858 = vmatprep.subr.mxu0 0.0
    %2859 = vmatpush1.msra.mxu0 0.0
    %2860 = vmatprep.subr.mxu0 0.0
    %2861 = vmatpush1.msra.mxu0 0.0
    %2862 = vmatprep.subr.mxu0 0.0
    %2863 = vmatpush1.msra.mxu0 0.0
    %2864 = vmatprep.subr.mxu0 0.0
    %2865 = vmatpush1.msra.mxu0 0.0
    %2866 = vmatprep.subr.mxu0 0.0
    %2867 = vmatpush1.msra.mxu0 0.0
    %2868 = vmatprep.subr.mxu0 0.0
    %2869 = vmatpush1.msra.mxu0 0.0
    %2870 = vmatprep.subr.mxu0 0.0
    %2871 = vmatpush1.msra.mxu0 0.0
    %2872 = vmatprep.subr.mxu0 0.0
    %2873 = vmatpush1.msra.mxu0 0.0
    %2874 = vmatprep.subr.mxu0 0.0
    %2875 = vmatpush1.msra.mxu0 0.0
    %2876 = vmatprep.subr.mxu0 0.0
    %2877 = vmatpush1.msra.mxu0 0.0
    %2878 = vmatprep.subr.mxu0 0.0
    %2879 = vmatpush1.msra.mxu0 0.0
    %2880 = vmatprep.subr.mxu0 0.0
    %2881 = vmatpush1.msra.mxu0 0.0
    %2882 = vmatprep.subr.mxu0 0.0
    %2883 = vmatpush1.msra.mxu0 0.0
    %2884 = vmatprep.subr.mxu0 0.0
    %2885 = vmatpush1.msra.mxu0 0.0
    %2886 = vmatprep.mubr.f32.mxu0 0.0
    %2887 = vmatmul.mubr.f32.gmra.mrb[0].mxu0 %v2817
    %v2888 = vpop.f32.mrb[0].mxu0
    %v2889 = vadd.f32 %v2815, %v2888
    %v2890 = vpop.f32.mrb[0].mxu0
    %2891 = vmatprep.mubr.f32.mxu0 0.0
    %2892 = vmatmul.mubr.f32.gmra.mrb[0].mxu0 %v2820
    %v2893 = vpop.f32.mrb[0].mxu0
    %v2894 = vadd.f32 %v2815, %v2893
    %v2895 = vpop.f32.mrb[0].mxu0
    %2896 = vdwg.mxu0
    %v2897 = vadd.f32 %v2707, %v2889
    %v2898 = vadd.f32 %v2708, %v2894
    %v2899 = vsel %vm171, %v2897, 0.0
    %2900 = vadd.xlane.f32.xlu0 %v2899
    %v2901 = vpop.xlane.xlu0 %2900
    %v2902 = vsel %vm171, %v2898, 0.0
    %2903 = vadd.xlane.f32.xlu0 %v2902
    %v2904 = vpop.xlane.xlu0 %2903
    %v2905 = vmul.f32 %v2901, %v1290
    %v2906 = vmul.f32 %v2904, %v1290
    %v2907 = vsub.f32 %v2897, %v2905
    %v2908 = vsub.f32 %v2898, %v2906
    %v2909 = vmul.f32 %v2907, %v2907
    %v2910 = vmul.f32 %v2908, %v2908
    %v2911 = vsel %vm171, %v2909, 0.0
    %2912 = vadd.xlane.f32.xlu0 %v2911
    %v2913 = vpop.xlane.xlu0 %2912
    %v2914 = vsel %vm171, %v2910, 0.0
    %2915 = vadd.xlane.f32.xlu0 %v2914
    %v2916 = vpop.xlane.xlu0 %2915
    %v2917 = vmul.f32 %v2913, %v1290
    %v2918 = vmul.f32 %v2916, %v1290
    %v2919 = vadd.f32 %v2917, 1e-05
    %v2920 = vadd.f32 %v2918, 1e-05
    %v2921 = vrsqrt.pop %v2919
    %v2922 = vrsqrt.pop %v2920
    %v2923 = vmul.f32 %v2907, %v2921
    %v2924 = vmul.f32 %v2908, %v2922
    %v2925 = vlaneseq
    %v2926 = vshrl.u32 %v2925, 7
    %v2927 = vsub.s32 7, %v2926
    %v2928 = vrot.slane %v1571, %v2927
    %v2929 = vmul.f32 %v2923, %v2928
    %v2930 = vmul.f32 %v2924, %v2928
    %v2931 = vlaneseq
    %v2932 = vshrl.u32 %v2931, 7
    %v2933 = vsub.s32 0, %v2932
    %v2934 = vrot.slane %v1572, %v2933
    %v2935 = vadd.f32 %v2929, %v2934
    %v2936 = vadd.f32 %v2930, %v2934
    %2937 = vst.msk [vmem:[#allocation5] sm:$0xff] %vm171, %v2935
    %2938 = vst.msk [vmem:[#allocation5 + $0x8] sm:$0xff] %vm171, %v2936
    // Predicated region
    $region46: #{tpu_custom_call.1} parent=1 // pred_check
      _
    $region47: #{tpu_custom_call.1} parent=1 // pred_check_branch
      %2940 = sbr.rel (0) target = $region49
    $region48: #{tpu_custom_call.1} parent=1 // pred_region
      %s2942 = ssub.s32 256, 256
      %2943 = vsyncadd [#allocation4], %s2942
      %s2944 = sshll.u32 [#allocation5], 4
      %s2945 = int_to_ptr.vmem [resolvable:$true] %s2944
      %2950 = dma.vmem_to_hbm [thread:$0]  %s2945, 256, %s10, [#allocation4], 128, 128, 8
    $region49: #{tpu_custom_call.1} parent=1 // pred_fallthru
      _
    // Predicated region
    $region50: #{tpu_custom_call.1} parent=1 // pred_check
      _
    $region51: #{tpu_custom_call.1} parent=1 // pred_check_branch
      %2952 = sbr.rel (0) target = $region53
    $region52: #{tpu_custom_call.1} parent=1 // pred_region
      %2953 = dma.done [#allocation4], 256
    $region53: #{tpu_custom_call.1} parent=1 // pred_fallthru
      _
    %2954 = vsyncpa [#allocation3], 1
    %2955 = vsyncpa [#allocation4], 1

</llo_original>
